<compile_context>
chip_gen: v5e
topology: v5e:2x2
jax: 0.10.0
libtpu: 0.0.40
codegen_flags: <defaults>
</compile_context>

<pallas_src>
import functools

import jax
import jax.numpy as jnp
from jax.experimental import pallas as pl
from jax.experimental.pallas import tpu as pltpu


def dual_encoder_kb_kernel(x_ref, d_ref,
                           lwih_ref, gwih_ref, whh_ref,
                           lb_ref, gbih_ref, gbhh_ref,
                           cw_ref, cb_ref, M_ref, b_ref,
                           out_ref, *, L, Ld, TB):
    f32, bf16 = jnp.float32, jnp.bfloat16
    H = M_ref.shape[0]
    B2 = 2 * TB

    # Time-major, pre-flattened inputs (row = t*2B + pair*B + local_batch).
    x = x_ref[0]                                   # (L*2B,  E) bf16
    d = d_ref[0]                                   # (Ld*2B, E) bf16

    # ---- fused input projections: one large-M 2-D MXU matmul per RNN -------
    xp = jnp.dot(x, lwih_ref[...], preferred_element_type=f32) + lb_ref[...]
    dp = jnp.dot(d, gwih_ref[...], preferred_element_type=f32) + gbih_ref[...]
    # xp: (L*2B, 4H) f32   dp: (Ld*2B, 3H) f32

    whh = whh_ref[...]                             # (2H, 7H) block-diag weight
    gbhh = jnp.broadcast_to(gbhh_ref[...], (B2, 3 * H))   # hoisted broadcast

    def lstm_step(gates, c_prev):
        i_g = jax.nn.sigmoid(gates[:, 0 * H:1 * H])
        f_g = jax.nn.sigmoid(gates[:, 1 * H:2 * H])
        g_g = jnp.tanh(gates[:, 2 * H:3 * H])
        o_g = jax.nn.sigmoid(gates[:, 3 * H:4 * H])
        c_new = f_g * c_prev + i_g * g_g
        return o_g * jnp.tanh(c_new), c_new

    def gru_step(xg, hp, h_prev):
        r_g = jax.nn.sigmoid(xg[:, 0 * H:1 * H] + hp[:, 0 * H:1 * H])
        z_g = jax.nn.sigmoid(xg[:, 1 * H:2 * H] + hp[:, 1 * H:2 * H])
        n_g = jnp.tanh(xg[:, 2 * H:3 * H] + r_g * hp[:, 2 * H:3 * H])
        return (1.0 - z_g) * n_g + z_g * h_prev

    h_l = jnp.zeros((B2, H), f32)
    c_l = jnp.zeros((B2, H), f32)
    h_g = jnp.zeros((B2, H), f32)

    # ---- interleaved + fused LSTM/GRU recurrence ----------------------------
    T0 = min(L, Ld)
    for t in range(T0):                            # short static loop, unrolled
        hcat = jnp.concatenate([h_l, h_g], axis=1).astype(bf16)   # (2B, 2H)
        hp = jnp.dot(hcat, whh, preferred_element_type=f32)       # (2B, 7H)
        h_l, c_l = lstm_step(xp[t * B2:(t + 1) * B2, :] + hp[:, :4 * H], c_l)
        h_g = gru_step(dp[t * B2:(t + 1) * B2, :], hp[:, 4 * H:] + gbhh, h_g)

    # Remainder of whichever recurrence is longer (plain per-step matmuls).
    for t in range(T0, L):
        hp = jnp.dot(h_l.astype(bf16), whh_ref[:H, :4 * H],
                     preferred_element_type=f32)
        h_l, c_l = lstm_step(xp[t * B2:(t + 1) * B2, :] + hp, c_l)
    for t in range(T0, Ld):
        hp = jnp.dot(h_g.astype(bf16), whh_ref[H:, 4 * H:],
                     preferred_element_type=f32)
        h_g = gru_step(dp[t * B2:(t + 1) * B2, :], hp + gbhh, h_g)

    # ---- kb_combine: cat([h_lstm, h_gru]) @ W.T + b  (single K=2H matmul) ---
    hcat = jnp.concatenate([h_l, h_g], axis=1).astype(bf16)       # (2B, 2H)
    comb = jnp.dot(hcat, cw_ref[...], preferred_element_type=f32) + cb_ref[...]

    # ---- bilinear score: c @ M @ r + b --------------------------------------
    c_enc = comb[:TB, :]                           # (TB, H)  (x1 encodings)
    r_enc = comb[TB:, :]                           # (TB, H)  (x2 encodings)
    o = jnp.dot(c_enc.astype(bf16), M_ref[...], preferred_element_type=f32)
    score = jnp.sum(o * r_enc, axis=1, keepdims=True) + b_ref[0]  # (TB, 1)
    # lane-dense output slab (unmasked stores); wrapper slices column 0
    out_ref[...] = jnp.broadcast_to(score, (TB, out_ref.shape[1]))


def lstm_dual_encoder_kb(x1, x2, d1, d2, params, *, tb=None):
    """x1,x2: (B,L) int32 token ids; d1,d2: (B,Ld) int32 KB-description ids."""
    emb = params["emb"]
    # Embedding gather is glue (XLA gather); emb_drop is eval-mode identity.
    e1 = jnp.take(emb, x1, axis=0)
    e2 = jnp.take(emb, x2, axis=0)
    ed1 = jnp.take(emb, d1, axis=0)
    ed2 = jnp.take(emb, d2, axis=0)

    B, L, E = e1.shape
    Ld = ed1.shape[1]
    H = params["lstm_w_hh"].shape[0]

    # Batch tile: full batch at demo sizes (grid=(1,)). On v7x with B >= 16,
    # pick tb = (B // 2) rounded to a multiple of 8 so the "parallel" grid
    # shards across the 2 TensorCores, and re-derive against 64 MiB VMEM.
    if tb is None:
        tb = B
    assert B % tb == 0, "pad the batch so B % tb == 0 (avoids garbage tiles)"
    assert tb == B or tb % 8 == 0, "tb must be a multiple of 8 when tiling"
    nb = B // tb

    def to_tiles(a, b_, tb_):
        # (B,S,E) x1-half + (B,S,E) x2-half -> (nb, S*2*tb, E), time-major row
        # order within each batch tile: row = t*(2*tb) + pair*tb + local_b
        # (pair 0 = context/c, pair 1 = response/r).
        S = a.shape[1]
        s = jnp.stack([a, b_], axis=0).reshape(2, nb, tb_, S, E)
        s = jnp.transpose(s, (1, 3, 0, 2, 4))           # (nb, S, 2, tb, E)
        return s.reshape(nb, S * 2 * tb_, E).astype(jnp.bfloat16)

    x12 = to_tiles(e1, e2, tb)        # (nb, L*2*tb,  E)
    d12 = to_tiles(ed1, ed2, tb)      # (nb, Ld*2*tb, E)

    bf = lambda a: a.astype(jnp.bfloat16)
    # Block-diagonal hidden->gates weight: [[W_hh_lstm, 0], [0, W_hh_gru]].
    whh_blk = jnp.zeros((2 * H, 7 * H), jnp.float32)
    whh_blk = whh_blk.at[:H, :4 * H].set(params["lstm_w_hh"])
    whh_blk = whh_blk.at[H:, 4 * H:].set(params["gru_w_hh"])
    lstm_b = params["lstm_b_ih"] + params["lstm_b_hh"]   # pre-summed (1, 4H)

    args = (x12, d12,
            bf(params["lstm_w_ih"]), bf(params["gru_w_ih"]), bf(whh_blk),
            lstm_b, params["gru_b_ih"], params["gru_b_hh"],
            bf(params["comb_w"]), params["comb_b"],
            bf(params["M"]), params["b"])

    const2 = lambda i: (0, 0)
    in_specs = [
        pl.BlockSpec((1, L * 2 * tb, E), lambda i: (i, 0, 0)),
        pl.BlockSpec((1, Ld * 2 * tb, E), lambda i: (i, 0, 0)),
        pl.BlockSpec((E, 4 * H), const2),
        pl.BlockSpec((E, 3 * H), const2),
        pl.BlockSpec((2 * H, 7 * H), const2),
        pl.BlockSpec((1, 4 * H), const2),
        pl.BlockSpec((1, 3 * H), const2),
        pl.BlockSpec((1, 3 * H), const2),
        pl.BlockSpec((2 * H, H), const2),
        pl.BlockSpec((1, H), const2),
        pl.BlockSpec((H, H), const2),
        pl.BlockSpec(memory_space=pltpu.MemorySpace.SMEM),   # scalar bias b
    ]

    kernel = functools.partial(dual_encoder_kb_kernel, L=L, Ld=Ld, TB=tb)
    out = pl.pallas_call(
        kernel,
        grid=(nb,),
        in_specs=in_specs,
        out_specs=pl.BlockSpec((tb, 128), lambda i: (i, 0)),
        out_shape=jax.ShapeDtypeStruct((B, 128), jnp.float32),
        compiler_params=pltpu.CompilerParams(
            dimension_semantics=("parallel",)),
    )(*args)
    return out[:, 0]                                        # (B,)


def init_params(key, n_vocab, emb_dim, h_dim, pad_idx=0):
    H = h_dim
    ks = jax.random.split(key, 12)

    def unif(k, shape, bound):
        return jax.random.uniform(k, shape, jnp.float32, -bound, bound)

    emb = jax.random.normal(ks[0], (n_vocab, emb_dim), jnp.float32)
    emb = emb.at[pad_idx].set(0.0)                          # padding_idx row

    br = 1.0 / (H ** 0.5)                                   # RNN init bound
    lstm_b_ih = unif(ks[3], (1, 4 * H), br)
    lstm_b_hh = unif(ks[4], (1, 4 * H), br)
    # bias[size//4 : size//2] = 2 (forget gate, PyTorch order i,f,g,o) —
    # set on BOTH biases, matching the source init_params_.
    lstm_b_ih = lstm_b_ih.at[:, H:2 * H].set(2.0)
    lstm_b_hh = lstm_b_hh.at[:, H:2 * H].set(2.0)

    bc = 1.0 / ((2 * H) ** 0.5)                             # Linear(2H,H) bound

    params = {
        "emb": emb,
        "lstm_w_ih": unif(ks[1], (emb_dim, 4 * H), br),     # = W_ih.T
        "lstm_w_hh": unif(ks[2], (H, 4 * H), br),           # = W_hh.T
        "lstm_b_ih": lstm_b_ih,
        "lstm_b_hh": lstm_b_hh,
        "gru_w_ih": unif(ks[5], (emb_dim, 3 * H), br),
        "gru_w_hh": unif(ks[6], (H, 3 * H), br),
        "gru_b_ih": unif(ks[7], (1, 3 * H), br),
        "gru_b_hh": unif(ks[8], (1, 3 * H), br),
        "comb_w": unif(ks[9], (2 * H, H), bc),              # = weight.T
        "comb_b": unif(ks[10], (1, H), bc),
        # xavier_normal: std = sqrt(2 / (H + H)) = 1/sqrt(H)
        "M": (1.0 / H) ** 0.5 * jax.random.normal(ks[11], (H, H), jnp.float32),
        "b": jnp.zeros((1,), jnp.float32),                  # nn.Parameter([0])
    }
    return params


def reference_forward(x1, x2, d1, d2, params):
    """Pure-JAX f32 reference of the PyTorch forward (eval mode)."""
    hi = jax.lax.Precision.HIGHEST
    H = params["lstm_w_hh"].shape[0]
    embed = lambda ids: jnp.take(params["emb"], ids, axis=0)

    def lstm_last_h(xe):
        B = xe.shape[0]
        h = jnp.zeros((B, H), jnp.float32)
        c = jnp.zeros((B, H), jnp.float32)
        for t in range(xe.shape[1]):
            g = (jnp.dot(xe[:, t, :], params["lstm_w_ih"], precision=hi)
                 + params["lstm_b_ih"]
                 + jnp.dot(h, params["lstm_w_hh"], precision=hi)
                 + params["lstm_b_hh"])
            i = jax.nn.sigmoid(g[:, :H]); f = jax.nn.sigmoid(g[:, H:2 * H])
            gg = jnp.tanh(g[:, 2 * H:3 * H]); o = jax.nn.sigmoid(g[:, 3 * H:])
            c = f * c + i * gg
            h = o * jnp.tanh(c)
        return h

    def gru_last_h(xe):
        B = xe.shape[0]
        h = jnp.zeros((B, H), jnp.float32)
        for t in range(xe.shape[1]):
            xg = jnp.dot(xe[:, t, :], params["gru_w_ih"], precision=hi) + params["gru_b_ih"]
            hg = jnp.dot(h, params["gru_w_hh"], precision=hi) + params["gru_b_hh"]
            r = jax.nn.sigmoid(xg[:, :H] + hg[:, :H])
            z = jax.nn.sigmoid(xg[:, H:2 * H] + hg[:, H:2 * H])
            n = jnp.tanh(xg[:, 2 * H:] + r * hg[:, 2 * H:])
            h = (1.0 - z) * n + z * h
        return h

    c = lstm_last_h(embed(x1)); r = lstm_last_h(embed(x2))
    cd = gru_last_h(embed(d1)); rd = gru_last_h(embed(d2))
    c = (jnp.dot(jnp.concatenate([c, cd], axis=1), params["comb_w"], precision=hi)
         + params["comb_b"])
    r = (jnp.dot(jnp.concatenate([r, rd], axis=1), params["comb_w"], precision=hi)
         + params["comb_b"])
    o = jnp.dot(c, params["M"], precision=hi)
    return jnp.sum(o * r, axis=1) + params["b"][0]


if __name__ == "__main__":
    B, L, Ld, E, H, n_vocab = 4, 8, 6, 32, 128, 50

    key = jax.random.PRNGKey(0)
    kp, k1, k2, k3, k4 = jax.random.split(key, 5)
    params = init_params(kp, n_vocab, E, H)

    x1 = jax.random.randint(k1, (B, L), 0, n_vocab, jnp.int32)
    x2 = jax.random.randint(k2, (B, L), 0, n_vocab, jnp.int32)
    d1 = jax.random.randint(k3, (B, Ld), 0, n_vocab, jnp.int32)
    d2 = jax.random.randint(k4, (B, Ld), 0, n_vocab, jnp.int32)

    out = jax.block_until_ready(lstm_dual_encoder_kb(x1, x2, d1, d2, params))
    ref = jax.block_until_ready(reference_forward(x1, x2, d1, d2, params))

    assert out.shape == (B,)
    assert jnp.allclose(out, ref, rtol=5e-2, atol=1e-2), (out, ref)
    print("KERNEL_OK")
</pallas_src>

<mosaic_0001>
module attributes {stable_mosaic.version = 11 : i64} {
  func.func @dual_encoder_kb_kernel(%arg0: i32, %arg1: memref<1x64x32xbf16, #tpu.memory_space<vmem>>, %arg2: memref<1x48x32xbf16, #tpu.memory_space<vmem>>, %arg3: memref<32x512xbf16, #tpu.memory_space<vmem>>, %arg4: memref<32x384xbf16, #tpu.memory_space<vmem>>, %arg5: memref<256x896xbf16, #tpu.memory_space<vmem>>, %arg6: memref<1x512xf32, #tpu.memory_space<vmem>>, %arg7: memref<1x384xf32, #tpu.memory_space<vmem>>, %arg8: memref<1x384xf32, #tpu.memory_space<vmem>>, %arg9: memref<256x128xbf16, #tpu.memory_space<vmem>>, %arg10: memref<1x128xf32, #tpu.memory_space<vmem>>, %arg11: memref<128x128xbf16, #tpu.memory_space<vmem>>, %arg12: memref<1xf32, #tpu.memory_space<smem>>, %arg13: memref<4x128xf32, #tpu.memory_space<vmem>>) attributes {dimension_semantics = [#tpu.dimension_semantics<parallel>], iteration_bounds = array<i64: 1>, scalar_prefetch = 0 : i64, scratch_operands = 0 : i64, tpu.core_type = #tpu.core_type<tc>, window_params = [{transform_indices = @transform_0, window_bounds = array<i64: 1, 64, 32>}, {transform_indices = @transform_1, window_bounds = array<i64: 1, 48, 32>}, {pipeline_mode = #tpu.pipeline_mode<synchronous>, transform_indices = @transform_2, window_bounds = array<i64: 32, 512>}, {pipeline_mode = #tpu.pipeline_mode<synchronous>, transform_indices = @transform_3, window_bounds = array<i64: 32, 384>}, {pipeline_mode = #tpu.pipeline_mode<synchronous>, transform_indices = @transform_4, window_bounds = array<i64: 256, 896>}, {pipeline_mode = #tpu.pipeline_mode<synchronous>, transform_indices = @transform_5, window_bounds = array<i64: 1, 512>}, {pipeline_mode = #tpu.pipeline_mode<synchronous>, transform_indices = @transform_6, window_bounds = array<i64: 1, 384>}, {pipeline_mode = #tpu.pipeline_mode<synchronous>, transform_indices = @transform_7, window_bounds = array<i64: 1, 384>}, {pipeline_mode = #tpu.pipeline_mode<synchronous>, transform_indices = @transform_8, window_bounds = array<i64: 256, 128>}, {pipeline_mode = #tpu.pipeline_mode<synchronous>, transform_indices = @transform_9, window_bounds = array<i64: 1, 128>}, {pipeline_mode = #tpu.pipeline_mode<synchronous>, transform_indices = @transform_10, window_bounds = array<i64: 128, 128>}, {transform_indices = @transform_11, window_bounds = array<i64: 1>}, {transform_indices = @transform_12, window_bounds = array<i64: 4, 128>}]} {
    %c0 = arith.constant 0 : index
    %c0_0 = arith.constant 0 : index
    %c0_1 = arith.constant 0 : index
    %0 = vector.load %arg1[%c0, %c0_0, %c0_1] : memref<1x64x32xbf16, #tpu.memory_space<vmem>>, vector<1x64x32xbf16>
    %1 = vector.shape_cast %0 : vector<1x64x32xbf16> to vector<64x32xbf16>
    %c0_2 = arith.constant 0 : index
    %c0_3 = arith.constant 0 : index
    %c0_4 = arith.constant 0 : index
    %2 = vector.load %arg2[%c0_2, %c0_3, %c0_4] : memref<1x48x32xbf16, #tpu.memory_space<vmem>>, vector<1x48x32xbf16>
    %3 = vector.shape_cast %2 : vector<1x48x32xbf16> to vector<48x32xbf16>
    %c0_5 = arith.constant 0 : index
    %c0_6 = arith.constant 0 : index
    %4 = vector.load %arg3[%c0_5, %c0_6] : memref<32x512xbf16, #tpu.memory_space<vmem>>, vector<32x512xbf16>
    %cst = arith.constant dense<0.000000e+00> : vector<64x512xf32>
    %5 = tpu.matmul %1, %4, %cst {dimension_numbers = #tpu.dot_dimension_numbers<[1], [0], [0], [1], [0, 0, 1, 1], [], []>} : vector<64x32xbf16>, vector<32x512xbf16>, vector<64x512xf32> -> vector<64x512xf32>
    %c0_7 = arith.constant 0 : index
    %c0_8 = arith.constant 0 : index
    %6 = vector.load %arg6[%c0_7, %c0_8] : memref<1x512xf32, #tpu.memory_space<vmem>>, vector<1x512xf32>
    %7 = vector.broadcast %6 : vector<1x512xf32> to vector<64x512xf32>
    %8 = arith.addf %5, %7 : vector<64x512xf32>
    %c0_9 = arith.constant 0 : index
    %c0_10 = arith.constant 0 : index
    %9 = vector.load %arg4[%c0_9, %c0_10] : memref<32x384xbf16, #tpu.memory_space<vmem>>, vector<32x384xbf16>
    %cst_11 = arith.constant dense<0.000000e+00> : vector<48x384xf32>
    %10 = tpu.matmul %3, %9, %cst_11 {dimension_numbers = #tpu.dot_dimension_numbers<[1], [0], [0], [1], [0, 0, 1, 1], [], []>} : vector<48x32xbf16>, vector<32x384xbf16>, vector<48x384xf32> -> vector<48x384xf32>
    %c0_12 = arith.constant 0 : index
    %c0_13 = arith.constant 0 : index
    %11 = vector.load %arg7[%c0_12, %c0_13] : memref<1x384xf32, #tpu.memory_space<vmem>>, vector<1x384xf32>
    %12 = vector.broadcast %11 : vector<1x384xf32> to vector<48x384xf32>
    %13 = arith.addf %10, %12 : vector<48x384xf32>
    %c0_14 = arith.constant 0 : index
    %c0_15 = arith.constant 0 : index
    %14 = vector.load %arg5[%c0_14, %c0_15] : memref<256x896xbf16, #tpu.memory_space<vmem>>, vector<256x896xbf16>
    %c0_16 = arith.constant 0 : index
    %c0_17 = arith.constant 0 : index
    %15 = vector.load %arg8[%c0_16, %c0_17] : memref<1x384xf32, #tpu.memory_space<vmem>>, vector<1x384xf32>
    %16 = vector.shape_cast %15 : vector<1x384xf32> to vector<1x384xf32>
    %17 = vector.broadcast %16 : vector<1x384xf32> to vector<8x384xf32>
    %cst_18 = arith.constant 0.000000e+00 : f32
    %18 = vector.broadcast %cst_18 : f32 to vector<8x128xf32>
    %cst_19 = arith.constant 0.000000e+00 : f32
    %19 = vector.broadcast %cst_19 : f32 to vector<8x128xf32>
    %cst_20 = arith.constant 0.000000e+00 : f32
    %20 = vector.broadcast %cst_20 : f32 to vector<8x128xf32>
    %21 = tpu.concatenate %18, %20 in 1 : vector<8x128xf32>, vector<8x128xf32> -> vector<8x256xf32>
    %22 = arith.truncf %21 : vector<8x256xf32> to vector<8x256xbf16>
    %cst_21 = arith.constant dense<0.000000e+00> : vector<8x896xf32>
    %23 = tpu.matmul %22, %14, %cst_21 {dimension_numbers = #tpu.dot_dimension_numbers<[1], [0], [0], [1], [0, 0, 1, 1], [], []>} : vector<8x256xbf16>, vector<256x896xbf16>, vector<8x896xf32> -> vector<8x896xf32>
    %24 = vector.extract_strided_slice %8 {offsets = [0, 0], sizes = [8, 512], strides = [1, 1]} : vector<64x512xf32> to vector<8x512xf32>
    %25 = vector.extract_strided_slice %23 {offsets = [0, 0], sizes = [8, 512], strides = [1, 1]} : vector<8x896xf32> to vector<8x512xf32>
    %26 = arith.addf %24, %25 : vector<8x512xf32>
    %27 = vector.extract_strided_slice %26 {offsets = [0, 0], sizes = [8, 128], strides = [1, 1]} : vector<8x512xf32> to vector<8x128xf32>
    %28 = arith.negf %27 : vector<8x128xf32>
    %29 = math.exp %28 : vector<8x128xf32>
    %cst_22 = arith.constant 1.000000e+00 : f32
    %30 = vector.broadcast %cst_22 : f32 to vector<8x128xf32>
    %31 = arith.addf %30, %29 : vector<8x128xf32>
    %32 = arith.divf %30, %31 : vector<8x128xf32>
    %33 = vector.extract_strided_slice %26 {offsets = [0, 128], sizes = [8, 128], strides = [1, 1]} : vector<8x512xf32> to vector<8x128xf32>
    %34 = arith.negf %33 : vector<8x128xf32>
    %35 = math.exp %34 : vector<8x128xf32>
    %cst_23 = arith.constant 1.000000e+00 : f32
    %36 = vector.broadcast %cst_23 : f32 to vector<8x128xf32>
    %37 = arith.addf %36, %35 : vector<8x128xf32>
    %38 = arith.divf %36, %37 : vector<8x128xf32>
    %39 = vector.extract_strided_slice %26 {offsets = [0, 256], sizes = [8, 128], strides = [1, 1]} : vector<8x512xf32> to vector<8x128xf32>
    %40 = math.tanh %39 : vector<8x128xf32>
    %41 = vector.extract_strided_slice %26 {offsets = [0, 384], sizes = [8, 128], strides = [1, 1]} : vector<8x512xf32> to vector<8x128xf32>
    %42 = arith.negf %41 : vector<8x128xf32>
    %43 = math.exp %42 : vector<8x128xf32>
    %cst_24 = arith.constant 1.000000e+00 : f32
    %44 = vector.broadcast %cst_24 : f32 to vector<8x128xf32>
    %45 = arith.addf %44, %43 : vector<8x128xf32>
    %46 = arith.divf %44, %45 : vector<8x128xf32>
    %47 = arith.mulf %38, %19 : vector<8x128xf32>
    %48 = arith.mulf %32, %40 : vector<8x128xf32>
    %49 = arith.addf %47, %48 : vector<8x128xf32>
    %50 = math.tanh %49 : vector<8x128xf32>
    %51 = arith.mulf %46, %50 : vector<8x128xf32>
    %52 = vector.extract_strided_slice %13 {offsets = [0, 0], sizes = [8, 384], strides = [1, 1]} : vector<48x384xf32> to vector<8x384xf32>
    %53 = vector.extract_strided_slice %23 {offsets = [0, 512], sizes = [8, 384], strides = [1, 1]} : vector<8x896xf32> to vector<8x384xf32>
    %54 = arith.addf %53, %17 : vector<8x384xf32>
    %55 = vector.extract_strided_slice %52 {offsets = [0, 0], sizes = [8, 128], strides = [1, 1]} : vector<8x384xf32> to vector<8x128xf32>
    %56 = vector.extract_strided_slice %54 {offsets = [0, 0], sizes = [8, 128], strides = [1, 1]} : vector<8x384xf32> to vector<8x128xf32>
    %57 = arith.addf %55, %56 : vector<8x128xf32>
    %58 = arith.negf %57 : vector<8x128xf32>
    %59 = math.exp %58 : vector<8x128xf32>
    %cst_25 = arith.constant 1.000000e+00 : f32
    %60 = vector.broadcast %cst_25 : f32 to vector<8x128xf32>
    %61 = arith.addf %60, %59 : vector<8x128xf32>
    %62 = arith.divf %60, %61 : vector<8x128xf32>
    %63 = vector.extract_strided_slice %52 {offsets = [0, 128], sizes = [8, 128], strides = [1, 1]} : vector<8x384xf32> to vector<8x128xf32>
    %64 = vector.extract_strided_slice %54 {offsets = [0, 128], sizes = [8, 128], strides = [1, 1]} : vector<8x384xf32> to vector<8x128xf32>
    %65 = arith.addf %63, %64 : vector<8x128xf32>
    %66 = arith.negf %65 : vector<8x128xf32>
    %67 = math.exp %66 : vector<8x128xf32>
    %cst_26 = arith.constant 1.000000e+00 : f32
    %68 = vector.broadcast %cst_26 : f32 to vector<8x128xf32>
    %69 = arith.addf %68, %67 : vector<8x128xf32>
    %70 = arith.divf %68, %69 : vector<8x128xf32>
    %71 = vector.extract_strided_slice %52 {offsets = [0, 256], sizes = [8, 128], strides = [1, 1]} : vector<8x384xf32> to vector<8x128xf32>
    %72 = vector.extract_strided_slice %54 {offsets = [0, 256], sizes = [8, 128], strides = [1, 1]} : vector<8x384xf32> to vector<8x128xf32>
    %73 = arith.mulf %62, %72 : vector<8x128xf32>
    %74 = arith.addf %71, %73 : vector<8x128xf32>
    %75 = math.tanh %74 : vector<8x128xf32>
    %cst_27 = arith.constant 1.000000e+00 : f32
    %76 = vector.broadcast %cst_27 : f32 to vector<8x128xf32>
    %77 = arith.subf %76, %70 : vector<8x128xf32>
    %78 = arith.mulf %77, %75 : vector<8x128xf32>
    %79 = arith.mulf %70, %20 : vector<8x128xf32>
    %80 = arith.addf %78, %79 : vector<8x128xf32>
    %81 = tpu.concatenate %51, %80 in 1 : vector<8x128xf32>, vector<8x128xf32> -> vector<8x256xf32>
    %82 = arith.truncf %81 : vector<8x256xf32> to vector<8x256xbf16>
    %cst_28 = arith.constant dense<0.000000e+00> : vector<8x896xf32>
    %83 = tpu.matmul %82, %14, %cst_28 {dimension_numbers = #tpu.dot_dimension_numbers<[1], [0], [0], [1], [0, 0, 1, 1], [], []>} : vector<8x256xbf16>, vector<256x896xbf16>, vector<8x896xf32> -> vector<8x896xf32>
    %84 = vector.extract_strided_slice %8 {offsets = [8, 0], sizes = [8, 512], strides = [1, 1]} : vector<64x512xf32> to vector<8x512xf32>
    %85 = vector.extract_strided_slice %83 {offsets = [0, 0], sizes = [8, 512], strides = [1, 1]} : vector<8x896xf32> to vector<8x512xf32>
    %86 = arith.addf %84, %85 : vector<8x512xf32>
    %87 = vector.extract_strided_slice %86 {offsets = [0, 0], sizes = [8, 128], strides = [1, 1]} : vector<8x512xf32> to vector<8x128xf32>
    %88 = arith.negf %87 : vector<8x128xf32>
    %89 = math.exp %88 : vector<8x128xf32>
    %cst_29 = arith.constant 1.000000e+00 : f32
    %90 = vector.broadcast %cst_29 : f32 to vector<8x128xf32>
    %91 = arith.addf %90, %89 : vector<8x128xf32>
    %92 = arith.divf %90, %91 : vector<8x128xf32>
    %93 = vector.extract_strided_slice %86 {offsets = [0, 128], sizes = [8, 128], strides = [1, 1]} : vector<8x512xf32> to vector<8x128xf32>
    %94 = arith.negf %93 : vector<8x128xf32>
    %95 = math.exp %94 : vector<8x128xf32>
    %cst_30 = arith.constant 1.000000e+00 : f32
    %96 = vector.broadcast %cst_30 : f32 to vector<8x128xf32>
    %97 = arith.addf %96, %95 : vector<8x128xf32>
    %98 = arith.divf %96, %97 : vector<8x128xf32>
    %99 = vector.extract_strided_slice %86 {offsets = [0, 256], sizes = [8, 128], strides = [1, 1]} : vector<8x512xf32> to vector<8x128xf32>
    %100 = math.tanh %99 : vector<8x128xf32>
    %101 = vector.extract_strided_slice %86 {offsets = [0, 384], sizes = [8, 128], strides = [1, 1]} : vector<8x512xf32> to vector<8x128xf32>
    %102 = arith.negf %101 : vector<8x128xf32>
    %103 = math.exp %102 : vector<8x128xf32>
    %cst_31 = arith.constant 1.000000e+00 : f32
    %104 = vector.broadcast %cst_31 : f32 to vector<8x128xf32>
    %105 = arith.addf %104, %103 : vector<8x128xf32>
    %106 = arith.divf %104, %105 : vector<8x128xf32>
    %107 = arith.mulf %98, %49 : vector<8x128xf32>
    %108 = arith.mulf %92, %100 : vector<8x128xf32>
    %109 = arith.addf %107, %108 : vector<8x128xf32>
    %110 = math.tanh %109 : vector<8x128xf32>
    %111 = arith.mulf %106, %110 : vector<8x128xf32>
    %112 = vector.extract_strided_slice %13 {offsets = [8, 0], sizes = [8, 384], strides = [1, 1]} : vector<48x384xf32> to vector<8x384xf32>
    %113 = vector.extract_strided_slice %83 {offsets = [0, 512], sizes = [8, 384], strides = [1, 1]} : vector<8x896xf32> to vector<8x384xf32>
    %114 = arith.addf %113, %17 : vector<8x384xf32>
    %115 = vector.extract_strided_slice %112 {offsets = [0, 0], sizes = [8, 128], strides = [1, 1]} : vector<8x384xf32> to vector<8x128xf32>
    %116 = vector.extract_strided_slice %114 {offsets = [0, 0], sizes = [8, 128], strides = [1, 1]} : vector<8x384xf32> to vector<8x128xf32>
    %117 = arith.addf %115, %116 : vector<8x128xf32>
    %118 = arith.negf %117 : vector<8x128xf32>
    %119 = math.exp %118 : vector<8x128xf32>
    %cst_32 = arith.constant 1.000000e+00 : f32
    %120 = vector.broadcast %cst_32 : f32 to vector<8x128xf32>
    %121 = arith.addf %120, %119 : vector<8x128xf32>
    %122 = arith.divf %120, %121 : vector<8x128xf32>
    %123 = vector.extract_strided_slice %112 {offsets = [0, 128], sizes = [8, 128], strides = [1, 1]} : vector<8x384xf32> to vector<8x128xf32>
    %124 = vector.extract_strided_slice %114 {offsets = [0, 128], sizes = [8, 128], strides = [1, 1]} : vector<8x384xf32> to vector<8x128xf32>
    %125 = arith.addf %123, %124 : vector<8x128xf32>
    %126 = arith.negf %125 : vector<8x128xf32>
    %127 = math.exp %126 : vector<8x128xf32>
    %cst_33 = arith.constant 1.000000e+00 : f32
    %128 = vector.broadcast %cst_33 : f32 to vector<8x128xf32>
    %129 = arith.addf %128, %127 : vector<8x128xf32>
    %130 = arith.divf %128, %129 : vector<8x128xf32>
    %131 = vector.extract_strided_slice %112 {offsets = [0, 256], sizes = [8, 128], strides = [1, 1]} : vector<8x384xf32> to vector<8x128xf32>
    %132 = vector.extract_strided_slice %114 {offsets = [0, 256], sizes = [8, 128], strides = [1, 1]} : vector<8x384xf32> to vector<8x128xf32>
    %133 = arith.mulf %122, %132 : vector<8x128xf32>
    %134 = arith.addf %131, %133 : vector<8x128xf32>
    %135 = math.tanh %134 : vector<8x128xf32>
    %cst_34 = arith.constant 1.000000e+00 : f32
    %136 = vector.broadcast %cst_34 : f32 to vector<8x128xf32>
    %137 = arith.subf %136, %130 : vector<8x128xf32>
    %138 = arith.mulf %137, %135 : vector<8x128xf32>
    %139 = arith.mulf %130, %80 : vector<8x128xf32>
    %140 = arith.addf %138, %139 : vector<8x128xf32>
    %141 = tpu.concatenate %111, %140 in 1 : vector<8x128xf32>, vector<8x128xf32> -> vector<8x256xf32>
    %142 = arith.truncf %141 : vector<8x256xf32> to vector<8x256xbf16>
    %cst_35 = arith.constant dense<0.000000e+00> : vector<8x896xf32>
    %143 = tpu.matmul %142, %14, %cst_35 {dimension_numbers = #tpu.dot_dimension_numbers<[1], [0], [0], [1], [0, 0, 1, 1], [], []>} : vector<8x256xbf16>, vector<256x896xbf16>, vector<8x896xf32> -> vector<8x896xf32>
    %144 = vector.extract_strided_slice %8 {offsets = [16, 0], sizes = [8, 512], strides = [1, 1]} : vector<64x512xf32> to vector<8x512xf32>
    %145 = vector.extract_strided_slice %143 {offsets = [0, 0], sizes = [8, 512], strides = [1, 1]} : vector<8x896xf32> to vector<8x512xf32>
    %146 = arith.addf %144, %145 : vector<8x512xf32>
    %147 = vector.extract_strided_slice %146 {offsets = [0, 0], sizes = [8, 128], strides = [1, 1]} : vector<8x512xf32> to vector<8x128xf32>
    %148 = arith.negf %147 : vector<8x128xf32>
    %149 = math.exp %148 : vector<8x128xf32>
    %cst_36 = arith.constant 1.000000e+00 : f32
    %150 = vector.broadcast %cst_36 : f32 to vector<8x128xf32>
    %151 = arith.addf %150, %149 : vector<8x128xf32>
    %152 = arith.divf %150, %151 : vector<8x128xf32>
    %153 = vector.extract_strided_slice %146 {offsets = [0, 128], sizes = [8, 128], strides = [1, 1]} : vector<8x512xf32> to vector<8x128xf32>
    %154 = arith.negf %153 : vector<8x128xf32>
    %155 = math.exp %154 : vector<8x128xf32>
    %cst_37 = arith.constant 1.000000e+00 : f32
    %156 = vector.broadcast %cst_37 : f32 to vector<8x128xf32>
    %157 = arith.addf %156, %155 : vector<8x128xf32>
    %158 = arith.divf %156, %157 : vector<8x128xf32>
    %159 = vector.extract_strided_slice %146 {offsets = [0, 256], sizes = [8, 128], strides = [1, 1]} : vector<8x512xf32> to vector<8x128xf32>
    %160 = math.tanh %159 : vector<8x128xf32>
    %161 = vector.extract_strided_slice %146 {offsets = [0, 384], sizes = [8, 128], strides = [1, 1]} : vector<8x512xf32> to vector<8x128xf32>
    %162 = arith.negf %161 : vector<8x128xf32>
    %163 = math.exp %162 : vector<8x128xf32>
    %cst_38 = arith.constant 1.000000e+00 : f32
    %164 = vector.broadcast %cst_38 : f32 to vector<8x128xf32>
    %165 = arith.addf %164, %163 : vector<8x128xf32>
    %166 = arith.divf %164, %165 : vector<8x128xf32>
    %167 = arith.mulf %158, %109 : vector<8x128xf32>
    %168 = arith.mulf %152, %160 : vector<8x128xf32>
    %169 = arith.addf %167, %168 : vector<8x128xf32>
    %170 = math.tanh %169 : vector<8x128xf32>
    %171 = arith.mulf %166, %170 : vector<8x128xf32>
    %172 = vector.extract_strided_slice %13 {offsets = [16, 0], sizes = [8, 384], strides = [1, 1]} : vector<48x384xf32> to vector<8x384xf32>
    %173 = vector.extract_strided_slice %143 {offsets = [0, 512], sizes = [8, 384], strides = [1, 1]} : vector<8x896xf32> to vector<8x384xf32>
    %174 = arith.addf %173, %17 : vector<8x384xf32>
    %175 = vector.extract_strided_slice %172 {offsets = [0, 0], sizes = [8, 128], strides = [1, 1]} : vector<8x384xf32> to vector<8x128xf32>
    %176 = vector.extract_strided_slice %174 {offsets = [0, 0], sizes = [8, 128], strides = [1, 1]} : vector<8x384xf32> to vector<8x128xf32>
    %177 = arith.addf %175, %176 : vector<8x128xf32>
    %178 = arith.negf %177 : vector<8x128xf32>
    %179 = math.exp %178 : vector<8x128xf32>
    %cst_39 = arith.constant 1.000000e+00 : f32
    %180 = vector.broadcast %cst_39 : f32 to vector<8x128xf32>
    %181 = arith.addf %180, %179 : vector<8x128xf32>
    %182 = arith.divf %180, %181 : vector<8x128xf32>
    %183 = vector.extract_strided_slice %172 {offsets = [0, 128], sizes = [8, 128], strides = [1, 1]} : vector<8x384xf32> to vector<8x128xf32>
    %184 = vector.extract_strided_slice %174 {offsets = [0, 128], sizes = [8, 128], strides = [1, 1]} : vector<8x384xf32> to vector<8x128xf32>
    %185 = arith.addf %183, %184 : vector<8x128xf32>
    %186 = arith.negf %185 : vector<8x128xf32>
    %187 = math.exp %186 : vector<8x128xf32>
    %cst_40 = arith.constant 1.000000e+00 : f32
    %188 = vector.broadcast %cst_40 : f32 to vector<8x128xf32>
    %189 = arith.addf %188, %187 : vector<8x128xf32>
    %190 = arith.divf %188, %189 : vector<8x128xf32>
    %191 = vector.extract_strided_slice %172 {offsets = [0, 256], sizes = [8, 128], strides = [1, 1]} : vector<8x384xf32> to vector<8x128xf32>
    %192 = vector.extract_strided_slice %174 {offsets = [0, 256], sizes = [8, 128], strides = [1, 1]} : vector<8x384xf32> to vector<8x128xf32>
    %193 = arith.mulf %182, %192 : vector<8x128xf32>
    %194 = arith.addf %191, %193 : vector<8x128xf32>
    %195 = math.tanh %194 : vector<8x128xf32>
    %cst_41 = arith.constant 1.000000e+00 : f32
    %196 = vector.broadcast %cst_41 : f32 to vector<8x128xf32>
    %197 = arith.subf %196, %190 : vector<8x128xf32>
    %198 = arith.mulf %197, %195 : vector<8x128xf32>
    %199 = arith.mulf %190, %140 : vector<8x128xf32>
    %200 = arith.addf %198, %199 : vector<8x128xf32>
    %201 = tpu.concatenate %171, %200 in 1 : vector<8x128xf32>, vector<8x128xf32> -> vector<8x256xf32>
    %202 = arith.truncf %201 : vector<8x256xf32> to vector<8x256xbf16>
    %cst_42 = arith.constant dense<0.000000e+00> : vector<8x896xf32>
    %203 = tpu.matmul %202, %14, %cst_42 {dimension_numbers = #tpu.dot_dimension_numbers<[1], [0], [0], [1], [0, 0, 1, 1], [], []>} : vector<8x256xbf16>, vector<256x896xbf16>, vector<8x896xf32> -> vector<8x896xf32>
    %204 = vector.extract_strided_slice %8 {offsets = [24, 0], sizes = [8, 512], strides = [1, 1]} : vector<64x512xf32> to vector<8x512xf32>
    %205 = vector.extract_strided_slice %203 {offsets = [0, 0], sizes = [8, 512], strides = [1, 1]} : vector<8x896xf32> to vector<8x512xf32>
    %206 = arith.addf %204, %205 : vector<8x512xf32>
    %207 = vector.extract_strided_slice %206 {offsets = [0, 0], sizes = [8, 128], strides = [1, 1]} : vector<8x512xf32> to vector<8x128xf32>
    %208 = arith.negf %207 : vector<8x128xf32>
    %209 = math.exp %208 : vector<8x128xf32>
    %cst_43 = arith.constant 1.000000e+00 : f32
    %210 = vector.broadcast %cst_43 : f32 to vector<8x128xf32>
    %211 = arith.addf %210, %209 : vector<8x128xf32>
    %212 = arith.divf %210, %211 : vector<8x128xf32>
    %213 = vector.extract_strided_slice %206 {offsets = [0, 128], sizes = [8, 128], strides = [1, 1]} : vector<8x512xf32> to vector<8x128xf32>
    %214 = arith.negf %213 : vector<8x128xf32>
    %215 = math.exp %214 : vector<8x128xf32>
    %cst_44 = arith.constant 1.000000e+00 : f32
    %216 = vector.broadcast %cst_44 : f32 to vector<8x128xf32>
    %217 = arith.addf %216, %215 : vector<8x128xf32>
    %218 = arith.divf %216, %217 : vector<8x128xf32>
    %219 = vector.extract_strided_slice %206 {offsets = [0, 256], sizes = [8, 128], strides = [1, 1]} : vector<8x512xf32> to vector<8x128xf32>
    %220 = math.tanh %219 : vector<8x128xf32>
    %221 = vector.extract_strided_slice %206 {offsets = [0, 384], sizes = [8, 128], strides = [1, 1]} : vector<8x512xf32> to vector<8x128xf32>
    %222 = arith.negf %221 : vector<8x128xf32>
    %223 = math.exp %222 : vector<8x128xf32>
    %cst_45 = arith.constant 1.000000e+00 : f32
    %224 = vector.broadcast %cst_45 : f32 to vector<8x128xf32>
    %225 = arith.addf %224, %223 : vector<8x128xf32>
    %226 = arith.divf %224, %225 : vector<8x128xf32>
    %227 = arith.mulf %218, %169 : vector<8x128xf32>
    %228 = arith.mulf %212, %220 : vector<8x128xf32>
    %229 = arith.addf %227, %228 : vector<8x128xf32>
    %230 = math.tanh %229 : vector<8x128xf32>
    %231 = arith.mulf %226, %230 : vector<8x128xf32>
    %232 = vector.extract_strided_slice %13 {offsets = [24, 0], sizes = [8, 384], strides = [1, 1]} : vector<48x384xf32> to vector<8x384xf32>
    %233 = vector.extract_strided_slice %203 {offsets = [0, 512], sizes = [8, 384], strides = [1, 1]} : vector<8x896xf32> to vector<8x384xf32>
    %234 = arith.addf %233, %17 : vector<8x384xf32>
    %235 = vector.extract_strided_slice %232 {offsets = [0, 0], sizes = [8, 128], strides = [1, 1]} : vector<8x384xf32> to vector<8x128xf32>
    %236 = vector.extract_strided_slice %234 {offsets = [0, 0], sizes = [8, 128], strides = [1, 1]} : vector<8x384xf32> to vector<8x128xf32>
    %237 = arith.addf %235, %236 : vector<8x128xf32>
    %238 = arith.negf %237 : vector<8x128xf32>
    %239 = math.exp %238 : vector<8x128xf32>
    %cst_46 = arith.constant 1.000000e+00 : f32
    %240 = vector.broadcast %cst_46 : f32 to vector<8x128xf32>
    %241 = arith.addf %240, %239 : vector<8x128xf32>
    %242 = arith.divf %240, %241 : vector<8x128xf32>
    %243 = vector.extract_strided_slice %232 {offsets = [0, 128], sizes = [8, 128], strides = [1, 1]} : vector<8x384xf32> to vector<8x128xf32>
    %244 = vector.extract_strided_slice %234 {offsets = [0, 128], sizes = [8, 128], strides = [1, 1]} : vector<8x384xf32> to vector<8x128xf32>
    %245 = arith.addf %243, %244 : vector<8x128xf32>
    %246 = arith.negf %245 : vector<8x128xf32>
    %247 = math.exp %246 : vector<8x128xf32>
    %cst_47 = arith.constant 1.000000e+00 : f32
    %248 = vector.broadcast %cst_47 : f32 to vector<8x128xf32>
    %249 = arith.addf %248, %247 : vector<8x128xf32>
    %250 = arith.divf %248, %249 : vector<8x128xf32>
    %251 = vector.extract_strided_slice %232 {offsets = [0, 256], sizes = [8, 128], strides = [1, 1]} : vector<8x384xf32> to vector<8x128xf32>
    %252 = vector.extract_strided_slice %234 {offsets = [0, 256], sizes = [8, 128], strides = [1, 1]} : vector<8x384xf32> to vector<8x128xf32>
    %253 = arith.mulf %242, %252 : vector<8x128xf32>
    %254 = arith.addf %251, %253 : vector<8x128xf32>
    %255 = math.tanh %254 : vector<8x128xf32>
    %cst_48 = arith.constant 1.000000e+00 : f32
    %256 = vector.broadcast %cst_48 : f32 to vector<8x128xf32>
    %257 = arith.subf %256, %250 : vector<8x128xf32>
    %258 = arith.mulf %257, %255 : vector<8x128xf32>
    %259 = arith.mulf %250, %200 : vector<8x128xf32>
    %260 = arith.addf %258, %259 : vector<8x128xf32>
    %261 = tpu.concatenate %231, %260 in 1 : vector<8x128xf32>, vector<8x128xf32> -> vector<8x256xf32>
    %262 = arith.truncf %261 : vector<8x256xf32> to vector<8x256xbf16>
    %cst_49 = arith.constant dense<0.000000e+00> : vector<8x896xf32>
    %263 = tpu.matmul %262, %14, %cst_49 {dimension_numbers = #tpu.dot_dimension_numbers<[1], [0], [0], [1], [0, 0, 1, 1], [], []>} : vector<8x256xbf16>, vector<256x896xbf16>, vector<8x896xf32> -> vector<8x896xf32>
    %264 = vector.extract_strided_slice %8 {offsets = [32, 0], sizes = [8, 512], strides = [1, 1]} : vector<64x512xf32> to vector<8x512xf32>
    %265 = vector.extract_strided_slice %263 {offsets = [0, 0], sizes = [8, 512], strides = [1, 1]} : vector<8x896xf32> to vector<8x512xf32>
    %266 = arith.addf %264, %265 : vector<8x512xf32>
    %267 = vector.extract_strided_slice %266 {offsets = [0, 0], sizes = [8, 128], strides = [1, 1]} : vector<8x512xf32> to vector<8x128xf32>
    %268 = arith.negf %267 : vector<8x128xf32>
    %269 = math.exp %268 : vector<8x128xf32>
    %cst_50 = arith.constant 1.000000e+00 : f32
    %270 = vector.broadcast %cst_50 : f32 to vector<8x128xf32>
    %271 = arith.addf %270, %269 : vector<8x128xf32>
    %272 = arith.divf %270, %271 : vector<8x128xf32>
    %273 = vector.extract_strided_slice %266 {offsets = [0, 128], sizes = [8, 128], strides = [1, 1]} : vector<8x512xf32> to vector<8x128xf32>
    %274 = arith.negf %273 : vector<8x128xf32>
    %275 = math.exp %274 : vector<8x128xf32>
    %cst_51 = arith.constant 1.000000e+00 : f32
    %276 = vector.broadcast %cst_51 : f32 to vector<8x128xf32>
    %277 = arith.addf %276, %275 : vector<8x128xf32>
    %278 = arith.divf %276, %277 : vector<8x128xf32>
    %279 = vector.extract_strided_slice %266 {offsets = [0, 256], sizes = [8, 128], strides = [1, 1]} : vector<8x512xf32> to vector<8x128xf32>
    %280 = math.tanh %279 : vector<8x128xf32>
    %281 = vector.extract_strided_slice %266 {offsets = [0, 384], sizes = [8, 128], strides = [1, 1]} : vector<8x512xf32> to vector<8x128xf32>
    %282 = arith.negf %281 : vector<8x128xf32>
    %283 = math.exp %282 : vector<8x128xf32>
    %cst_52 = arith.constant 1.000000e+00 : f32
    %284 = vector.broadcast %cst_52 : f32 to vector<8x128xf32>
    %285 = arith.addf %284, %283 : vector<8x128xf32>
    %286 = arith.divf %284, %285 : vector<8x128xf32>
    %287 = arith.mulf %278, %229 : vector<8x128xf32>
    %288 = arith.mulf %272, %280 : vector<8x128xf32>
    %289 = arith.addf %287, %288 : vector<8x128xf32>
    %290 = math.tanh %289 : vector<8x128xf32>
    %291 = arith.mulf %286, %290 : vector<8x128xf32>
    %292 = vector.extract_strided_slice %13 {offsets = [32, 0], sizes = [8, 384], strides = [1, 1]} : vector<48x384xf32> to vector<8x384xf32>
    %293 = vector.extract_strided_slice %263 {offsets = [0, 512], sizes = [8, 384], strides = [1, 1]} : vector<8x896xf32> to vector<8x384xf32>
    %294 = arith.addf %293, %17 : vector<8x384xf32>
    %295 = vector.extract_strided_slice %292 {offsets = [0, 0], sizes = [8, 128], strides = [1, 1]} : vector<8x384xf32> to vector<8x128xf32>
    %296 = vector.extract_strided_slice %294 {offsets = [0, 0], sizes = [8, 128], strides = [1, 1]} : vector<8x384xf32> to vector<8x128xf32>
    %297 = arith.addf %295, %296 : vector<8x128xf32>
    %298 = arith.negf %297 : vector<8x128xf32>
    %299 = math.exp %298 : vector<8x128xf32>
    %cst_53 = arith.constant 1.000000e+00 : f32
    %300 = vector.broadcast %cst_53 : f32 to vector<8x128xf32>
    %301 = arith.addf %300, %299 : vector<8x128xf32>
    %302 = arith.divf %300, %301 : vector<8x128xf32>
    %303 = vector.extract_strided_slice %292 {offsets = [0, 128], sizes = [8, 128], strides = [1, 1]} : vector<8x384xf32> to vector<8x128xf32>
    %304 = vector.extract_strided_slice %294 {offsets = [0, 128], sizes = [8, 128], strides = [1, 1]} : vector<8x384xf32> to vector<8x128xf32>
    %305 = arith.addf %303, %304 : vector<8x128xf32>
    %306 = arith.negf %305 : vector<8x128xf32>
    %307 = math.exp %306 : vector<8x128xf32>
    %cst_54 = arith.constant 1.000000e+00 : f32
    %308 = vector.broadcast %cst_54 : f32 to vector<8x128xf32>
    %309 = arith.addf %308, %307 : vector<8x128xf32>
    %310 = arith.divf %308, %309 : vector<8x128xf32>
    %311 = vector.extract_strided_slice %292 {offsets = [0, 256], sizes = [8, 128], strides = [1, 1]} : vector<8x384xf32> to vector<8x128xf32>
    %312 = vector.extract_strided_slice %294 {offsets = [0, 256], sizes = [8, 128], strides = [1, 1]} : vector<8x384xf32> to vector<8x128xf32>
    %313 = arith.mulf %302, %312 : vector<8x128xf32>
    %314 = arith.addf %311, %313 : vector<8x128xf32>
    %315 = math.tanh %314 : vector<8x128xf32>
    %cst_55 = arith.constant 1.000000e+00 : f32
    %316 = vector.broadcast %cst_55 : f32 to vector<8x128xf32>
    %317 = arith.subf %316, %310 : vector<8x128xf32>
    %318 = arith.mulf %317, %315 : vector<8x128xf32>
    %319 = arith.mulf %310, %260 : vector<8x128xf32>
    %320 = arith.addf %318, %319 : vector<8x128xf32>
    %321 = tpu.concatenate %291, %320 in 1 : vector<8x128xf32>, vector<8x128xf32> -> vector<8x256xf32>
    %322 = arith.truncf %321 : vector<8x256xf32> to vector<8x256xbf16>
    %cst_56 = arith.constant dense<0.000000e+00> : vector<8x896xf32>
    %323 = tpu.matmul %322, %14, %cst_56 {dimension_numbers = #tpu.dot_dimension_numbers<[1], [0], [0], [1], [0, 0, 1, 1], [], []>} : vector<8x256xbf16>, vector<256x896xbf16>, vector<8x896xf32> -> vector<8x896xf32>
    %324 = vector.extract_strided_slice %8 {offsets = [40, 0], sizes = [8, 512], strides = [1, 1]} : vector<64x512xf32> to vector<8x512xf32>
    %325 = vector.extract_strided_slice %323 {offsets = [0, 0], sizes = [8, 512], strides = [1, 1]} : vector<8x896xf32> to vector<8x512xf32>
    %326 = arith.addf %324, %325 : vector<8x512xf32>
    %327 = vector.extract_strided_slice %326 {offsets = [0, 0], sizes = [8, 128], strides = [1, 1]} : vector<8x512xf32> to vector<8x128xf32>
    %328 = arith.negf %327 : vector<8x128xf32>
    %329 = math.exp %328 : vector<8x128xf32>
    %cst_57 = arith.constant 1.000000e+00 : f32
    %330 = vector.broadcast %cst_57 : f32 to vector<8x128xf32>
    %331 = arith.addf %330, %329 : vector<8x128xf32>
    %332 = arith.divf %330, %331 : vector<8x128xf32>
    %333 = vector.extract_strided_slice %326 {offsets = [0, 128], sizes = [8, 128], strides = [1, 1]} : vector<8x512xf32> to vector<8x128xf32>
    %334 = arith.negf %333 : vector<8x128xf32>
    %335 = math.exp %334 : vector<8x128xf32>
    %cst_58 = arith.constant 1.000000e+00 : f32
    %336 = vector.broadcast %cst_58 : f32 to vector<8x128xf32>
    %337 = arith.addf %336, %335 : vector<8x128xf32>
    %338 = arith.divf %336, %337 : vector<8x128xf32>
    %339 = vector.extract_strided_slice %326 {offsets = [0, 256], sizes = [8, 128], strides = [1, 1]} : vector<8x512xf32> to vector<8x128xf32>
    %340 = math.tanh %339 : vector<8x128xf32>
    %341 = vector.extract_strided_slice %326 {offsets = [0, 384], sizes = [8, 128], strides = [1, 1]} : vector<8x512xf32> to vector<8x128xf32>
    %342 = arith.negf %341 : vector<8x128xf32>
    %343 = math.exp %342 : vector<8x128xf32>
    %cst_59 = arith.constant 1.000000e+00 : f32
    %344 = vector.broadcast %cst_59 : f32 to vector<8x128xf32>
    %345 = arith.addf %344, %343 : vector<8x128xf32>
    %346 = arith.divf %344, %345 : vector<8x128xf32>
    %347 = arith.mulf %338, %289 : vector<8x128xf32>
    %348 = arith.mulf %332, %340 : vector<8x128xf32>
    %349 = arith.addf %347, %348 : vector<8x128xf32>
    %350 = math.tanh %349 : vector<8x128xf32>
    %351 = arith.mulf %346, %350 : vector<8x128xf32>
    %352 = vector.extract_strided_slice %13 {offsets = [40, 0], sizes = [8, 384], strides = [1, 1]} : vector<48x384xf32> to vector<8x384xf32>
    %353 = vector.extract_strided_slice %323 {offsets = [0, 512], sizes = [8, 384], strides = [1, 1]} : vector<8x896xf32> to vector<8x384xf32>
    %354 = arith.addf %353, %17 : vector<8x384xf32>
    %355 = vector.extract_strided_slice %352 {offsets = [0, 0], sizes = [8, 128], strides = [1, 1]} : vector<8x384xf32> to vector<8x128xf32>
    %356 = vector.extract_strided_slice %354 {offsets = [0, 0], sizes = [8, 128], strides = [1, 1]} : vector<8x384xf32> to vector<8x128xf32>
    %357 = arith.addf %355, %356 : vector<8x128xf32>
    %358 = arith.negf %357 : vector<8x128xf32>
    %359 = math.exp %358 : vector<8x128xf32>
    %cst_60 = arith.constant 1.000000e+00 : f32
    %360 = vector.broadcast %cst_60 : f32 to vector<8x128xf32>
    %361 = arith.addf %360, %359 : vector<8x128xf32>
    %362 = arith.divf %360, %361 : vector<8x128xf32>
    %363 = vector.extract_strided_slice %352 {offsets = [0, 128], sizes = [8, 128], strides = [1, 1]} : vector<8x384xf32> to vector<8x128xf32>
    %364 = vector.extract_strided_slice %354 {offsets = [0, 128], sizes = [8, 128], strides = [1, 1]} : vector<8x384xf32> to vector<8x128xf32>
    %365 = arith.addf %363, %364 : vector<8x128xf32>
    %366 = arith.negf %365 : vector<8x128xf32>
    %367 = math.exp %366 : vector<8x128xf32>
    %cst_61 = arith.constant 1.000000e+00 : f32
    %368 = vector.broadcast %cst_61 : f32 to vector<8x128xf32>
    %369 = arith.addf %368, %367 : vector<8x128xf32>
    %370 = arith.divf %368, %369 : vector<8x128xf32>
    %371 = vector.extract_strided_slice %352 {offsets = [0, 256], sizes = [8, 128], strides = [1, 1]} : vector<8x384xf32> to vector<8x128xf32>
    %372 = vector.extract_strided_slice %354 {offsets = [0, 256], sizes = [8, 128], strides = [1, 1]} : vector<8x384xf32> to vector<8x128xf32>
    %373 = arith.mulf %362, %372 : vector<8x128xf32>
    %374 = arith.addf %371, %373 : vector<8x128xf32>
    %375 = math.tanh %374 : vector<8x128xf32>
    %cst_62 = arith.constant 1.000000e+00 : f32
    %376 = vector.broadcast %cst_62 : f32 to vector<8x128xf32>
    %377 = arith.subf %376, %370 : vector<8x128xf32>
    %378 = arith.mulf %377, %375 : vector<8x128xf32>
    %379 = arith.mulf %370, %320 : vector<8x128xf32>
    %380 = arith.addf %378, %379 : vector<8x128xf32>
    %381 = arith.truncf %351 : vector<8x128xf32> to vector<8x128xbf16>
    %c0_63 = arith.constant 0 : index
    %c0_64 = arith.constant 0 : index
    %382 = vector.load %arg5[%c0_63, %c0_64] : memref<256x896xbf16, #tpu.memory_space<vmem>>, vector<128x512xbf16>
    %cst_65 = arith.constant dense<0.000000e+00> : vector<8x512xf32>
    %383 = tpu.matmul %381, %382, %cst_65 {dimension_numbers = #tpu.dot_dimension_numbers<[1], [0], [0], [1], [0, 0, 1, 1], [], []>} : vector<8x128xbf16>, vector<128x512xbf16>, vector<8x512xf32> -> vector<8x512xf32>
    %384 = vector.extract_strided_slice %8 {offsets = [48, 0], sizes = [8, 512], strides = [1, 1]} : vector<64x512xf32> to vector<8x512xf32>
    %385 = arith.addf %384, %383 : vector<8x512xf32>
    %386 = vector.extract_strided_slice %385 {offsets = [0, 0], sizes = [8, 128], strides = [1, 1]} : vector<8x512xf32> to vector<8x128xf32>
    %387 = arith.negf %386 : vector<8x128xf32>
    %388 = math.exp %387 : vector<8x128xf32>
    %cst_66 = arith.constant 1.000000e+00 : f32
    %389 = vector.broadcast %cst_66 : f32 to vector<8x128xf32>
    %390 = arith.addf %389, %388 : vector<8x128xf32>
    %391 = arith.divf %389, %390 : vector<8x128xf32>
    %392 = vector.extract_strided_slice %385 {offsets = [0, 128], sizes = [8, 128], strides = [1, 1]} : vector<8x512xf32> to vector<8x128xf32>
    %393 = arith.negf %392 : vector<8x128xf32>
    %394 = math.exp %393 : vector<8x128xf32>
    %cst_67 = arith.constant 1.000000e+00 : f32
    %395 = vector.broadcast %cst_67 : f32 to vector<8x128xf32>
    %396 = arith.addf %395, %394 : vector<8x128xf32>
    %397 = arith.divf %395, %396 : vector<8x128xf32>
    %398 = vector.extract_strided_slice %385 {offsets = [0, 256], sizes = [8, 128], strides = [1, 1]} : vector<8x512xf32> to vector<8x128xf32>
    %399 = math.tanh %398 : vector<8x128xf32>
    %400 = vector.extract_strided_slice %385 {offsets = [0, 384], sizes = [8, 128], strides = [1, 1]} : vector<8x512xf32> to vector<8x128xf32>
    %401 = arith.negf %400 : vector<8x128xf32>
    %402 = math.exp %401 : vector<8x128xf32>
    %cst_68 = arith.constant 1.000000e+00 : f32
    %403 = vector.broadcast %cst_68 : f32 to vector<8x128xf32>
    %404 = arith.addf %403, %402 : vector<8x128xf32>
    %405 = arith.divf %403, %404 : vector<8x128xf32>
    %406 = arith.mulf %397, %349 : vector<8x128xf32>
    %407 = arith.mulf %391, %399 : vector<8x128xf32>
    %408 = arith.addf %406, %407 : vector<8x128xf32>
    %409 = math.tanh %408 : vector<8x128xf32>
    %410 = arith.mulf %405, %409 : vector<8x128xf32>
    %411 = arith.truncf %410 : vector<8x128xf32> to vector<8x128xbf16>
    %c0_69 = arith.constant 0 : index
    %c0_70 = arith.constant 0 : index
    %412 = vector.load %arg5[%c0_69, %c0_70] : memref<256x896xbf16, #tpu.memory_space<vmem>>, vector<128x512xbf16>
    %cst_71 = arith.constant dense<0.000000e+00> : vector<8x512xf32>
    %413 = tpu.matmul %411, %412, %cst_71 {dimension_numbers = #tpu.dot_dimension_numbers<[1], [0], [0], [1], [0, 0, 1, 1], [], []>} : vector<8x128xbf16>, vector<128x512xbf16>, vector<8x512xf32> -> vector<8x512xf32>
    %414 = vector.extract_strided_slice %8 {offsets = [56, 0], sizes = [8, 512], strides = [1, 1]} : vector<64x512xf32> to vector<8x512xf32>
    %415 = arith.addf %414, %413 : vector<8x512xf32>
    %416 = vector.extract_strided_slice %415 {offsets = [0, 0], sizes = [8, 128], strides = [1, 1]} : vector<8x512xf32> to vector<8x128xf32>
    %417 = arith.negf %416 : vector<8x128xf32>
    %418 = math.exp %417 : vector<8x128xf32>
    %cst_72 = arith.constant 1.000000e+00 : f32
    %419 = vector.broadcast %cst_72 : f32 to vector<8x128xf32>
    %420 = arith.addf %419, %418 : vector<8x128xf32>
    %421 = arith.divf %419, %420 : vector<8x128xf32>
    %422 = vector.extract_strided_slice %415 {offsets = [0, 128], sizes = [8, 128], strides = [1, 1]} : vector<8x512xf32> to vector<8x128xf32>
    %423 = arith.negf %422 : vector<8x128xf32>
    %424 = math.exp %423 : vector<8x128xf32>
    %cst_73 = arith.constant 1.000000e+00 : f32
    %425 = vector.broadcast %cst_73 : f32 to vector<8x128xf32>
    %426 = arith.addf %425, %424 : vector<8x128xf32>
    %427 = arith.divf %425, %426 : vector<8x128xf32>
    %428 = vector.extract_strided_slice %415 {offsets = [0, 256], sizes = [8, 128], strides = [1, 1]} : vector<8x512xf32> to vector<8x128xf32>
    %429 = math.tanh %428 : vector<8x128xf32>
    %430 = vector.extract_strided_slice %415 {offsets = [0, 384], sizes = [8, 128], strides = [1, 1]} : vector<8x512xf32> to vector<8x128xf32>
    %431 = arith.negf %430 : vector<8x128xf32>
    %432 = math.exp %431 : vector<8x128xf32>
    %cst_74 = arith.constant 1.000000e+00 : f32
    %433 = vector.broadcast %cst_74 : f32 to vector<8x128xf32>
    %434 = arith.addf %433, %432 : vector<8x128xf32>
    %435 = arith.divf %433, %434 : vector<8x128xf32>
    %436 = arith.mulf %427, %408 : vector<8x128xf32>
    %437 = arith.mulf %421, %429 : vector<8x128xf32>
    %438 = arith.addf %436, %437 : vector<8x128xf32>
    %439 = math.tanh %438 : vector<8x128xf32>
    %440 = arith.mulf %435, %439 : vector<8x128xf32>
    %441 = tpu.concatenate %440, %380 in 1 : vector<8x128xf32>, vector<8x128xf32> -> vector<8x256xf32>
    %442 = arith.truncf %441 : vector<8x256xf32> to vector<8x256xbf16>
    %c0_75 = arith.constant 0 : index
    %c0_76 = arith.constant 0 : index
    %443 = vector.load %arg9[%c0_75, %c0_76] : memref<256x128xbf16, #tpu.memory_space<vmem>>, vector<256x128xbf16>
    %cst_77 = arith.constant dense<0.000000e+00> : vector<8x128xf32>
    %444 = tpu.matmul %442, %443, %cst_77 {dimension_numbers = #tpu.dot_dimension_numbers<[1], [0], [0], [1], [0, 0, 1, 1], [], []>} : vector<8x256xbf16>, vector<256x128xbf16>, vector<8x128xf32> -> vector<8x128xf32>
    %c0_78 = arith.constant 0 : index
    %c0_79 = arith.constant 0 : index
    %445 = vector.load %arg10[%c0_78, %c0_79] : memref<1x128xf32, #tpu.memory_space<vmem>>, vector<1x128xf32>
    %446 = vector.broadcast %445 : vector<1x128xf32> to vector<8x128xf32>
    %447 = arith.addf %444, %446 : vector<8x128xf32>
    %448 = vector.extract_strided_slice %447 {offsets = [0, 0], sizes = [4, 128], strides = [1, 1]} : vector<8x128xf32> to vector<4x128xf32>
    %449 = vector.extract_strided_slice %447 {offsets = [4, 0], sizes = [4, 128], strides = [1, 1]} : vector<8x128xf32> to vector<4x128xf32>
    %450 = arith.truncf %448 : vector<4x128xf32> to vector<4x128xbf16>
    %c0_80 = arith.constant 0 : index
    %c0_81 = arith.constant 0 : index
    %451 = vector.load %arg11[%c0_80, %c0_81] : memref<128x128xbf16, #tpu.memory_space<vmem>>, vector<128x128xbf16>
    %cst_82 = arith.constant dense<0.000000e+00> : vector<4x128xf32>
    %452 = tpu.matmul %450, %451, %cst_82 {dimension_numbers = #tpu.dot_dimension_numbers<[1], [0], [0], [1], [0, 0, 1, 1], [], []>} : vector<4x128xbf16>, vector<128x128xbf16>, vector<4x128xf32> -> vector<4x128xf32>
    %453 = arith.mulf %452, %449 : vector<4x128xf32>
    %cst_83 = arith.constant dense<0.000000e+00> : vector<4xf32>
    %454 = vector.multi_reduction <add>, %453, %cst_83 [1] : vector<4x128xf32> to vector<4xf32>
    %455 = vector.shape_cast %454 : vector<4xf32> to vector<4x1xf32>
    %c0_84 = arith.constant 0 : index
    %456 = memref.load %arg12[%c0_84] : memref<1xf32, #tpu.memory_space<smem>>
    %457 = vector.broadcast %456 : f32 to vector<4x1xf32>
    %458 = arith.addf %455, %457 : vector<4x1xf32>
    %459 = vector.shape_cast %458 : vector<4x1xf32> to vector<4x1xf32>
    %460 = vector.broadcast %459 : vector<4x1xf32> to vector<4x128xf32>
    %c0_85 = arith.constant 0 : index
    %c0_86 = arith.constant 0 : index
    %461 = vector.load %arg13[%c0_85, %c0_86] : memref<4x128xf32, #tpu.memory_space<vmem>>, vector<4x128xf32>
    tpu.vector_store %arg13[%c0_85, %c0_86], %460 {strides = array<i32>} : memref<4x128xf32, #tpu.memory_space<vmem>>, vector<4x128xf32>,
    return
  }
  func.func @transform_0(%arg0: i32) -> (i32, i32, i32) {
    %c0_i32 = arith.constant 0 : i32
    %c0_i32_0 = arith.constant 0 : i32
    %c0_i32_1 = arith.constant 0 : i32
    return %arg0, %c0_i32, %c0_i32_0 : i32, i32, i32
  }
  func.func @transform_1(%arg0: i32) -> (i32, i32, i32) {
    %c0_i32 = arith.constant 0 : i32
    %c0_i32_0 = arith.constant 0 : i32
    %c0_i32_1 = arith.constant 0 : i32
    return %arg0, %c0_i32, %c0_i32_0 : i32, i32, i32
  }
  func.func @transform_2(%arg0: i32) -> (i32, i32) {
    %c0_i32 = arith.constant 0 : i32
    %c0_i32_0 = arith.constant 0 : i32
    %c0_i32_1 = arith.constant 0 : i32
    return %c0_i32, %c0_i32_0 : i32, i32
  }
  func.func @transform_3(%arg0: i32) -> (i32, i32) {
    %c0_i32 = arith.constant 0 : i32
    %c0_i32_0 = arith.constant 0 : i32
    %c0_i32_1 = arith.constant 0 : i32
    return %c0_i32, %c0_i32_0 : i32, i32
  }
  func.func @transform_4(%arg0: i32) -> (i32, i32) {
    %c0_i32 = arith.constant 0 : i32
    %c0_i32_0 = arith.constant 0 : i32
    %c0_i32_1 = arith.constant 0 : i32
    return %c0_i32, %c0_i32_0 : i32, i32
  }
  func.func @transform_5(%arg0: i32) -> (i32, i32) {
    %c0_i32 = arith.constant 0 : i32
    %c0_i32_0 = arith.constant 0 : i32
    %c0_i32_1 = arith.constant 0 : i32
    return %c0_i32, %c0_i32_0 : i32, i32
  }
  func.func @transform_6(%arg0: i32) -> (i32, i32) {
    %c0_i32 = arith.constant 0 : i32
    %c0_i32_0 = arith.constant 0 : i32
    %c0_i32_1 = arith.constant 0 : i32
    return %c0_i32, %c0_i32_0 : i32, i32
  }
  func.func @transform_7(%arg0: i32) -> (i32, i32) {
    %c0_i32 = arith.constant 0 : i32
    %c0_i32_0 = arith.constant 0 : i32
    %c0_i32_1 = arith.constant 0 : i32
    return %c0_i32, %c0_i32_0 : i32, i32
  }
  func.func @transform_8(%arg0: i32) -> (i32, i32) {
    %c0_i32 = arith.constant 0 : i32
    %c0_i32_0 = arith.constant 0 : i32
    %c0_i32_1 = arith.constant 0 : i32
    return %c0_i32, %c0_i32_0 : i32, i32
  }
  func.func @transform_9(%arg0: i32) -> (i32, i32) {
    %c0_i32 = arith.constant 0 : i32
    %c0_i32_0 = arith.constant 0 : i32
    %c0_i32_1 = arith.constant 0 : i32
    return %c0_i32, %c0_i32_0 : i32, i32
  }
  func.func @transform_10(%arg0: i32) -> (i32, i32) {
    %c0_i32 = arith.constant 0 : i32
    %c0_i32_0 = arith.constant 0 : i32
    %c0_i32_1 = arith.constant 0 : i32
    return %c0_i32, %c0_i32_0 : i32, i32
  }
  func.func @transform_11(%arg0: i32) -> i32 {
    %c0_i32 = arith.constant 0 : i32
    %c0_i32_0 = arith.constant 0 : i32
    return %c0_i32 : i32
  }
  func.func @transform_12(%arg0: i32) -> (i32, i32) {
    %c0_i32 = arith.constant 0 : i32
    %c0_i32_0 = arith.constant 0 : i32
    return %arg0, %c0_i32 : i32, i32
  }
}

</mosaic_0001>

<llo_original>
// kernel: tpu_custom_call.1
$region0: #{tpu_custom_call.1}
  #allocation0 [shape = 'u32[]', space=smem, size = 0x4, offset = 0x4, fixed_abs, tag = 'smem constant byte address 0x4 - core index']
  #allocation1 [shape = 'u32[72,128]{1,0:T(1,128)}', space=vmem, size = 0x9000, scoped, tag = 'internal scratch']
  #allocation2 [shape = 'f32[1]{0:T(128)S(6)}', space=smem, size = 0x200, scoped, tag = 'scoped memory for tpu_custom_call.1']
  %s0 = inlined_call_operand.vmem [shape: bf16[1,64,32], index: 0, kind: input, shape index: {}]
  %s1 = inlined_call_operand.vmem [shape: bf16[1,48,32], index: 1, kind: input, shape index: {}]
  %s2 = inlined_call_operand.vmem [shape: bf16[32,512], index: 2, kind: input, shape index: {}]
  %s3 = inlined_call_operand.hbm [shape: bf16[32,384], index: 3, kind: input, shape index: {}]
  %s4 = inlined_call_operand.hbm [shape: bf16[256,896], index: 4, kind: input, shape index: {}]
  %s5 = inlined_call_operand.vmem [shape: f32[1,512], index: 5, kind: input, shape index: {}]
  %s6 = inlined_call_operand.vmem [shape: f32[1,384], index: 6, kind: input, shape index: {}]
  %s7 = inlined_call_operand.vmem [shape: f32[1,384], index: 7, kind: input, shape index: {}]
  %s8 = inlined_call_operand.hbm [shape: bf16[256,128], index: 8, kind: input, shape index: {}]
  %s9 = inlined_call_operand.vmem [shape: f32[1,128], index: 9, kind: input, shape index: {}]
  %s10 = inlined_call_operand.hbm [shape: bf16[128,128], index: 10, kind: input, shape index: {}]
  %s11 = inlined_call_operand.<no memory space> [shape: f32[1], index: 11, kind: input, shape index: {}]
  %s12 = inlined_call_operand.hbm [shape: f32[4,128], index: 12, kind: output, shape index: {}]
  %s13 = sld [smem:[#allocation0]]
  $region74: #{tpu_custom_call.1} parent=0
    _
  %s15 = ssub.s32 1, %s13
  %s16 = scalar_select 0, %s15, %s13
  %17 = sst [smem:[#allocation2]] %s11
  $region1: #{tpu_custom_call.1} parent=0
    #allocation3 [shape = 'u8[24576]{0}', space=vmem, size = 0x6000, scoped, tag = 'input window, operand 3, single buffered']
    #allocation4 [shape = 's32[1]{0}', space=sflag, size = 0x4, scoped, tag = 'scoped memory for tpu_custom_call.1']
    #allocation5 [shape = 's32[1]{0}', space=sflag, size = 0x4, scoped, tag = 'scoped memory for tpu_custom_call.1']
    #allocation6 [shape = 'u8[458752]{0}', space=vmem, size = 0x70000, scoped, tag = 'input window, operand 4, single buffered']
    #allocation7 [shape = 's32[1]{0}', space=sflag, size = 0x4, scoped, tag = 'scoped memory for tpu_custom_call.1']
    #allocation8 [shape = 'u8[65536]{0}', space=vmem, size = 0x10000, scoped, tag = 'input window, operand 8, single buffered']
    #allocation9 [shape = 'u8[32768]{0}', space=vmem, size = 0x8000, scoped, tag = 'input window, operand 10, single buffered']
    #allocation10 [shape = 's32[1]{0}', space=sflag, size = 0x4, scoped, tag = 'scoped memory for tpu_custom_call.1']
    #allocation11 [shape = 'u8[2048]{0}', space=vmem, size = 0x800, scoped, tag = 'output window, operand 0, single buffered']
    %18 = vsyncpa [#allocation4], 0
    %19 = vsyncpa [#allocation7], 0
    %20 = vsyncpa [#allocation10], 0
    %21 = vsyncpa [#allocation5], 0
    // Predicated region
    $region2: #{tpu_custom_call.1} parent=1 // pred_check
      _
    $region3: #{tpu_custom_call.1} parent=1 // pred_check_branch
      %23 = sbr.rel (0) target = $region5
    $region4: #{tpu_custom_call.1} parent=1 // pred_region
      _
    $region5: #{tpu_custom_call.1} parent=1 // pred_fallthru
      _
    // Predicated region
    $region6: #{tpu_custom_call.1} parent=1 // pred_check
      _
    $region7: #{tpu_custom_call.1} parent=1 // pred_check_branch
      %25 = sbr.rel (0) target = $region9
    $region8: #{tpu_custom_call.1} parent=1 // pred_region
      _
    $region9: #{tpu_custom_call.1} parent=1 // pred_fallthru
      _
    // Predicated region
    $region10: #{tpu_custom_call.1} parent=1 // pred_check
      _
    $region11: #{tpu_custom_call.1} parent=1 // pred_check_branch
      %27 = sbr.rel (0) target = $region13
    $region12: #{tpu_custom_call.1} parent=1 // pred_region
      _
    $region13: #{tpu_custom_call.1} parent=1 // pred_fallthru
      _
    // Predicated region
    $region14: #{tpu_custom_call.1} parent=1 // pred_check
      _
    $region15: #{tpu_custom_call.1} parent=1 // pred_check_branch
      %29 = sbr.rel (0) target = $region17
    $region16: #{tpu_custom_call.1} parent=1 // pred_region
      %31 = vsyncadd [#allocation4], 0
      %s32 = sshll.u32 %s3, 4
      %s33 = int_to_ptr.hbm [resolvable:$true] %s32
      %s34 = sshll.u32 [#allocation3], 4
      %s35 = int_to_ptr.vmem [resolvable:$true] %s34
      %40 = dma.hbm_to_vmem [thread:$0]  %s33, 768, %s35, [#allocation4], 192, 192, 12
    $region17: #{tpu_custom_call.1} parent=1 // pred_fallthru
      _
    // Predicated region
    $region18: #{tpu_custom_call.1} parent=1 // pred_check
      _
    $region19: #{tpu_custom_call.1} parent=1 // pred_check_branch
      %42 = sbr.rel (0) target = $region21
    $region20: #{tpu_custom_call.1} parent=1 // pred_region
      %44 = vsyncadd [#allocation7], 0
      %s45 = sshll.u32 %s4, 4
      %s46 = int_to_ptr.hbm [resolvable:$true] %s45
      %s47 = sshll.u32 [#allocation6], 4
      %s48 = int_to_ptr.vmem [resolvable:$true] %s47
      %53 = dma.hbm_to_vmem [thread:$0]  %s46, 14336, %s48, [#allocation7], 448, 448, 28
    $region21: #{tpu_custom_call.1} parent=1 // pred_fallthru
      _
    // Predicated region
    $region22: #{tpu_custom_call.1} parent=1 // pred_check
      _
    $region23: #{tpu_custom_call.1} parent=1 // pred_check_branch
      %55 = sbr.rel (0) target = $region25
    $region24: #{tpu_custom_call.1} parent=1 // pred_region
      _
    $region25: #{tpu_custom_call.1} parent=1 // pred_fallthru
      _
    // Predicated region
    $region26: #{tpu_custom_call.1} parent=1 // pred_check
      _
    $region27: #{tpu_custom_call.1} parent=1 // pred_check_branch
      %57 = sbr.rel (0) target = $region29
    $region28: #{tpu_custom_call.1} parent=1 // pred_region
      _
    $region29: #{tpu_custom_call.1} parent=1 // pred_fallthru
      _
    // Predicated region
    $region30: #{tpu_custom_call.1} parent=1 // pred_check
      _
    $region31: #{tpu_custom_call.1} parent=1 // pred_check_branch
      %59 = sbr.rel (0) target = $region33
    $region32: #{tpu_custom_call.1} parent=1 // pred_region
      _
    $region33: #{tpu_custom_call.1} parent=1 // pred_fallthru
      _
    // Predicated region
    $region34: #{tpu_custom_call.1} parent=1 // pred_check
      _
    $region35: #{tpu_custom_call.1} parent=1 // pred_check_branch
      %61 = sbr.rel (0) target = $region37
    $region36: #{tpu_custom_call.1} parent=1 // pred_region
      %63 = vsyncadd [#allocation7], 0
      %s64 = sshll.u32 %s8, 4
      %s65 = int_to_ptr.hbm [resolvable:$true] %s64
      %s66 = sshll.u32 [#allocation8], 4
      %s67 = int_to_ptr.vmem [resolvable:$true] %s66
      %72 = dma.hbm_to_vmem [thread:$0]  %s65, 2048, %s67, [#allocation7], 64, 64, 4
    $region37: #{tpu_custom_call.1} parent=1 // pred_fallthru
      _
    // Predicated region
    $region38: #{tpu_custom_call.1} parent=1 // pred_check
      _
    $region39: #{tpu_custom_call.1} parent=1 // pred_check_branch
      %74 = sbr.rel (0) target = $region41
    $region40: #{tpu_custom_call.1} parent=1 // pred_region
      _
    $region41: #{tpu_custom_call.1} parent=1 // pred_fallthru
      _
    // Predicated region
    $region42: #{tpu_custom_call.1} parent=1 // pred_check
      _
    $region43: #{tpu_custom_call.1} parent=1 // pred_check_branch
      %76 = sbr.rel (0) target = $region45
    $region44: #{tpu_custom_call.1} parent=1 // pred_region
      %78 = vsyncadd [#allocation10], 0
      %s79 = sshll.u32 %s10, 4
      %s80 = int_to_ptr.hbm [resolvable:$true] %s79
      %s81 = sshll.u32 [#allocation9], 4
      %s82 = int_to_ptr.vmem [resolvable:$true] %s81
      %87 = dma.hbm_to_vmem [thread:$0]  %s80, 1024, %s82, [#allocation10], 64, 64, 4
    $region45: #{tpu_custom_call.1} parent=1 // pred_fallthru
      _
    // Predicated region
    $region46: #{tpu_custom_call.1} parent=1 // pred_check
      _
    $region47: #{tpu_custom_call.1} parent=1 // pred_check_branch
      %89 = sbr.rel (0) target = $region49
    $region48: #{tpu_custom_call.1} parent=1 // pred_region
      _
    $region49: #{tpu_custom_call.1} parent=1 // pred_fallthru
      _
    // Predicated region
    $region50: #{tpu_custom_call.1} parent=1 // pred_check
      _
    $region51: #{tpu_custom_call.1} parent=1 // pred_check_branch
      %91 = sbr.rel (0) target = $region53
    $region52: #{tpu_custom_call.1} parent=1 // pred_region
      %93 = dma.done [#allocation4], 768
    $region53: #{tpu_custom_call.1} parent=1 // pred_fallthru
      _
    // Predicated region
    $region54: #{tpu_custom_call.1} parent=1 // pred_check
      _
    $region55: #{tpu_custom_call.1} parent=1 // pred_check_branch
      %95 = sbr.rel (0) target = $region57
    $region56: #{tpu_custom_call.1} parent=1 // pred_region
      %97 = dma.done [#allocation7], 14336
    $region57: #{tpu_custom_call.1} parent=1 // pred_fallthru
      _
    // Predicated region
    $region58: #{tpu_custom_call.1} parent=1 // pred_check
      _
    $region59: #{tpu_custom_call.1} parent=1 // pred_check_branch
      %99 = sbr.rel (0) target = $region61
    $region60: #{tpu_custom_call.1} parent=1 // pred_region
      %101 = dma.done [#allocation7], 2048
    $region61: #{tpu_custom_call.1} parent=1 // pred_fallthru
      _
    // Predicated region
    $region62: #{tpu_custom_call.1} parent=1 // pred_check
      _
    $region63: #{tpu_custom_call.1} parent=1 // pred_check_branch
      %103 = sbr.rel (0) target = $region65
    $region64: #{tpu_custom_call.1} parent=1 // pred_region
      %105 = dma.done [#allocation10], 1024
    $region65: #{tpu_custom_call.1} parent=1 // pred_fallthru
      _
    %v107 = vld [vmem:[%s0] sm:$0xf]
    %v108 = vld [vmem:[%s0 + $0x4] sm:$0xf]
    %v109 = vld [vmem:[%s0 + $0x8] sm:$0xf]
    %v110 = vld [vmem:[%s0 + $0xc] sm:$0xf]
    %v111 = vld [vmem:[%s0 + $0x10] sm:$0xf]
    %v112 = vld [vmem:[%s0 + $0x14] sm:$0xf]
    %v113 = vld [vmem:[%s0 + $0x18] sm:$0xf]
    %v114 = vld [vmem:[%s0 + $0x1c] sm:$0xf]
    %v115 = vld [vmem:[%s1] sm:$0xf]
    %v116 = vld [vmem:[%s1 + $0x4] sm:$0xf]
    %v117 = vld [vmem:[%s1 + $0x8] sm:$0xf]
    %v118 = vld [vmem:[%s1 + $0xc] sm:$0xf]
    %v119 = vld [vmem:[%s1 + $0x10] sm:$0xf]
    %v120 = vld [vmem:[%s1 + $0x14] sm:$0xf]
    %v121 = vld [vmem:[%s2] sm:$0xff]
    %v122 = vld [vmem:[%s2 + $0x8] sm:$0xff]
    %v123 = vld [vmem:[%s2 + $0x10] sm:$0xff]
    %v124 = vld [vmem:[%s2 + $0x18] sm:$0xff]
    %v125 = vld [vmem:[%s2 + $0x20] sm:$0xff]
    %v126 = vld [vmem:[%s2 + $0x28] sm:$0xff]
    %v127 = vld [vmem:[%s2 + $0x30] sm:$0xff]
    %v128 = vld [vmem:[%s2 + $0x38] sm:$0xff]
    %v129 = vld [vmem:[%s5] sm:$0xf]
    %v131 = vperm.slane %v129, 0
    %v132 = vperm.slane %v129, 1
    %v133 = vperm.slane %v129, 2
    %v134 = vperm.slane %v129, 3
    %v147 = vunpack.c.l.b16 %v107
    %v148 = vunpack.c.l.b16 %v108
    %v149 = vunpack.c.l.b16 %v109
    %v150 = vunpack.c.l.b16 %v110
    %v151 = vunpack.c.l.b16 %v111
    %v152 = vunpack.c.l.b16 %v112
    %v153 = vunpack.c.l.b16 %v113
    %v154 = vunpack.c.l.b16 %v114
    %v155 = vpack.c.b16 %v148, %v147
    %v156 = vpack.c.b16 %v150, %v149
    %v157 = vpack.c.b16 %v152, %v151
    %v158 = vpack.c.b16 %v154, %v153
    %v167 = vunpack.c.l.b16 %v121
    %v168 = vunpack.c.h.b16 %v121
    %v169 = vunpack.c.l.b16 %v122
    %v170 = vunpack.c.h.b16 %v122
    %v171 = vunpack.c.l.b16 %v123
    %v172 = vunpack.c.h.b16 %v123
    %v173 = vunpack.c.l.b16 %v124
    %v174 = vunpack.c.h.b16 %v124
    %v175 = vunpack.c.l.b16 %v125
    %v176 = vunpack.c.h.b16 %v125
    %v177 = vunpack.c.l.b16 %v126
    %v178 = vunpack.c.h.b16 %v126
    %v179 = vunpack.c.l.b16 %v127
    %v180 = vunpack.c.h.b16 %v127
    %v181 = vunpack.c.l.b16 %v128
    %v182 = vunpack.c.h.b16 %v128
    %v183 = vpack.c.b16 %v171, %v167
    %v184 = vpack.c.b16 %v172, %v168
    %v185 = vpack.c.b16 %v173, %v169
    %v186 = vpack.c.b16 %v174, %v170
    %v187 = vpack.c.b16 %v179, %v175
    %v188 = vpack.c.b16 %v180, %v176
    %v189 = vpack.c.b16 %v181, %v177
    %v190 = vpack.c.b16 %v182, %v178
    %vm199 = vcmask 261120
    %v201 = vsel %vm199, %v155, 0
    %v204 = vsel %vm199, %v156, 0
    %v207 = vsel %vm199, %v157, 0
    %v210 = vsel %vm199, %v158, 0
    %212 = vmatpush.bf16.msra.mxu0 0
    %213 = vmatpush.bf16.msra.mxu0 0
    %214 = vmatpush.bf16.msra.mxu0 0
    %215 = vmatpush.bf16.msra.mxu0 0
    %216 = vmatpush.bf16.msra.mxu0 0
    %217 = vmatpush.bf16.msra.mxu0 0
    %218 = vmatpush.bf16.msra.mxu0 %v187
    %219 = vmatpush.bf16.msra.mxu0 %v183
    %220 = vmatmul.bf16.gmra.mxu0 %v201
    %v221 = vpop.f32.mrf.mxu0
    %v222 = vadd.f32 %v131, %v221
    %v223 = vpop.f32.mrf.mxu0
    %v224 = vadd.f32 %v131, %v223
    %225 = vmatmul.bf16.gmra.mxu0 %v204
    %v226 = vpop.f32.mrf.mxu0
    %v227 = vadd.f32 %v131, %v226
    %v228 = vpop.f32.mrf.mxu0
    %v229 = vadd.f32 %v131, %v228
    %230 = vmatmul.bf16.gmra.mxu0 %v207
    %v231 = vpop.f32.mrf.mxu0
    %v232 = vadd.f32 %v131, %v231
    %v233 = vpop.f32.mrf.mxu0
    %v234 = vadd.f32 %v131, %v233
    %235 = vmatmul.bf16.gmra.mxu0 %v210
    %v236 = vpop.f32.mrf.mxu0
    %v237 = vadd.f32 %v131, %v236
    %v238 = vpop.f32.mrf.mxu0
    %v239 = vadd.f32 %v131, %v238
    %240 = vdwg.mxu0
    %241 = vmatpush.bf16.msra.mxu0 0
    %242 = vmatpush.bf16.msra.mxu0 0
    %243 = vmatpush.bf16.msra.mxu0 0
    %244 = vmatpush.bf16.msra.mxu0 0
    %245 = vmatpush.bf16.msra.mxu0 0
    %246 = vmatpush.bf16.msra.mxu0 0
    %247 = vmatpush.bf16.msra.mxu0 %v188
    %248 = vmatpush.bf16.msra.mxu0 %v184
    %249 = vmatmul.bf16.gmra.mxu0 %v201
    %v250 = vpop.f32.mrf.mxu0
    %v251 = vadd.f32 %v132, %v250
    %v252 = vpop.f32.mrf.mxu0
    %v253 = vadd.f32 %v132, %v252
    %254 = vmatmul.bf16.gmra.mxu0 %v204
    %v255 = vpop.f32.mrf.mxu0
    %v256 = vadd.f32 %v132, %v255
    %v257 = vpop.f32.mrf.mxu0
    %v258 = vadd.f32 %v132, %v257
    %259 = vmatmul.bf16.gmra.mxu0 %v207
    %v260 = vpop.f32.mrf.mxu0
    %v261 = vadd.f32 %v132, %v260
    %v262 = vpop.f32.mrf.mxu0
    %v263 = vadd.f32 %v132, %v262
    %264 = vmatmul.bf16.gmra.mxu0 %v210
    %v265 = vpop.f32.mrf.mxu0
    %v266 = vadd.f32 %v132, %v265
    %v267 = vpop.f32.mrf.mxu0
    %v268 = vadd.f32 %v132, %v267
    %269 = vdwg.mxu0
    %270 = vmatpush.bf16.msra.mxu0 0
    %271 = vmatpush.bf16.msra.mxu0 0
    %272 = vmatpush.bf16.msra.mxu0 0
    %273 = vmatpush.bf16.msra.mxu0 0
    %274 = vmatpush.bf16.msra.mxu0 0
    %275 = vmatpush.bf16.msra.mxu0 0
    %276 = vmatpush.bf16.msra.mxu0 %v189
    %277 = vmatpush.bf16.msra.mxu0 %v185
    %278 = vmatmul.bf16.gmra.mxu0 %v201
    %v279 = vpop.f32.mrf.mxu0
    %v280 = vadd.f32 %v133, %v279
    %v281 = vpop.f32.mrf.mxu0
    %v282 = vadd.f32 %v133, %v281
    %283 = vmatmul.bf16.gmra.mxu0 %v204
    %v284 = vpop.f32.mrf.mxu0
    %v285 = vadd.f32 %v133, %v284
    %v286 = vpop.f32.mrf.mxu0
    %v287 = vadd.f32 %v133, %v286
    %288 = vmatmul.bf16.gmra.mxu0 %v207
    %v289 = vpop.f32.mrf.mxu0
    %v290 = vadd.f32 %v133, %v289
    %v291 = vpop.f32.mrf.mxu0
    %v292 = vadd.f32 %v133, %v291
    %293 = vmatmul.bf16.gmra.mxu0 %v210
    %v294 = vpop.f32.mrf.mxu0
    %v295 = vadd.f32 %v133, %v294
    %v296 = vpop.f32.mrf.mxu0
    %v297 = vadd.f32 %v133, %v296
    %298 = vdwg.mxu0
    %299 = vmatpush.bf16.msra.mxu0 0
    %300 = vmatpush.bf16.msra.mxu0 0
    %301 = vmatpush.bf16.msra.mxu0 0
    %302 = vmatpush.bf16.msra.mxu0 0
    %303 = vmatpush.bf16.msra.mxu0 0
    %304 = vmatpush.bf16.msra.mxu0 0
    %305 = vmatpush.bf16.msra.mxu0 %v190
    %306 = vmatpush.bf16.msra.mxu0 %v186
    %307 = vmatmul.bf16.gmra.mxu0 %v201
    %v308 = vpop.f32.mrf.mxu0
    %v309 = vadd.f32 %v134, %v308
    %v310 = vpop.f32.mrf.mxu0
    %v311 = vadd.f32 %v134, %v310
    %312 = vmatmul.bf16.gmra.mxu0 %v204
    %v313 = vpop.f32.mrf.mxu0
    %v314 = vadd.f32 %v134, %v313
    %v315 = vpop.f32.mrf.mxu0
    %v316 = vadd.f32 %v134, %v315
    %317 = vmatmul.bf16.gmra.mxu0 %v207
    %v318 = vpop.f32.mrf.mxu0
    %v319 = vadd.f32 %v134, %v318
    %v320 = vpop.f32.mrf.mxu0
    %v321 = vadd.f32 %v134, %v320
    %322 = vmatmul.bf16.gmra.mxu0 %v210
    %v323 = vpop.f32.mrf.mxu0
    %v324 = vadd.f32 %v134, %v323
    %v325 = vpop.f32.mrf.mxu0
    %v326 = vadd.f32 %v134, %v325
    %327 = vdwg.mxu0
    %v328 = vld [vmem:[#allocation3] sm:$0xff]
    %v329 = vld [vmem:[#allocation3 + $0x8] sm:$0xf]
    %v330 = vld [vmem:[#allocation3 + $0xc] sm:$0xff]
    %v331 = vld [vmem:[#allocation3 + $0x14] sm:$0xf]
    %v332 = vld [vmem:[#allocation3 + $0x18] sm:$0xff]
    %v333 = vld [vmem:[#allocation3 + $0x20] sm:$0xf]
    %v334 = vld [vmem:[#allocation3 + $0x24] sm:$0xff]
    %v335 = vld [vmem:[#allocation3 + $0x2c] sm:$0xf]
    %v336 = vld [vmem:[%s6] sm:$0x7]
    %v338 = vperm.slane %v336, 0
    %v339 = vperm.slane %v336, 1
    %v340 = vperm.slane %v336, 2
    %v350 = vunpack.c.l.b16 %v115
    %v351 = vunpack.c.l.b16 %v116
    %v352 = vunpack.c.l.b16 %v117
    %v353 = vunpack.c.l.b16 %v118
    %v354 = vunpack.c.l.b16 %v119
    %v355 = vunpack.c.l.b16 %v120
    %v356 = vpack.c.b16 %v351, %v350
    %v357 = vpack.c.b16 %v353, %v352
    %v358 = vpack.c.b16 %v355, %v354
    %v367 = vunpack.c.l.b16 %v328
    %v368 = vunpack.c.h.b16 %v328
    %v369 = vunpack.c.l.b16 %v329
    %v370 = vunpack.c.l.b16 %v330
    %v371 = vunpack.c.h.b16 %v330
    %v372 = vunpack.c.l.b16 %v331
    %v373 = vunpack.c.l.b16 %v332
    %v374 = vunpack.c.h.b16 %v332
    %v375 = vunpack.c.l.b16 %v333
    %v376 = vunpack.c.l.b16 %v334
    %v377 = vunpack.c.h.b16 %v334
    %v378 = vunpack.c.l.b16 %v335
    %v379 = vpack.c.b16 %v370, %v367
    %v380 = vpack.c.b16 %v371, %v368
    %v381 = vpack.c.b16 %v372, %v369
    %v382 = vpack.c.b16 %v376, %v373
    %v383 = vpack.c.b16 %v377, %v374
    %v384 = vpack.c.b16 %v378, %v375
    %v392 = vsel %vm199, %v356, 0
    %v395 = vsel %vm199, %v357, 0
    %v398 = vsel %vm199, %v358, 0
    %400 = vmatpush.bf16.msra.mxu0 0
    %401 = vmatpush.bf16.msra.mxu0 0
    %402 = vmatpush.bf16.msra.mxu0 0
    %403 = vmatpush.bf16.msra.mxu0 0
    %404 = vmatpush.bf16.msra.mxu0 0
    %405 = vmatpush.bf16.msra.mxu0 0
    %406 = vmatpush.bf16.msra.mxu0 %v382
    %407 = vmatpush.bf16.msra.mxu0 %v379
    %408 = vmatmul.bf16.gmra.mxu0 %v392
    %v409 = vpop.f32.mrf.mxu0
    %v410 = vadd.f32 %v338, %v409
    %v411 = vpop.f32.mrf.mxu0
    %v412 = vadd.f32 %v338, %v411
    %413 = vmatmul.bf16.gmra.mxu0 %v395
    %v414 = vpop.f32.mrf.mxu0
    %v415 = vadd.f32 %v338, %v414
    %v416 = vpop.f32.mrf.mxu0
    %v417 = vadd.f32 %v338, %v416
    %418 = vmatmul.bf16.gmra.mxu0 %v398
    %v419 = vpop.f32.mrf.mxu0
    %v420 = vadd.f32 %v338, %v419
    %v421 = vpop.f32.mrf.mxu0
    %v422 = vadd.f32 %v338, %v421
    %423 = vdwg.mxu0
    %424 = vmatpush.bf16.msra.mxu0 0
    %425 = vmatpush.bf16.msra.mxu0 0
    %426 = vmatpush.bf16.msra.mxu0 0
    %427 = vmatpush.bf16.msra.mxu0 0
    %428 = vmatpush.bf16.msra.mxu0 0
    %429 = vmatpush.bf16.msra.mxu0 0
    %430 = vmatpush.bf16.msra.mxu0 %v383
    %431 = vmatpush.bf16.msra.mxu0 %v380
    %432 = vmatmul.bf16.gmra.mxu0 %v392
    %v433 = vpop.f32.mrf.mxu0
    %v434 = vadd.f32 %v339, %v433
    %v435 = vpop.f32.mrf.mxu0
    %v436 = vadd.f32 %v339, %v435
    %437 = vmatmul.bf16.gmra.mxu0 %v395
    %v438 = vpop.f32.mrf.mxu0
    %v439 = vadd.f32 %v339, %v438
    %v440 = vpop.f32.mrf.mxu0
    %v441 = vadd.f32 %v339, %v440
    %442 = vmatmul.bf16.gmra.mxu0 %v398
    %v443 = vpop.f32.mrf.mxu0
    %v444 = vadd.f32 %v339, %v443
    %v445 = vpop.f32.mrf.mxu0
    %v446 = vadd.f32 %v339, %v445
    %447 = vdwg.mxu0
    %448 = vmatpush.bf16.msra.mxu0 0
    %449 = vmatpush.bf16.msra.mxu0 0
    %450 = vmatpush.bf16.msra.mxu0 0
    %451 = vmatpush.bf16.msra.mxu0 0
    %452 = vmatpush.bf16.msra.mxu0 0
    %453 = vmatpush.bf16.msra.mxu0 0
    %454 = vmatpush.bf16.msra.mxu0 %v384
    %455 = vmatpush.bf16.msra.mxu0 %v381
    %456 = vmatmul.bf16.gmra.mxu0 %v392
    %v457 = vpop.f32.mrf.mxu0
    %v458 = vadd.f32 %v340, %v457
    %v459 = vpop.f32.mrf.mxu0
    %v460 = vadd.f32 %v340, %v459
    %461 = vmatmul.bf16.gmra.mxu0 %v395
    %v462 = vpop.f32.mrf.mxu0
    %v463 = vadd.f32 %v340, %v462
    %v464 = vpop.f32.mrf.mxu0
    %v465 = vadd.f32 %v340, %v464
    %466 = vmatmul.bf16.gmra.mxu0 %v398
    %v467 = vpop.f32.mrf.mxu0
    %v468 = vadd.f32 %v340, %v467
    %v469 = vpop.f32.mrf.mxu0
    %v470 = vadd.f32 %v340, %v469
    %471 = vdwg.mxu0
    %v472 = vld [vmem:[#allocation6] sm:$0xff]
    %v473 = vld [vmem:[#allocation6 + $0x8] sm:$0xff]
    %v474 = vld [vmem:[#allocation6 + $0x10] sm:$0xff]
    %v475 = vld [vmem:[#allocation6 + $0x18] sm:$0xf]
    %v476 = vld [vmem:[#allocation6 + $0x1c] sm:$0xff]
    %v477 = vld [vmem:[#allocation6 + $0x24] sm:$0xff]
    %v478 = vld [vmem:[#allocation6 + $0x2c] sm:$0xff]
    %v479 = vld [vmem:[#allocation6 + $0x34] sm:$0xf]
    %v480 = vld [vmem:[#allocation6 + $0x38] sm:$0xff]
    %v481 = vld [vmem:[#allocation6 + $0x40] sm:$0xff]
    %v482 = vld [vmem:[#allocation6 + $0x48] sm:$0xff]
    %v483 = vld [vmem:[#allocation6 + $0x50] sm:$0xf]
    %v484 = vld [vmem:[#allocation6 + $0x54] sm:$0xff]
    %v485 = vld [vmem:[#allocation6 + $0x5c] sm:$0xff]
    %v486 = vld [vmem:[#allocation6 + $0x64] sm:$0xff]
    %v487 = vld [vmem:[#allocation6 + $0x6c] sm:$0xf]
    %v488 = vld [vmem:[#allocation6 + $0x70] sm:$0xff]
    %v489 = vld [vmem:[#allocation6 + $0x78] sm:$0xff]
    %v490 = vld [vmem:[#allocation6 + $0x80] sm:$0xff]
    %v491 = vld [vmem:[#allocation6 + $0x88] sm:$0xf]
    %v492 = vld [vmem:[#allocation6 + $0x8c] sm:$0xff]
    %v493 = vld [vmem:[#allocation6 + $0x94] sm:$0xff]
    %v494 = vld [vmem:[#allocation6 + $0x9c] sm:$0xff]
    %v495 = vld [vmem:[#allocation6 + $0xa4] sm:$0xf]
    %v496 = vld [vmem:[#allocation6 + $0xa8] sm:$0xff]
    %v497 = vld [vmem:[#allocation6 + $0xb0] sm:$0xff]
    %v498 = vld [vmem:[#allocation6 + $0xb8] sm:$0xff]
    %v499 = vld [vmem:[#allocation6 + $0xc0] sm:$0xf]
    %v500 = vld [vmem:[#allocation6 + $0xc4] sm:$0xff]
    %v501 = vld [vmem:[#allocation6 + $0xcc] sm:$0xff]
    %v502 = vld [vmem:[#allocation6 + $0xd4] sm:$0xff]
    %v503 = vld [vmem:[#allocation6 + $0xdc] sm:$0xf]
    %v504 = vld [vmem:[#allocation6 + $0xe0] sm:$0xff]
    %v505 = vld [vmem:[#allocation6 + $0xe8] sm:$0xff]
    %v506 = vld [vmem:[#allocation6 + $0xf0] sm:$0xff]
    %v507 = vld [vmem:[#allocation6 + $0xf8] sm:$0xf]
    %v508 = vld [vmem:[#allocation6 + $0xfc] sm:$0xff]
    %v509 = vld [vmem:[#allocation6 + $0x104] sm:$0xff]
    %v510 = vld [vmem:[#allocation6 + $0x10c] sm:$0xff]
    %v511 = vld [vmem:[#allocation6 + $0x114] sm:$0xf]
    %v512 = vld [vmem:[#allocation6 + $0x118] sm:$0xff]
    %v513 = vld [vmem:[#allocation6 + $0x120] sm:$0xff]
    %v514 = vld [vmem:[#allocation6 + $0x128] sm:$0xff]
    %v515 = vld [vmem:[#allocation6 + $0x130] sm:$0xf]
    %v516 = vld [vmem:[#allocation6 + $0x134] sm:$0xff]
    %v517 = vld [vmem:[#allocation6 + $0x13c] sm:$0xff]
    %v518 = vld [vmem:[#allocation6 + $0x144] sm:$0xff]
    %v519 = vld [vmem:[#allocation6 + $0x14c] sm:$0xf]
    %v520 = vld [vmem:[#allocation6 + $0x150] sm:$0xff]
    %v521 = vld [vmem:[#allocation6 + $0x158] sm:$0xff]
    %v522 = vld [vmem:[#allocation6 + $0x160] sm:$0xff]
    %v523 = vld [vmem:[#allocation6 + $0x168] sm:$0xf]
    %v524 = vld [vmem:[#allocation6 + $0x16c] sm:$0xff]
    %v525 = vld [vmem:[#allocation6 + $0x174] sm:$0xff]
    %v526 = vld [vmem:[#allocation6 + $0x17c] sm:$0xff]
    %v527 = vld [vmem:[#allocation6 + $0x184] sm:$0xf]
    %v528 = vld [vmem:[#allocation6 + $0x188] sm:$0xff]
    %v529 = vld [vmem:[#allocation6 + $0x190] sm:$0xff]
    %v530 = vld [vmem:[#allocation6 + $0x198] sm:$0xff]
    %v531 = vld [vmem:[#allocation6 + $0x1a0] sm:$0xf]
    %v532 = vld [vmem:[#allocation6 + $0x1a4] sm:$0xff]
    %v533 = vld [vmem:[#allocation6 + $0x1ac] sm:$0xff]
    %v534 = vld [vmem:[#allocation6 + $0x1b4] sm:$0xff]
    %v535 = vld [vmem:[#allocation6 + $0x1bc] sm:$0xf]
    %v536 = vld [vmem:[#allocation6 + $0x1c0] sm:$0xff]
    %v537 = vld [vmem:[#allocation6 + $0x1c8] sm:$0xff]
    %v538 = vld [vmem:[#allocation6 + $0x1d0] sm:$0xff]
    %v539 = vld [vmem:[#allocation6 + $0x1d8] sm:$0xf]
    %v540 = vld [vmem:[#allocation6 + $0x1dc] sm:$0xff]
    %v541 = vld [vmem:[#allocation6 + $0x1e4] sm:$0xff]
    %v542 = vld [vmem:[#allocation6 + $0x1ec] sm:$0xff]
    %v543 = vld [vmem:[#allocation6 + $0x1f4] sm:$0xf]
    %v544 = vld [vmem:[#allocation6 + $0x1f8] sm:$0xff]
    %v545 = vld [vmem:[#allocation6 + $0x200] sm:$0xff]
    %v546 = vld [vmem:[#allocation6 + $0x208] sm:$0xff]
    %v547 = vld [vmem:[#allocation6 + $0x210] sm:$0xf]
    %v548 = vld [vmem:[#allocation6 + $0x214] sm:$0xff]
    %v549 = vld [vmem:[#allocation6 + $0x21c] sm:$0xff]
    %v550 = vld [vmem:[#allocation6 + $0x224] sm:$0xff]
    %v551 = vld [vmem:[#allocation6 + $0x22c] sm:$0xf]
    %v552 = vld [vmem:[#allocation6 + $0x230] sm:$0xff]
    %v553 = vld [vmem:[#allocation6 + $0x238] sm:$0xff]
    %v554 = vld [vmem:[#allocation6 + $0x240] sm:$0xff]
    %v555 = vld [vmem:[#allocation6 + $0x248] sm:$0xf]
    %v556 = vld [vmem:[#allocation6 + $0x24c] sm:$0xff]
    %v557 = vld [vmem:[#allocation6 + $0x254] sm:$0xff]
    %v558 = vld [vmem:[#allocation6 + $0x25c] sm:$0xff]
    %v559 = vld [vmem:[#allocation6 + $0x264] sm:$0xf]
    %v560 = vld [vmem:[#allocation6 + $0x268] sm:$0xff]
    %v561 = vld [vmem:[#allocation6 + $0x270] sm:$0xff]
    %v562 = vld [vmem:[#allocation6 + $0x278] sm:$0xff]
    %v563 = vld [vmem:[#allocation6 + $0x280] sm:$0xf]
    %v564 = vld [vmem:[#allocation6 + $0x284] sm:$0xff]
    %v565 = vld [vmem:[#allocation6 + $0x28c] sm:$0xff]
    %v566 = vld [vmem:[#allocation6 + $0x294] sm:$0xff]
    %v567 = vld [vmem:[#allocation6 + $0x29c] sm:$0xf]
    %v568 = vld [vmem:[#allocation6 + $0x2a0] sm:$0xff]
    %v569 = vld [vmem:[#allocation6 + $0x2a8] sm:$0xff]
    %v570 = vld [vmem:[#allocation6 + $0x2b0] sm:$0xff]
    %v571 = vld [vmem:[#allocation6 + $0x2b8] sm:$0xf]
    %v572 = vld [vmem:[#allocation6 + $0x2bc] sm:$0xff]
    %v573 = vld [vmem:[#allocation6 + $0x2c4] sm:$0xff]
    %v574 = vld [vmem:[#allocation6 + $0x2cc] sm:$0xff]
    %v575 = vld [vmem:[#allocation6 + $0x2d4] sm:$0xf]
    %v576 = vld [vmem:[#allocation6 + $0x2d8] sm:$0xff]
    %v577 = vld [vmem:[#allocation6 + $0x2e0] sm:$0xff]
    %v578 = vld [vmem:[#allocation6 + $0x2e8] sm:$0xff]
    %v579 = vld [vmem:[#allocation6 + $0x2f0] sm:$0xf]
    %v580 = vld [vmem:[#allocation6 + $0x2f4] sm:$0xff]
    %v581 = vld [vmem:[#allocation6 + $0x2fc] sm:$0xff]
    %v582 = vld [vmem:[#allocation6 + $0x304] sm:$0xff]
    %v583 = vld [vmem:[#allocation6 + $0x30c] sm:$0xf]
    %v584 = vld [vmem:[#allocation6 + $0x310] sm:$0xff]
    %v585 = vld [vmem:[#allocation6 + $0x318] sm:$0xff]
    %v586 = vld [vmem:[#allocation6 + $0x320] sm:$0xff]
    %v587 = vld [vmem:[#allocation6 + $0x328] sm:$0xf]
    %v588 = vld [vmem:[#allocation6 + $0x32c] sm:$0xff]
    %v589 = vld [vmem:[#allocation6 + $0x334] sm:$0xff]
    %v590 = vld [vmem:[#allocation6 + $0x33c] sm:$0xff]
    %v591 = vld [vmem:[#allocation6 + $0x344] sm:$0xf]
    %v592 = vld [vmem:[#allocation6 + $0x348] sm:$0xff]
    %v593 = vld [vmem:[#allocation6 + $0x350] sm:$0xff]
    %v594 = vld [vmem:[#allocation6 + $0x358] sm:$0xff]
    %v595 = vld [vmem:[#allocation6 + $0x360] sm:$0xf]
    %v596 = vld [vmem:[#allocation6 + $0x364] sm:$0xff]
    %v597 = vld [vmem:[#allocation6 + $0x36c] sm:$0xff]
    %v598 = vld [vmem:[#allocation6 + $0x374] sm:$0xff]
    %v599 = vld [vmem:[#allocation6 + $0x37c] sm:$0xf]
    %v600 = vld [vmem:[%s7] sm:$0x7]
    %v602 = vperm.slane %v600, 0
    %v603 = vperm.slane %v600, 1
    %v604 = vperm.slane %v600, 2
    %v608 = vpack.c.bf16 0.0, 0.0
    %v737 = vunpack.c.l.b16 %v472
    %v738 = vunpack.c.h.b16 %v472
    %v739 = vunpack.c.l.b16 %v473
    %v740 = vunpack.c.h.b16 %v473
    %v741 = vunpack.c.l.b16 %v474
    %v742 = vunpack.c.h.b16 %v474
    %v743 = vunpack.c.l.b16 %v475
    %v744 = vunpack.c.l.b16 %v476
    %v745 = vunpack.c.h.b16 %v476
    %v746 = vunpack.c.l.b16 %v477
    %v747 = vunpack.c.h.b16 %v477
    %v748 = vunpack.c.l.b16 %v478
    %v749 = vunpack.c.h.b16 %v478
    %v750 = vunpack.c.l.b16 %v479
    %v751 = vunpack.c.l.b16 %v480
    %v752 = vunpack.c.h.b16 %v480
    %v753 = vunpack.c.l.b16 %v481
    %v754 = vunpack.c.h.b16 %v481
    %v755 = vunpack.c.l.b16 %v482
    %v756 = vunpack.c.h.b16 %v482
    %v757 = vunpack.c.l.b16 %v483
    %v758 = vunpack.c.l.b16 %v484
    %v759 = vunpack.c.h.b16 %v484
    %v760 = vunpack.c.l.b16 %v485
    %v761 = vunpack.c.h.b16 %v485
    %v762 = vunpack.c.l.b16 %v486
    %v763 = vunpack.c.h.b16 %v486
    %v764 = vunpack.c.l.b16 %v487
    %v765 = vunpack.c.l.b16 %v488
    %v766 = vunpack.c.h.b16 %v488
    %v767 = vunpack.c.l.b16 %v489
    %v768 = vunpack.c.h.b16 %v489
    %v769 = vunpack.c.l.b16 %v490
    %v770 = vunpack.c.h.b16 %v490
    %v771 = vunpack.c.l.b16 %v491
    %v772 = vunpack.c.l.b16 %v492
    %v773 = vunpack.c.h.b16 %v492
    %v774 = vunpack.c.l.b16 %v493
    %v775 = vunpack.c.h.b16 %v493
    %v776 = vunpack.c.l.b16 %v494
    %v777 = vunpack.c.h.b16 %v494
    %v778 = vunpack.c.l.b16 %v495
    %v779 = vunpack.c.l.b16 %v496
    %v780 = vunpack.c.h.b16 %v496
    %v781 = vunpack.c.l.b16 %v497
    %v782 = vunpack.c.h.b16 %v497
    %v783 = vunpack.c.l.b16 %v498
    %v784 = vunpack.c.h.b16 %v498
    %v785 = vunpack.c.l.b16 %v499
    %v786 = vunpack.c.l.b16 %v500
    %v787 = vunpack.c.h.b16 %v500
    %v788 = vunpack.c.l.b16 %v501
    %v789 = vunpack.c.h.b16 %v501
    %v790 = vunpack.c.l.b16 %v502
    %v791 = vunpack.c.h.b16 %v502
    %v792 = vunpack.c.l.b16 %v503
    %v793 = vunpack.c.l.b16 %v504
    %v794 = vunpack.c.h.b16 %v504
    %v795 = vunpack.c.l.b16 %v505
    %v796 = vunpack.c.h.b16 %v505
    %v797 = vunpack.c.l.b16 %v506
    %v798 = vunpack.c.h.b16 %v506
    %v799 = vunpack.c.l.b16 %v507
    %v800 = vunpack.c.l.b16 %v508
    %v801 = vunpack.c.h.b16 %v508
    %v802 = vunpack.c.l.b16 %v509
    %v803 = vunpack.c.h.b16 %v509
    %v804 = vunpack.c.l.b16 %v510
    %v805 = vunpack.c.h.b16 %v510
    %v806 = vunpack.c.l.b16 %v511
    %v807 = vunpack.c.l.b16 %v512
    %v808 = vunpack.c.h.b16 %v512
    %v809 = vunpack.c.l.b16 %v513
    %v810 = vunpack.c.h.b16 %v513
    %v811 = vunpack.c.l.b16 %v514
    %v812 = vunpack.c.h.b16 %v514
    %v813 = vunpack.c.l.b16 %v515
    %v814 = vunpack.c.l.b16 %v516
    %v815 = vunpack.c.h.b16 %v516
    %v816 = vunpack.c.l.b16 %v517
    %v817 = vunpack.c.h.b16 %v517
    %v818 = vunpack.c.l.b16 %v518
    %v819 = vunpack.c.h.b16 %v518
    %v820 = vunpack.c.l.b16 %v519
    %v821 = vunpack.c.l.b16 %v520
    %v822 = vunpack.c.h.b16 %v520
    %v823 = vunpack.c.l.b16 %v521
    %v824 = vunpack.c.h.b16 %v521
    %v825 = vunpack.c.l.b16 %v522
    %v826 = vunpack.c.h.b16 %v522
    %v827 = vunpack.c.l.b16 %v523
    %v828 = vunpack.c.l.b16 %v524
    %v829 = vunpack.c.h.b16 %v524
    %v830 = vunpack.c.l.b16 %v525
    %v831 = vunpack.c.h.b16 %v525
    %v832 = vunpack.c.l.b16 %v526
    %v833 = vunpack.c.h.b16 %v526
    %v834 = vunpack.c.l.b16 %v527
    %v835 = vunpack.c.l.b16 %v528
    %v836 = vunpack.c.h.b16 %v528
    %v837 = vunpack.c.l.b16 %v529
    %v838 = vunpack.c.h.b16 %v529
    %v839 = vunpack.c.l.b16 %v530
    %v840 = vunpack.c.h.b16 %v530
    %v841 = vunpack.c.l.b16 %v531
    %v842 = vunpack.c.l.b16 %v532
    %v843 = vunpack.c.h.b16 %v532
    %v844 = vunpack.c.l.b16 %v533
    %v845 = vunpack.c.h.b16 %v533
    %v846 = vunpack.c.l.b16 %v534
    %v847 = vunpack.c.h.b16 %v534
    %v848 = vunpack.c.l.b16 %v535
    %v849 = vunpack.c.l.b16 %v536
    %v850 = vunpack.c.h.b16 %v536
    %v851 = vunpack.c.l.b16 %v537
    %v852 = vunpack.c.h.b16 %v537
    %v853 = vunpack.c.l.b16 %v538
    %v854 = vunpack.c.h.b16 %v538
    %v855 = vunpack.c.l.b16 %v539
    %v856 = vunpack.c.l.b16 %v540
    %v857 = vunpack.c.h.b16 %v540
    %v858 = vunpack.c.l.b16 %v541
    %v859 = vunpack.c.h.b16 %v541
    %v860 = vunpack.c.l.b16 %v542
    %v861 = vunpack.c.h.b16 %v542
    %v862 = vunpack.c.l.b16 %v543
    %v863 = vunpack.c.l.b16 %v544
    %v864 = vunpack.c.h.b16 %v544
    %v865 = vunpack.c.l.b16 %v545
    %v866 = vunpack.c.h.b16 %v545
    %v867 = vunpack.c.l.b16 %v546
    %v868 = vunpack.c.h.b16 %v546
    %v869 = vunpack.c.l.b16 %v547
    %v870 = vunpack.c.l.b16 %v548
    %v871 = vunpack.c.h.b16 %v548
    %v872 = vunpack.c.l.b16 %v549
    %v873 = vunpack.c.h.b16 %v549
    %v874 = vunpack.c.l.b16 %v550
    %v875 = vunpack.c.h.b16 %v550
    %v876 = vunpack.c.l.b16 %v551
    %v877 = vunpack.c.l.b16 %v552
    %v878 = vunpack.c.h.b16 %v552
    %v879 = vunpack.c.l.b16 %v553
    %v880 = vunpack.c.h.b16 %v553
    %v881 = vunpack.c.l.b16 %v554
    %v882 = vunpack.c.h.b16 %v554
    %v883 = vunpack.c.l.b16 %v555
    %v884 = vunpack.c.l.b16 %v556
    %v885 = vunpack.c.h.b16 %v556
    %v886 = vunpack.c.l.b16 %v557
    %v887 = vunpack.c.h.b16 %v557
    %v888 = vunpack.c.l.b16 %v558
    %v889 = vunpack.c.h.b16 %v558
    %v890 = vunpack.c.l.b16 %v559
    %v891 = vunpack.c.l.b16 %v560
    %v892 = vunpack.c.h.b16 %v560
    %v893 = vunpack.c.l.b16 %v561
    %v894 = vunpack.c.h.b16 %v561
    %v895 = vunpack.c.l.b16 %v562
    %v896 = vunpack.c.h.b16 %v562
    %v897 = vunpack.c.l.b16 %v563
    %v898 = vunpack.c.l.b16 %v564
    %v899 = vunpack.c.h.b16 %v564
    %v900 = vunpack.c.l.b16 %v565
    %v901 = vunpack.c.h.b16 %v565
    %v902 = vunpack.c.l.b16 %v566
    %v903 = vunpack.c.h.b16 %v566
    %v904 = vunpack.c.l.b16 %v567
    %v905 = vunpack.c.l.b16 %v568
    %v906 = vunpack.c.h.b16 %v568
    %v907 = vunpack.c.l.b16 %v569
    %v908 = vunpack.c.h.b16 %v569
    %v909 = vunpack.c.l.b16 %v570
    %v910 = vunpack.c.h.b16 %v570
    %v911 = vunpack.c.l.b16 %v571
    %v912 = vunpack.c.l.b16 %v572
    %v913 = vunpack.c.h.b16 %v572
    %v914 = vunpack.c.l.b16 %v573
    %v915 = vunpack.c.h.b16 %v573
    %v916 = vunpack.c.l.b16 %v574
    %v917 = vunpack.c.h.b16 %v574
    %v918 = vunpack.c.l.b16 %v575
    %v919 = vunpack.c.l.b16 %v576
    %v920 = vunpack.c.h.b16 %v576
    %v921 = vunpack.c.l.b16 %v577
    %v922 = vunpack.c.h.b16 %v577
    %v923 = vunpack.c.l.b16 %v578
    %v924 = vunpack.c.h.b16 %v578
    %v925 = vunpack.c.l.b16 %v579
    %v926 = vunpack.c.l.b16 %v580
    %v927 = vunpack.c.h.b16 %v580
    %v928 = vunpack.c.l.b16 %v581
    %v929 = vunpack.c.h.b16 %v581
    %v930 = vunpack.c.l.b16 %v582
    %v931 = vunpack.c.h.b16 %v582
    %v932 = vunpack.c.l.b16 %v583
    %v933 = vunpack.c.l.b16 %v584
    %v934 = vunpack.c.h.b16 %v584
    %v935 = vunpack.c.l.b16 %v585
    %v936 = vunpack.c.h.b16 %v585
    %v937 = vunpack.c.l.b16 %v586
    %v938 = vunpack.c.h.b16 %v586
    %v939 = vunpack.c.l.b16 %v587
    %v940 = vunpack.c.l.b16 %v588
    %v941 = vunpack.c.h.b16 %v588
    %v942 = vunpack.c.l.b16 %v589
    %v943 = vunpack.c.h.b16 %v589
    %v944 = vunpack.c.l.b16 %v590
    %v945 = vunpack.c.h.b16 %v590
    %v946 = vunpack.c.l.b16 %v591
    %v947 = vunpack.c.l.b16 %v592
    %v948 = vunpack.c.h.b16 %v592
    %v949 = vunpack.c.l.b16 %v593
    %v950 = vunpack.c.h.b16 %v593
    %v951 = vunpack.c.l.b16 %v594
    %v952 = vunpack.c.h.b16 %v594
    %v953 = vunpack.c.l.b16 %v595
    %v954 = vunpack.c.l.b16 %v596
    %v955 = vunpack.c.h.b16 %v596
    %v956 = vunpack.c.l.b16 %v597
    %v957 = vunpack.c.h.b16 %v597
    %v958 = vunpack.c.l.b16 %v598
    %v959 = vunpack.c.h.b16 %v598
    %v960 = vunpack.c.l.b16 %v599
    %v961 = vpack.c.b16 %v744, %v737
    %v962 = vpack.c.b16 %v745, %v738
    %v963 = vpack.c.b16 %v746, %v739
    %v964 = vpack.c.b16 %v747, %v740
    %v965 = vpack.c.b16 %v748, %v741
    %v966 = vpack.c.b16 %v749, %v742
    %v967 = vpack.c.b16 %v750, %v743
    %v968 = vpack.c.b16 %v758, %v751
    %v969 = vpack.c.b16 %v759, %v752
    %v970 = vpack.c.b16 %v760, %v753
    %v971 = vpack.c.b16 %v761, %v754
    %v972 = vpack.c.b16 %v762, %v755
    %v973 = vpack.c.b16 %v763, %v756
    %v974 = vpack.c.b16 %v764, %v757
    %v975 = vpack.c.b16 %v772, %v765
    %v976 = vpack.c.b16 %v773, %v766
    %v977 = vpack.c.b16 %v774, %v767
    %v978 = vpack.c.b16 %v775, %v768
    %v979 = vpack.c.b16 %v776, %v769
    %v980 = vpack.c.b16 %v777, %v770
    %v981 = vpack.c.b16 %v778, %v771
    %v982 = vpack.c.b16 %v786, %v779
    %v983 = vpack.c.b16 %v787, %v780
    %v984 = vpack.c.b16 %v788, %v781
    %v985 = vpack.c.b16 %v789, %v782
    %v986 = vpack.c.b16 %v790, %v783
    %v987 = vpack.c.b16 %v791, %v784
    %v988 = vpack.c.b16 %v792, %v785
    %v989 = vpack.c.b16 %v800, %v793
    %v990 = vpack.c.b16 %v801, %v794
    %v991 = vpack.c.b16 %v802, %v795
    %v992 = vpack.c.b16 %v803, %v796
    %v993 = vpack.c.b16 %v804, %v797
    %v994 = vpack.c.b16 %v805, %v798
    %v995 = vpack.c.b16 %v806, %v799
    %v996 = vpack.c.b16 %v814, %v807
    %v997 = vpack.c.b16 %v815, %v808
    %v998 = vpack.c.b16 %v816, %v809
    %v999 = vpack.c.b16 %v817, %v810
    %v1000 = vpack.c.b16 %v818, %v811
    %v1001 = vpack.c.b16 %v819, %v812
    %v1002 = vpack.c.b16 %v820, %v813
    %v1003 = vpack.c.b16 %v828, %v821
    %v1004 = vpack.c.b16 %v829, %v822
    %v1005 = vpack.c.b16 %v830, %v823
    %v1006 = vpack.c.b16 %v831, %v824
    %v1007 = vpack.c.b16 %v832, %v825
    %v1008 = vpack.c.b16 %v833, %v826
    %v1009 = vpack.c.b16 %v834, %v827
    %v1010 = vpack.c.b16 %v842, %v835
    %v1011 = vpack.c.b16 %v843, %v836
    %v1012 = vpack.c.b16 %v844, %v837
    %v1013 = vpack.c.b16 %v845, %v838
    %v1014 = vpack.c.b16 %v846, %v839
    %v1015 = vpack.c.b16 %v847, %v840
    %v1016 = vpack.c.b16 %v848, %v841
    %v1017 = vpack.c.b16 %v856, %v849
    %v1018 = vpack.c.b16 %v857, %v850
    %v1019 = vpack.c.b16 %v858, %v851
    %v1020 = vpack.c.b16 %v859, %v852
    %v1021 = vpack.c.b16 %v860, %v853
    %v1022 = vpack.c.b16 %v861, %v854
    %v1023 = vpack.c.b16 %v862, %v855
    %v1024 = vpack.c.b16 %v870, %v863
    %v1025 = vpack.c.b16 %v871, %v864
    %v1026 = vpack.c.b16 %v872, %v865
    %v1027 = vpack.c.b16 %v873, %v866
    %v1028 = vpack.c.b16 %v874, %v867
    %v1029 = vpack.c.b16 %v875, %v868
    %v1030 = vpack.c.b16 %v876, %v869
    %v1031 = vpack.c.b16 %v884, %v877
    %v1032 = vpack.c.b16 %v885, %v878
    %v1033 = vpack.c.b16 %v886, %v879
    %v1034 = vpack.c.b16 %v887, %v880
    %v1035 = vpack.c.b16 %v888, %v881
    %v1036 = vpack.c.b16 %v889, %v882
    %v1037 = vpack.c.b16 %v890, %v883
    %v1038 = vpack.c.b16 %v898, %v891
    %v1039 = vpack.c.b16 %v899, %v892
    %v1040 = vpack.c.b16 %v900, %v893
    %v1041 = vpack.c.b16 %v901, %v894
    %v1042 = vpack.c.b16 %v902, %v895
    %v1043 = vpack.c.b16 %v903, %v896
    %v1044 = vpack.c.b16 %v904, %v897
    %v1045 = vpack.c.b16 %v912, %v905
    %v1046 = vpack.c.b16 %v913, %v906
    %v1047 = vpack.c.b16 %v914, %v907
    %v1048 = vpack.c.b16 %v915, %v908
    %v1049 = vpack.c.b16 %v916, %v909
    %v1050 = vpack.c.b16 %v917, %v910
    %v1051 = vpack.c.b16 %v918, %v911
    %v1052 = vpack.c.b16 %v926, %v919
    %v1053 = vpack.c.b16 %v927, %v920
    %v1054 = vpack.c.b16 %v928, %v921
    %v1055 = vpack.c.b16 %v929, %v922
    %v1056 = vpack.c.b16 %v930, %v923
    %v1057 = vpack.c.b16 %v931, %v924
    %v1058 = vpack.c.b16 %v932, %v925
    %v1059 = vpack.c.b16 %v940, %v933
    %v1060 = vpack.c.b16 %v941, %v934
    %v1061 = vpack.c.b16 %v942, %v935
    %v1062 = vpack.c.b16 %v943, %v936
    %v1063 = vpack.c.b16 %v944, %v937
    %v1064 = vpack.c.b16 %v945, %v938
    %v1065 = vpack.c.b16 %v946, %v939
    %v1066 = vpack.c.b16 %v954, %v947
    %v1067 = vpack.c.b16 %v955, %v948
    %v1068 = vpack.c.b16 %v956, %v949
    %v1069 = vpack.c.b16 %v957, %v950
    %v1070 = vpack.c.b16 %v958, %v951
    %v1071 = vpack.c.b16 %v959, %v952
    %v1072 = vpack.c.b16 %v960, %v953
    %1185 = vmatpush.bf16.msra.mxu0 %v1010
    %1186 = vmatpush.bf16.msra.mxu0 %v1003
    %1187 = vmatpush.bf16.msra.mxu0 %v996
    %1188 = vmatpush.bf16.msra.mxu0 %v989
    %1189 = vmatpush.bf16.msra.mxu0 %v982
    %1190 = vmatpush.bf16.msra.mxu0 %v975
    %1191 = vmatpush.bf16.msra.mxu0 %v968
    %1192 = vmatpush.bf16.msra.mxu0 %v961
    %1193 = vmatmul.bf16.gmra.mxu0 %v608
    %v1194 = vpop.f32.mrf.mxu0
    %v1195 = vadd.f32 0.0, %v1194
    %v1196 = vpop.f32.mrf.mxu0
    %1197 = vdwg.mxu0
    %1198 = vmatpush.bf16.msra.mxu0 %v1066
    %1199 = vmatpush.bf16.msra.mxu0 %v1059
    %1200 = vmatpush.bf16.msra.mxu0 %v1052
    %1201 = vmatpush.bf16.msra.mxu0 %v1045
    %1202 = vmatpush.bf16.msra.mxu0 %v1038
    %1203 = vmatpush.bf16.msra.mxu0 %v1031
    %1204 = vmatpush.bf16.msra.mxu0 %v1024
    %1205 = vmatpush.bf16.msra.mxu0 %v1017
    %1206 = vmatmul.bf16.gmra.mxu0 %v608
    %v1207 = vpop.f32.mrf.mxu0
    %v1208 = vadd.f32 %v1195, %v1207
    %v1209 = vpop.f32.mrf.mxu0
    %1210 = vdwg.mxu0
    %1211 = vmatpush.bf16.msra.mxu0 %v1011
    %1212 = vmatpush.bf16.msra.mxu0 %v1004
    %1213 = vmatpush.bf16.msra.mxu0 %v997
    %1214 = vmatpush.bf16.msra.mxu0 %v990
    %1215 = vmatpush.bf16.msra.mxu0 %v983
    %1216 = vmatpush.bf16.msra.mxu0 %v976
    %1217 = vmatpush.bf16.msra.mxu0 %v969
    %1218 = vmatpush.bf16.msra.mxu0 %v962
    %1219 = vmatmul.bf16.gmra.mxu0 %v608
    %v1220 = vpop.f32.mrf.mxu0
    %v1221 = vadd.f32 0.0, %v1220
    %v1222 = vpop.f32.mrf.mxu0
    %1223 = vdwg.mxu0
    %1224 = vmatpush.bf16.msra.mxu0 %v1067
    %1225 = vmatpush.bf16.msra.mxu0 %v1060
    %1226 = vmatpush.bf16.msra.mxu0 %v1053
    %1227 = vmatpush.bf16.msra.mxu0 %v1046
    %1228 = vmatpush.bf16.msra.mxu0 %v1039
    %1229 = vmatpush.bf16.msra.mxu0 %v1032
    %1230 = vmatpush.bf16.msra.mxu0 %v1025
    %1231 = vmatpush.bf16.msra.mxu0 %v1018
    %1232 = vmatmul.bf16.gmra.mxu0 %v608
    %v1233 = vpop.f32.mrf.mxu0
    %v1234 = vadd.f32 %v1221, %v1233
    %v1235 = vpop.f32.mrf.mxu0
    %1236 = vdwg.mxu0
    %1237 = vmatpush.bf16.msra.mxu0 %v1012
    %1238 = vmatpush.bf16.msra.mxu0 %v1005
    %1239 = vmatpush.bf16.msra.mxu0 %v998
    %1240 = vmatpush.bf16.msra.mxu0 %v991
    %1241 = vmatpush.bf16.msra.mxu0 %v984
    %1242 = vmatpush.bf16.msra.mxu0 %v977
    %1243 = vmatpush.bf16.msra.mxu0 %v970
    %1244 = vmatpush.bf16.msra.mxu0 %v963
    %1245 = vmatmul.bf16.gmra.mxu0 %v608
    %v1246 = vpop.f32.mrf.mxu0
    %v1247 = vadd.f32 0.0, %v1246
    %v1248 = vpop.f32.mrf.mxu0
    %1249 = vdwg.mxu0
    %1250 = vmatpush.bf16.msra.mxu0 %v1068
    %1251 = vmatpush.bf16.msra.mxu0 %v1061
    %1252 = vmatpush.bf16.msra.mxu0 %v1054
    %1253 = vmatpush.bf16.msra.mxu0 %v1047
    %1254 = vmatpush.bf16.msra.mxu0 %v1040
    %1255 = vmatpush.bf16.msra.mxu0 %v1033
    %1256 = vmatpush.bf16.msra.mxu0 %v1026
    %1257 = vmatpush.bf16.msra.mxu0 %v1019
    %1258 = vmatmul.bf16.gmra.mxu0 %v608
    %v1259 = vpop.f32.mrf.mxu0
    %v1260 = vadd.f32 %v1247, %v1259
    %v1261 = vpop.f32.mrf.mxu0
    %1262 = vdwg.mxu0
    %1263 = vmatpush.bf16.msra.mxu0 %v1013
    %1264 = vmatpush.bf16.msra.mxu0 %v1006
    %1265 = vmatpush.bf16.msra.mxu0 %v999
    %1266 = vmatpush.bf16.msra.mxu0 %v992
    %1267 = vmatpush.bf16.msra.mxu0 %v985
    %1268 = vmatpush.bf16.msra.mxu0 %v978
    %1269 = vmatpush.bf16.msra.mxu0 %v971
    %1270 = vmatpush.bf16.msra.mxu0 %v964
    %1271 = vmatmul.bf16.gmra.mxu0 %v608
    %v1272 = vpop.f32.mrf.mxu0
    %v1273 = vadd.f32 0.0, %v1272
    %v1274 = vpop.f32.mrf.mxu0
    %1275 = vdwg.mxu0
    %1276 = vmatpush.bf16.msra.mxu0 %v1069
    %1277 = vmatpush.bf16.msra.mxu0 %v1062
    %1278 = vmatpush.bf16.msra.mxu0 %v1055
    %1279 = vmatpush.bf16.msra.mxu0 %v1048
    %1280 = vmatpush.bf16.msra.mxu0 %v1041
    %1281 = vmatpush.bf16.msra.mxu0 %v1034
    %1282 = vmatpush.bf16.msra.mxu0 %v1027
    %1283 = vmatpush.bf16.msra.mxu0 %v1020
    %1284 = vmatmul.bf16.gmra.mxu0 %v608
    %v1285 = vpop.f32.mrf.mxu0
    %v1286 = vadd.f32 %v1273, %v1285
    %v1287 = vpop.f32.mrf.mxu0
    %1288 = vdwg.mxu0
    %1289 = vmatpush.bf16.msra.mxu0 %v1014
    %1290 = vmatpush.bf16.msra.mxu0 %v1007
    %1291 = vmatpush.bf16.msra.mxu0 %v1000
    %1292 = vmatpush.bf16.msra.mxu0 %v993
    %1293 = vmatpush.bf16.msra.mxu0 %v986
    %1294 = vmatpush.bf16.msra.mxu0 %v979
    %1295 = vmatpush.bf16.msra.mxu0 %v972
    %1296 = vmatpush.bf16.msra.mxu0 %v965
    %1297 = vmatmul.bf16.gmra.mxu0 %v608
    %v1298 = vpop.f32.mrf.mxu0
    %v1299 = vadd.f32 0.0, %v1298
    %v1300 = vpop.f32.mrf.mxu0
    %1301 = vdwg.mxu0
    %1302 = vmatpush.bf16.msra.mxu0 %v1070
    %1303 = vmatpush.bf16.msra.mxu0 %v1063
    %1304 = vmatpush.bf16.msra.mxu0 %v1056
    %1305 = vmatpush.bf16.msra.mxu0 %v1049
    %1306 = vmatpush.bf16.msra.mxu0 %v1042
    %1307 = vmatpush.bf16.msra.mxu0 %v1035
    %1308 = vmatpush.bf16.msra.mxu0 %v1028
    %1309 = vmatpush.bf16.msra.mxu0 %v1021
    %1310 = vmatmul.bf16.gmra.mxu0 %v608
    %v1311 = vpop.f32.mrf.mxu0
    %v1312 = vadd.f32 %v1299, %v1311
    %v1313 = vpop.f32.mrf.mxu0
    %1314 = vdwg.mxu0
    %1315 = vmatpush.bf16.msra.mxu0 %v1015
    %1316 = vmatpush.bf16.msra.mxu0 %v1008
    %1317 = vmatpush.bf16.msra.mxu0 %v1001
    %1318 = vmatpush.bf16.msra.mxu0 %v994
    %1319 = vmatpush.bf16.msra.mxu0 %v987
    %1320 = vmatpush.bf16.msra.mxu0 %v980
    %1321 = vmatpush.bf16.msra.mxu0 %v973
    %1322 = vmatpush.bf16.msra.mxu0 %v966
    %1323 = vmatmul.bf16.gmra.mxu0 %v608
    %v1324 = vpop.f32.mrf.mxu0
    %v1325 = vadd.f32 0.0, %v1324
    %v1326 = vpop.f32.mrf.mxu0
    %1327 = vdwg.mxu0
    %1328 = vmatpush.bf16.msra.mxu0 %v1071
    %1329 = vmatpush.bf16.msra.mxu0 %v1064
    %1330 = vmatpush.bf16.msra.mxu0 %v1057
    %1331 = vmatpush.bf16.msra.mxu0 %v1050
    %1332 = vmatpush.bf16.msra.mxu0 %v1043
    %1333 = vmatpush.bf16.msra.mxu0 %v1036
    %1334 = vmatpush.bf16.msra.mxu0 %v1029
    %1335 = vmatpush.bf16.msra.mxu0 %v1022
    %1336 = vmatmul.bf16.gmra.mxu0 %v608
    %v1337 = vpop.f32.mrf.mxu0
    %v1338 = vadd.f32 %v1325, %v1337
    %v1339 = vpop.f32.mrf.mxu0
    %1340 = vdwg.mxu0
    %1341 = vmatpush.bf16.msra.mxu0 %v1016
    %1342 = vmatpush.bf16.msra.mxu0 %v1009
    %1343 = vmatpush.bf16.msra.mxu0 %v1002
    %1344 = vmatpush.bf16.msra.mxu0 %v995
    %1345 = vmatpush.bf16.msra.mxu0 %v988
    %1346 = vmatpush.bf16.msra.mxu0 %v981
    %1347 = vmatpush.bf16.msra.mxu0 %v974
    %1348 = vmatpush.bf16.msra.mxu0 %v967
    %1349 = vmatmul.bf16.gmra.mxu0 %v608
    %v1350 = vpop.f32.mrf.mxu0
    %v1351 = vadd.f32 0.0, %v1350
    %v1352 = vpop.f32.mrf.mxu0
    %1353 = vdwg.mxu0
    %1354 = vmatpush.bf16.msra.mxu0 %v1072
    %1355 = vmatpush.bf16.msra.mxu0 %v1065
    %1356 = vmatpush.bf16.msra.mxu0 %v1058
    %1357 = vmatpush.bf16.msra.mxu0 %v1051
    %1358 = vmatpush.bf16.msra.mxu0 %v1044
    %1359 = vmatpush.bf16.msra.mxu0 %v1037
    %1360 = vmatpush.bf16.msra.mxu0 %v1030
    %1361 = vmatpush.bf16.msra.mxu0 %v1023
    %1362 = vmatmul.bf16.gmra.mxu0 %v608
    %v1363 = vpop.f32.mrf.mxu0
    %v1364 = vadd.f32 %v1351, %v1363
    %v1365 = vpop.f32.mrf.mxu0
    %1366 = vdwg.mxu0
    %v1367 = vadd.f32 %v222, %v1208
    %v1368 = vadd.f32 %v251, %v1234
    %v1369 = vadd.f32 %v280, %v1260
    %v1370 = vadd.f32 %v309, %v1286
    %v1371 = vxor.u32 %v1367, 2147483648
    %v1372 = vmul.f32 %v1371, 1.442695
    %v1373 = vpow.pop %v1372
    %v1374 = vadd.f32 %v1373, 1.0
    %v1375 = vrcp.pop %v1374
    %v1376 = vmul.f32 %v1374, %v1375
    %v1377 = vsub.f32 1.0, %v1376
    %v1378 = vmul.f32 %v1375, %v1377
    %v1379 = vadd.f32 %v1375, %v1378
    %vm1380 = vweird.f32 %v1374
    %vm1381 = vweird.f32 %v1375
    %vm1382 = vmor %vm1380, %vm1381
    %v1383 = vsel %vm1382, %v1375, %v1379
    %v1384 = vand.u32 2147483647, %v1374
    %vm1385 = vcmp.eq.f32.partialorder %v1384, 8.507059e+37
    %v1386 = vand.u32 %v1374, 2147483648
    %v1387 = vor.u32 1.1754944e-38, %v1386
    %v1388 = vsel %vm1385, %v1387, %v1383
    %v1389 = vmul.f32 1.0, %v1388
    %v1390 = vxor.u32 %v1368, 2147483648
    %v1391 = vmul.f32 %v1390, 1.442695
    %v1392 = vpow.pop %v1391
    %v1393 = vadd.f32 %v1392, 1.0
    %v1394 = vrcp.pop %v1393
    %v1395 = vmul.f32 %v1393, %v1394
    %v1396 = vsub.f32 1.0, %v1395
    %v1397 = vmul.f32 %v1394, %v1396
    %v1398 = vadd.f32 %v1394, %v1397
    %vm1399 = vweird.f32 %v1393
    %vm1400 = vweird.f32 %v1394
    %vm1401 = vmor %vm1399, %vm1400
    %v1402 = vsel %vm1401, %v1394, %v1398
    %v1403 = vand.u32 2147483647, %v1393
    %vm1404 = vcmp.eq.f32.partialorder %v1403, 8.507059e+37
    %v1405 = vand.u32 %v1393, 2147483648
    %v1406 = vor.u32 1.1754944e-38, %v1405
    %v1407 = vsel %vm1404, %v1406, %v1402
    %v1408 = vmul.f32 1.0, %v1407
    %v1409 = vtanh.pop %v1369
    %v1410 = vxor.u32 %v1370, 2147483648
    %v1411 = vmul.f32 %v1410, 1.442695
    %v1412 = vpow.pop %v1411
    %v1413 = vadd.f32 %v1412, 1.0
    %v1414 = vrcp.pop %v1413
    %v1415 = vmul.f32 %v1413, %v1414
    %v1416 = vsub.f32 1.0, %v1415
    %v1417 = vmul.f32 %v1414, %v1416
    %v1418 = vadd.f32 %v1414, %v1417
    %vm1419 = vweird.f32 %v1413
    %vm1420 = vweird.f32 %v1414
    %vm1421 = vmor %vm1419, %vm1420
    %v1422 = vsel %vm1421, %v1414, %v1418
    %v1423 = vand.u32 2147483647, %v1413
    %vm1424 = vcmp.eq.f32.partialorder %v1423, 8.507059e+37
    %v1425 = vand.u32 %v1413, 2147483648
    %v1426 = vor.u32 1.1754944e-38, %v1425
    %v1427 = vsel %vm1424, %v1426, %v1422
    %v1428 = vmul.f32 1.0, %v1427
    %v1429 = vmul.f32 %v1408, 0.0
    %v1430 = vmul.f32 %v1389, %v1409
    %v1431 = vadd.f32 %v1429, %v1430
    %v1432 = vtanh.pop %v1431
    %v1433 = vmul.f32 %v1428, %v1432
    %v1434 = vadd.f32 %v1312, %v602
    %v1435 = vadd.f32 %v1338, %v603
    %v1436 = vadd.f32 %v1364, %v604
    %v1437 = vadd.f32 %v410, %v1434
    %v1438 = vxor.u32 %v1437, 2147483648
    %v1439 = vmul.f32 %v1438, 1.442695
    %v1440 = vpow.pop %v1439
    %v1441 = vadd.f32 %v1440, 1.0
    %v1442 = vrcp.pop %v1441
    %v1443 = vmul.f32 %v1441, %v1442
    %v1444 = vsub.f32 1.0, %v1443
    %v1445 = vmul.f32 %v1442, %v1444
    %v1446 = vadd.f32 %v1442, %v1445
    %vm1447 = vweird.f32 %v1441
    %vm1448 = vweird.f32 %v1442
    %vm1449 = vmor %vm1447, %vm1448
    %v1450 = vsel %vm1449, %v1442, %v1446
    %v1451 = vand.u32 2147483647, %v1441
    %vm1452 = vcmp.eq.f32.partialorder %v1451, 8.507059e+37
    %v1453 = vand.u32 %v1441, 2147483648
    %v1454 = vor.u32 1.1754944e-38, %v1453
    %v1455 = vsel %vm1452, %v1454, %v1450
    %v1456 = vmul.f32 1.0, %v1455
    %v1457 = vadd.f32 %v434, %v1435
    %v1458 = vxor.u32 %v1457, 2147483648
    %v1459 = vmul.f32 %v1458, 1.442695
    %v1460 = vpow.pop %v1459
    %v1461 = vadd.f32 %v1460, 1.0
    %v1462 = vrcp.pop %v1461
    %v1463 = vmul.f32 %v1461, %v1462
    %v1464 = vsub.f32 1.0, %v1463
    %v1465 = vmul.f32 %v1462, %v1464
    %v1466 = vadd.f32 %v1462, %v1465
    %vm1467 = vweird.f32 %v1461
    %vm1468 = vweird.f32 %v1462
    %vm1469 = vmor %vm1467, %vm1468
    %v1470 = vsel %vm1469, %v1462, %v1466
    %v1471 = vand.u32 2147483647, %v1461
    %vm1472 = vcmp.eq.f32.partialorder %v1471, 8.507059e+37
    %v1473 = vand.u32 %v1461, 2147483648
    %v1474 = vor.u32 1.1754944e-38, %v1473
    %v1475 = vsel %vm1472, %v1474, %v1470
    %v1476 = vmul.f32 1.0, %v1475
    %v1477 = vmul.f32 %v1456, %v1436
    %v1478 = vadd.f32 %v458, %v1477
    %v1479 = vtanh.pop %v1478
    %v1480 = vsub.f32 1.0, %v1476
    %v1481 = vmul.f32 %v1480, %v1479
    %v1482 = vmul.f32 %v1476, 0.0
    %v1483 = vadd.f32 %v1481, %v1482
    %v1484 = vpack.c.bf16 %v1433, %v1433
    %v1485 = vpack.c.bf16 %v1483, %v1483
    %1486 = vmatpush.bf16.msra.mxu0 %v1010
    %1487 = vmatpush.bf16.msra.mxu0 %v1003
    %1488 = vmatpush.bf16.msra.mxu0 %v996
    %1489 = vmatpush.bf16.msra.mxu0 %v989
    %1490 = vmatpush.bf16.msra.mxu0 %v982
    %1491 = vmatpush.bf16.msra.mxu0 %v975
    %1492 = vmatpush.bf16.msra.mxu0 %v968
    %1493 = vmatpush.bf16.msra.mxu0 %v961
    %1494 = vmatmul.bf16.gmra.mxu0 %v1484
    %v1495 = vpop.f32.mrf.mxu0
    %v1496 = vadd.f32 0.0, %v1495
    %v1497 = vpop.f32.mrf.mxu0
    %1498 = vdwg.mxu0
    %1499 = vmatpush.bf16.msra.mxu0 %v1066
    %1500 = vmatpush.bf16.msra.mxu0 %v1059
    %1501 = vmatpush.bf16.msra.mxu0 %v1052
    %1502 = vmatpush.bf16.msra.mxu0 %v1045
    %1503 = vmatpush.bf16.msra.mxu0 %v1038
    %1504 = vmatpush.bf16.msra.mxu0 %v1031
    %1505 = vmatpush.bf16.msra.mxu0 %v1024
    %1506 = vmatpush.bf16.msra.mxu0 %v1017
    %1507 = vmatmul.bf16.gmra.mxu0 %v1485
    %v1508 = vpop.f32.mrf.mxu0
    %v1509 = vadd.f32 %v1496, %v1508
    %v1510 = vpop.f32.mrf.mxu0
    %1511 = vdwg.mxu0
    %1512 = vmatpush.bf16.msra.mxu0 %v1011
    %1513 = vmatpush.bf16.msra.mxu0 %v1004
    %1514 = vmatpush.bf16.msra.mxu0 %v997
    %1515 = vmatpush.bf16.msra.mxu0 %v990
    %1516 = vmatpush.bf16.msra.mxu0 %v983
    %1517 = vmatpush.bf16.msra.mxu0 %v976
    %1518 = vmatpush.bf16.msra.mxu0 %v969
    %1519 = vmatpush.bf16.msra.mxu0 %v962
    %1520 = vmatmul.bf16.gmra.mxu0 %v1484
    %v1521 = vpop.f32.mrf.mxu0
    %v1522 = vadd.f32 0.0, %v1521
    %v1523 = vpop.f32.mrf.mxu0
    %1524 = vdwg.mxu0
    %1525 = vmatpush.bf16.msra.mxu0 %v1067
    %1526 = vmatpush.bf16.msra.mxu0 %v1060
    %1527 = vmatpush.bf16.msra.mxu0 %v1053
    %1528 = vmatpush.bf16.msra.mxu0 %v1046
    %1529 = vmatpush.bf16.msra.mxu0 %v1039
    %1530 = vmatpush.bf16.msra.mxu0 %v1032
    %1531 = vmatpush.bf16.msra.mxu0 %v1025
    %1532 = vmatpush.bf16.msra.mxu0 %v1018
    %1533 = vmatmul.bf16.gmra.mxu0 %v1485
    %v1534 = vpop.f32.mrf.mxu0
    %v1535 = vadd.f32 %v1522, %v1534
    %v1536 = vpop.f32.mrf.mxu0
    %1537 = vdwg.mxu0
    %1538 = vmatpush.bf16.msra.mxu0 %v1012
    %1539 = vmatpush.bf16.msra.mxu0 %v1005
    %1540 = vmatpush.bf16.msra.mxu0 %v998
    %1541 = vmatpush.bf16.msra.mxu0 %v991
    %1542 = vmatpush.bf16.msra.mxu0 %v984
    %1543 = vmatpush.bf16.msra.mxu0 %v977
    %1544 = vmatpush.bf16.msra.mxu0 %v970
    %1545 = vmatpush.bf16.msra.mxu0 %v963
    %1546 = vmatmul.bf16.gmra.mxu0 %v1484
    %v1547 = vpop.f32.mrf.mxu0
    %v1548 = vadd.f32 0.0, %v1547
    %v1549 = vpop.f32.mrf.mxu0
    %1550 = vdwg.mxu0
    %1551 = vmatpush.bf16.msra.mxu0 %v1068
    %1552 = vmatpush.bf16.msra.mxu0 %v1061
    %1553 = vmatpush.bf16.msra.mxu0 %v1054
    %1554 = vmatpush.bf16.msra.mxu0 %v1047
    %1555 = vmatpush.bf16.msra.mxu0 %v1040
    %1556 = vmatpush.bf16.msra.mxu0 %v1033
    %1557 = vmatpush.bf16.msra.mxu0 %v1026
    %1558 = vmatpush.bf16.msra.mxu0 %v1019
    %1559 = vmatmul.bf16.gmra.mxu0 %v1485
    %v1560 = vpop.f32.mrf.mxu0
    %v1561 = vadd.f32 %v1548, %v1560
    %v1562 = vpop.f32.mrf.mxu0
    %1563 = vdwg.mxu0
    %1564 = vmatpush.bf16.msra.mxu0 %v1013
    %1565 = vmatpush.bf16.msra.mxu0 %v1006
    %1566 = vmatpush.bf16.msra.mxu0 %v999
    %1567 = vmatpush.bf16.msra.mxu0 %v992
    %1568 = vmatpush.bf16.msra.mxu0 %v985
    %1569 = vmatpush.bf16.msra.mxu0 %v978
    %1570 = vmatpush.bf16.msra.mxu0 %v971
    %1571 = vmatpush.bf16.msra.mxu0 %v964
    %1572 = vmatmul.bf16.gmra.mxu0 %v1484
    %v1573 = vpop.f32.mrf.mxu0
    %v1574 = vadd.f32 0.0, %v1573
    %v1575 = vpop.f32.mrf.mxu0
    %1576 = vdwg.mxu0
    %1577 = vmatpush.bf16.msra.mxu0 %v1069
    %1578 = vmatpush.bf16.msra.mxu0 %v1062
    %1579 = vmatpush.bf16.msra.mxu0 %v1055
    %1580 = vmatpush.bf16.msra.mxu0 %v1048
    %1581 = vmatpush.bf16.msra.mxu0 %v1041
    %1582 = vmatpush.bf16.msra.mxu0 %v1034
    %1583 = vmatpush.bf16.msra.mxu0 %v1027
    %1584 = vmatpush.bf16.msra.mxu0 %v1020
    %1585 = vmatmul.bf16.gmra.mxu0 %v1485
    %v1586 = vpop.f32.mrf.mxu0
    %v1587 = vadd.f32 %v1574, %v1586
    %v1588 = vpop.f32.mrf.mxu0
    %1589 = vdwg.mxu0
    %1590 = vmatpush.bf16.msra.mxu0 %v1014
    %1591 = vmatpush.bf16.msra.mxu0 %v1007
    %1592 = vmatpush.bf16.msra.mxu0 %v1000
    %1593 = vmatpush.bf16.msra.mxu0 %v993
    %1594 = vmatpush.bf16.msra.mxu0 %v986
    %1595 = vmatpush.bf16.msra.mxu0 %v979
    %1596 = vmatpush.bf16.msra.mxu0 %v972
    %1597 = vmatpush.bf16.msra.mxu0 %v965
    %1598 = vmatmul.bf16.gmra.mxu0 %v1484
    %v1599 = vpop.f32.mrf.mxu0
    %v1600 = vadd.f32 0.0, %v1599
    %v1601 = vpop.f32.mrf.mxu0
    %1602 = vdwg.mxu0
    %1603 = vmatpush.bf16.msra.mxu0 %v1070
    %1604 = vmatpush.bf16.msra.mxu0 %v1063
    %1605 = vmatpush.bf16.msra.mxu0 %v1056
    %1606 = vmatpush.bf16.msra.mxu0 %v1049
    %1607 = vmatpush.bf16.msra.mxu0 %v1042
    %1608 = vmatpush.bf16.msra.mxu0 %v1035
    %1609 = vmatpush.bf16.msra.mxu0 %v1028
    %1610 = vmatpush.bf16.msra.mxu0 %v1021
    %1611 = vmatmul.bf16.gmra.mxu0 %v1485
    %v1612 = vpop.f32.mrf.mxu0
    %v1613 = vadd.f32 %v1600, %v1612
    %v1614 = vpop.f32.mrf.mxu0
    %1615 = vdwg.mxu0
    %1616 = vmatpush.bf16.msra.mxu0 %v1015
    %1617 = vmatpush.bf16.msra.mxu0 %v1008
    %1618 = vmatpush.bf16.msra.mxu0 %v1001
    %1619 = vmatpush.bf16.msra.mxu0 %v994
    %1620 = vmatpush.bf16.msra.mxu0 %v987
    %1621 = vmatpush.bf16.msra.mxu0 %v980
    %1622 = vmatpush.bf16.msra.mxu0 %v973
    %1623 = vmatpush.bf16.msra.mxu0 %v966
    %1624 = vmatmul.bf16.gmra.mxu0 %v1484
    %v1625 = vpop.f32.mrf.mxu0
    %v1626 = vadd.f32 0.0, %v1625
    %v1627 = vpop.f32.mrf.mxu0
    %1628 = vdwg.mxu0
    %1629 = vmatpush.bf16.msra.mxu0 %v1071
    %1630 = vmatpush.bf16.msra.mxu0 %v1064
    %1631 = vmatpush.bf16.msra.mxu0 %v1057
    %1632 = vmatpush.bf16.msra.mxu0 %v1050
    %1633 = vmatpush.bf16.msra.mxu0 %v1043
    %1634 = vmatpush.bf16.msra.mxu0 %v1036
    %1635 = vmatpush.bf16.msra.mxu0 %v1029
    %1636 = vmatpush.bf16.msra.mxu0 %v1022
    %1637 = vmatmul.bf16.gmra.mxu0 %v1485
    %v1638 = vpop.f32.mrf.mxu0
    %v1639 = vadd.f32 %v1626, %v1638
    %v1640 = vpop.f32.mrf.mxu0
    %1641 = vdwg.mxu0
    %1642 = vmatpush.bf16.msra.mxu0 %v1016
    %1643 = vmatpush.bf16.msra.mxu0 %v1009
    %1644 = vmatpush.bf16.msra.mxu0 %v1002
    %1645 = vmatpush.bf16.msra.mxu0 %v995
    %1646 = vmatpush.bf16.msra.mxu0 %v988
    %1647 = vmatpush.bf16.msra.mxu0 %v981
    %1648 = vmatpush.bf16.msra.mxu0 %v974
    %1649 = vmatpush.bf16.msra.mxu0 %v967
    %1650 = vmatmul.bf16.gmra.mxu0 %v1484
    %v1651 = vpop.f32.mrf.mxu0
    %v1652 = vadd.f32 0.0, %v1651
    %v1653 = vpop.f32.mrf.mxu0
    %1654 = vdwg.mxu0
    %1655 = vmatpush.bf16.msra.mxu0 %v1072
    %1656 = vmatpush.bf16.msra.mxu0 %v1065
    %1657 = vmatpush.bf16.msra.mxu0 %v1058
    %1658 = vmatpush.bf16.msra.mxu0 %v1051
    %1659 = vmatpush.bf16.msra.mxu0 %v1044
    %1660 = vmatpush.bf16.msra.mxu0 %v1037
    %1661 = vmatpush.bf16.msra.mxu0 %v1030
    %1662 = vmatpush.bf16.msra.mxu0 %v1023
    %1663 = vmatmul.bf16.gmra.mxu0 %v1485
    %v1664 = vpop.f32.mrf.mxu0
    %v1665 = vadd.f32 %v1652, %v1664
    %v1666 = vpop.f32.mrf.mxu0
    %1667 = vdwg.mxu0
    %v1668 = vadd.f32 %v224, %v1509
    %v1669 = vadd.f32 %v253, %v1535
    %v1670 = vadd.f32 %v282, %v1561
    %v1671 = vadd.f32 %v311, %v1587
    %v1672 = vxor.u32 %v1668, 2147483648
    %v1673 = vmul.f32 %v1672, 1.442695
    %v1674 = vpow.pop %v1673
    %v1675 = vadd.f32 %v1674, 1.0
    %v1676 = vrcp.pop %v1675
    %v1677 = vmul.f32 %v1675, %v1676
    %v1678 = vsub.f32 1.0, %v1677
    %v1679 = vmul.f32 %v1676, %v1678
    %v1680 = vadd.f32 %v1676, %v1679
    %vm1681 = vweird.f32 %v1675
    %vm1682 = vweird.f32 %v1676
    %vm1683 = vmor %vm1681, %vm1682
    %v1684 = vsel %vm1683, %v1676, %v1680
    %v1685 = vand.u32 2147483647, %v1675
    %vm1686 = vcmp.eq.f32.partialorder %v1685, 8.507059e+37
    %v1687 = vand.u32 %v1675, 2147483648
    %v1688 = vor.u32 1.1754944e-38, %v1687
    %v1689 = vsel %vm1686, %v1688, %v1684
    %v1690 = vmul.f32 1.0, %v1689
    %v1691 = vxor.u32 %v1669, 2147483648
    %v1692 = vmul.f32 %v1691, 1.442695
    %v1693 = vpow.pop %v1692
    %v1694 = vadd.f32 %v1693, 1.0
    %v1695 = vrcp.pop %v1694
    %v1696 = vmul.f32 %v1694, %v1695
    %v1697 = vsub.f32 1.0, %v1696
    %v1698 = vmul.f32 %v1695, %v1697
    %v1699 = vadd.f32 %v1695, %v1698
    %vm1700 = vweird.f32 %v1694
    %vm1701 = vweird.f32 %v1695
    %vm1702 = vmor %vm1700, %vm1701
    %v1703 = vsel %vm1702, %v1695, %v1699
    %v1704 = vand.u32 2147483647, %v1694
    %vm1705 = vcmp.eq.f32.partialorder %v1704, 8.507059e+37
    %v1706 = vand.u32 %v1694, 2147483648
    %v1707 = vor.u32 1.1754944e-38, %v1706
    %v1708 = vsel %vm1705, %v1707, %v1703
    %v1709 = vmul.f32 1.0, %v1708
    %v1710 = vtanh.pop %v1670
    %v1711 = vxor.u32 %v1671, 2147483648
    %v1712 = vmul.f32 %v1711, 1.442695
    %v1713 = vpow.pop %v1712
    %v1714 = vadd.f32 %v1713, 1.0
    %v1715 = vrcp.pop %v1714
    %v1716 = vmul.f32 %v1714, %v1715
    %v1717 = vsub.f32 1.0, %v1716
    %v1718 = vmul.f32 %v1715, %v1717
    %v1719 = vadd.f32 %v1715, %v1718
    %vm1720 = vweird.f32 %v1714
    %vm1721 = vweird.f32 %v1715
    %vm1722 = vmor %vm1720, %vm1721
    %v1723 = vsel %vm1722, %v1715, %v1719
    %v1724 = vand.u32 2147483647, %v1714
    %vm1725 = vcmp.eq.f32.partialorder %v1724, 8.507059e+37
    %v1726 = vand.u32 %v1714, 2147483648
    %v1727 = vor.u32 1.1754944e-38, %v1726
    %v1728 = vsel %vm1725, %v1727, %v1723
    %v1729 = vmul.f32 1.0, %v1728
    %v1730 = vmul.f32 %v1709, %v1431
    %v1731 = vmul.f32 %v1690, %v1710
    %v1732 = vadd.f32 %v1730, %v1731
    %v1733 = vtanh.pop %v1732
    %v1734 = vmul.f32 %v1729, %v1733
    %v1735 = vadd.f32 %v1613, %v602
    %v1736 = vadd.f32 %v1639, %v603
    %v1737 = vadd.f32 %v1665, %v604
    %v1738 = vadd.f32 %v412, %v1735
    %v1739 = vxor.u32 %v1738, 2147483648
    %v1740 = vmul.f32 %v1739, 1.442695
    %v1741 = vpow.pop %v1740
    %v1742 = vadd.f32 %v1741, 1.0
    %v1743 = vrcp.pop %v1742
    %v1744 = vmul.f32 %v1742, %v1743
    %v1745 = vsub.f32 1.0, %v1744
    %v1746 = vmul.f32 %v1743, %v1745
    %v1747 = vadd.f32 %v1743, %v1746
    %vm1748 = vweird.f32 %v1742
    %vm1749 = vweird.f32 %v1743
    %vm1750 = vmor %vm1748, %vm1749
    %v1751 = vsel %vm1750, %v1743, %v1747
    %v1752 = vand.u32 2147483647, %v1742
    %vm1753 = vcmp.eq.f32.partialorder %v1752, 8.507059e+37
    %v1754 = vand.u32 %v1742, 2147483648
    %v1755 = vor.u32 1.1754944e-38, %v1754
    %v1756 = vsel %vm1753, %v1755, %v1751
    %v1757 = vmul.f32 1.0, %v1756
    %v1758 = vadd.f32 %v436, %v1736
    %v1759 = vxor.u32 %v1758, 2147483648
    %v1760 = vmul.f32 %v1759, 1.442695
    %v1761 = vpow.pop %v1760
    %v1762 = vadd.f32 %v1761, 1.0
    %v1763 = vrcp.pop %v1762
    %v1764 = vmul.f32 %v1762, %v1763
    %v1765 = vsub.f32 1.0, %v1764
    %v1766 = vmul.f32 %v1763, %v1765
    %v1767 = vadd.f32 %v1763, %v1766
    %vm1768 = vweird.f32 %v1762
    %vm1769 = vweird.f32 %v1763
    %vm1770 = vmor %vm1768, %vm1769
    %v1771 = vsel %vm1770, %v1763, %v1767
    %v1772 = vand.u32 2147483647, %v1762
    %vm1773 = vcmp.eq.f32.partialorder %v1772, 8.507059e+37
    %v1774 = vand.u32 %v1762, 2147483648
    %v1775 = vor.u32 1.1754944e-38, %v1774
    %v1776 = vsel %vm1773, %v1775, %v1771
    %v1777 = vmul.f32 1.0, %v1776
    %v1778 = vmul.f32 %v1757, %v1737
    %v1779 = vadd.f32 %v460, %v1778
    %v1780 = vtanh.pop %v1779
    %v1781 = vsub.f32 1.0, %v1777
    %v1782 = vmul.f32 %v1781, %v1780
    %v1783 = vmul.f32 %v1777, %v1483
    %v1784 = vadd.f32 %v1782, %v1783
    %v1785 = vpack.c.bf16 %v1734, %v1734
    %v1786 = vpack.c.bf16 %v1784, %v1784
    %1787 = vmatpush.bf16.msra.mxu0 %v1010
    %1788 = vmatpush.bf16.msra.mxu0 %v1003
    %1789 = vmatpush.bf16.msra.mxu0 %v996
    %1790 = vmatpush.bf16.msra.mxu0 %v989
    %1791 = vmatpush.bf16.msra.mxu0 %v982
    %1792 = vmatpush.bf16.msra.mxu0 %v975
    %1793 = vmatpush.bf16.msra.mxu0 %v968
    %1794 = vmatpush.bf16.msra.mxu0 %v961
    %1795 = vmatmul.bf16.gmra.mxu0 %v1785
    %v1796 = vpop.f32.mrf.mxu0
    %v1797 = vadd.f32 0.0, %v1796
    %v1798 = vpop.f32.mrf.mxu0
    %1799 = vdwg.mxu0
    %1800 = vmatpush.bf16.msra.mxu0 %v1066
    %1801 = vmatpush.bf16.msra.mxu0 %v1059
    %1802 = vmatpush.bf16.msra.mxu0 %v1052
    %1803 = vmatpush.bf16.msra.mxu0 %v1045
    %1804 = vmatpush.bf16.msra.mxu0 %v1038
    %1805 = vmatpush.bf16.msra.mxu0 %v1031
    %1806 = vmatpush.bf16.msra.mxu0 %v1024
    %1807 = vmatpush.bf16.msra.mxu0 %v1017
    %1808 = vmatmul.bf16.gmra.mxu0 %v1786
    %v1809 = vpop.f32.mrf.mxu0
    %v1810 = vadd.f32 %v1797, %v1809
    %v1811 = vpop.f32.mrf.mxu0
    %1812 = vdwg.mxu0
    %1813 = vmatpush.bf16.msra.mxu0 %v1011
    %1814 = vmatpush.bf16.msra.mxu0 %v1004
    %1815 = vmatpush.bf16.msra.mxu0 %v997
    %1816 = vmatpush.bf16.msra.mxu0 %v990
    %1817 = vmatpush.bf16.msra.mxu0 %v983
    %1818 = vmatpush.bf16.msra.mxu0 %v976
    %1819 = vmatpush.bf16.msra.mxu0 %v969
    %1820 = vmatpush.bf16.msra.mxu0 %v962
    %1821 = vmatmul.bf16.gmra.mxu0 %v1785
    %v1822 = vpop.f32.mrf.mxu0
    %v1823 = vadd.f32 0.0, %v1822
    %v1824 = vpop.f32.mrf.mxu0
    %1825 = vdwg.mxu0
    %1826 = vmatpush.bf16.msra.mxu0 %v1067
    %1827 = vmatpush.bf16.msra.mxu0 %v1060
    %1828 = vmatpush.bf16.msra.mxu0 %v1053
    %1829 = vmatpush.bf16.msra.mxu0 %v1046
    %1830 = vmatpush.bf16.msra.mxu0 %v1039
    %1831 = vmatpush.bf16.msra.mxu0 %v1032
    %1832 = vmatpush.bf16.msra.mxu0 %v1025
    %1833 = vmatpush.bf16.msra.mxu0 %v1018
    %1834 = vmatmul.bf16.gmra.mxu0 %v1786
    %v1835 = vpop.f32.mrf.mxu0
    %v1836 = vadd.f32 %v1823, %v1835
    %v1837 = vpop.f32.mrf.mxu0
    %1838 = vdwg.mxu0
    %1839 = vmatpush.bf16.msra.mxu0 %v1012
    %1840 = vmatpush.bf16.msra.mxu0 %v1005
    %1841 = vmatpush.bf16.msra.mxu0 %v998
    %1842 = vmatpush.bf16.msra.mxu0 %v991
    %1843 = vmatpush.bf16.msra.mxu0 %v984
    %1844 = vmatpush.bf16.msra.mxu0 %v977
    %1845 = vmatpush.bf16.msra.mxu0 %v970
    %1846 = vmatpush.bf16.msra.mxu0 %v963
    %1847 = vmatmul.bf16.gmra.mxu0 %v1785
    %v1848 = vpop.f32.mrf.mxu0
    %v1849 = vadd.f32 0.0, %v1848
    %v1850 = vpop.f32.mrf.mxu0
    %1851 = vdwg.mxu0
    %1852 = vmatpush.bf16.msra.mxu0 %v1068
    %1853 = vmatpush.bf16.msra.mxu0 %v1061
    %1854 = vmatpush.bf16.msra.mxu0 %v1054
    %1855 = vmatpush.bf16.msra.mxu0 %v1047
    %1856 = vmatpush.bf16.msra.mxu0 %v1040
    %1857 = vmatpush.bf16.msra.mxu0 %v1033
    %1858 = vmatpush.bf16.msra.mxu0 %v1026
    %1859 = vmatpush.bf16.msra.mxu0 %v1019
    %1860 = vmatmul.bf16.gmra.mxu0 %v1786
    %v1861 = vpop.f32.mrf.mxu0
    %v1862 = vadd.f32 %v1849, %v1861
    %v1863 = vpop.f32.mrf.mxu0
    %1864 = vdwg.mxu0
    %1865 = vmatpush.bf16.msra.mxu0 %v1013
    %1866 = vmatpush.bf16.msra.mxu0 %v1006
    %1867 = vmatpush.bf16.msra.mxu0 %v999
    %1868 = vmatpush.bf16.msra.mxu0 %v992
    %1869 = vmatpush.bf16.msra.mxu0 %v985
    %1870 = vmatpush.bf16.msra.mxu0 %v978
    %1871 = vmatpush.bf16.msra.mxu0 %v971
    %1872 = vmatpush.bf16.msra.mxu0 %v964
    %1873 = vmatmul.bf16.gmra.mxu0 %v1785
    %v1874 = vpop.f32.mrf.mxu0
    %v1875 = vadd.f32 0.0, %v1874
    %v1876 = vpop.f32.mrf.mxu0
    %1877 = vdwg.mxu0
    %1878 = vmatpush.bf16.msra.mxu0 %v1069
    %1879 = vmatpush.bf16.msra.mxu0 %v1062
    %1880 = vmatpush.bf16.msra.mxu0 %v1055
    %1881 = vmatpush.bf16.msra.mxu0 %v1048
    %1882 = vmatpush.bf16.msra.mxu0 %v1041
    %1883 = vmatpush.bf16.msra.mxu0 %v1034
    %1884 = vmatpush.bf16.msra.mxu0 %v1027
    %1885 = vmatpush.bf16.msra.mxu0 %v1020
    %1886 = vmatmul.bf16.gmra.mxu0 %v1786
    %v1887 = vpop.f32.mrf.mxu0
    %v1888 = vadd.f32 %v1875, %v1887
    %v1889 = vpop.f32.mrf.mxu0
    %1890 = vdwg.mxu0
    %1891 = vmatpush.bf16.msra.mxu0 %v1014
    %1892 = vmatpush.bf16.msra.mxu0 %v1007
    %1893 = vmatpush.bf16.msra.mxu0 %v1000
    %1894 = vmatpush.bf16.msra.mxu0 %v993
    %1895 = vmatpush.bf16.msra.mxu0 %v986
    %1896 = vmatpush.bf16.msra.mxu0 %v979
    %1897 = vmatpush.bf16.msra.mxu0 %v972
    %1898 = vmatpush.bf16.msra.mxu0 %v965
    %1899 = vmatmul.bf16.gmra.mxu0 %v1785
    %v1900 = vpop.f32.mrf.mxu0
    %v1901 = vadd.f32 0.0, %v1900
    %v1902 = vpop.f32.mrf.mxu0
    %1903 = vdwg.mxu0
    %1904 = vmatpush.bf16.msra.mxu0 %v1070
    %1905 = vmatpush.bf16.msra.mxu0 %v1063
    %1906 = vmatpush.bf16.msra.mxu0 %v1056
    %1907 = vmatpush.bf16.msra.mxu0 %v1049
    %1908 = vmatpush.bf16.msra.mxu0 %v1042
    %1909 = vmatpush.bf16.msra.mxu0 %v1035
    %1910 = vmatpush.bf16.msra.mxu0 %v1028
    %1911 = vmatpush.bf16.msra.mxu0 %v1021
    %1912 = vmatmul.bf16.gmra.mxu0 %v1786
    %v1913 = vpop.f32.mrf.mxu0
    %v1914 = vadd.f32 %v1901, %v1913
    %v1915 = vpop.f32.mrf.mxu0
    %1916 = vdwg.mxu0
    %1917 = vmatpush.bf16.msra.mxu0 %v1015
    %1918 = vmatpush.bf16.msra.mxu0 %v1008
    %1919 = vmatpush.bf16.msra.mxu0 %v1001
    %1920 = vmatpush.bf16.msra.mxu0 %v994
    %1921 = vmatpush.bf16.msra.mxu0 %v987
    %1922 = vmatpush.bf16.msra.mxu0 %v980
    %1923 = vmatpush.bf16.msra.mxu0 %v973
    %1924 = vmatpush.bf16.msra.mxu0 %v966
    %1925 = vmatmul.bf16.gmra.mxu0 %v1785
    %v1926 = vpop.f32.mrf.mxu0
    %v1927 = vadd.f32 0.0, %v1926
    %v1928 = vpop.f32.mrf.mxu0
    %1929 = vdwg.mxu0
    %1930 = vmatpush.bf16.msra.mxu0 %v1071
    %1931 = vmatpush.bf16.msra.mxu0 %v1064
    %1932 = vmatpush.bf16.msra.mxu0 %v1057
    %1933 = vmatpush.bf16.msra.mxu0 %v1050
    %1934 = vmatpush.bf16.msra.mxu0 %v1043
    %1935 = vmatpush.bf16.msra.mxu0 %v1036
    %1936 = vmatpush.bf16.msra.mxu0 %v1029
    %1937 = vmatpush.bf16.msra.mxu0 %v1022
    %1938 = vmatmul.bf16.gmra.mxu0 %v1786
    %v1939 = vpop.f32.mrf.mxu0
    %v1940 = vadd.f32 %v1927, %v1939
    %v1941 = vpop.f32.mrf.mxu0
    %1942 = vdwg.mxu0
    %1943 = vmatpush.bf16.msra.mxu0 %v1016
    %1944 = vmatpush.bf16.msra.mxu0 %v1009
    %1945 = vmatpush.bf16.msra.mxu0 %v1002
    %1946 = vmatpush.bf16.msra.mxu0 %v995
    %1947 = vmatpush.bf16.msra.mxu0 %v988
    %1948 = vmatpush.bf16.msra.mxu0 %v981
    %1949 = vmatpush.bf16.msra.mxu0 %v974
    %1950 = vmatpush.bf16.msra.mxu0 %v967
    %1951 = vmatmul.bf16.gmra.mxu0 %v1785
    %v1952 = vpop.f32.mrf.mxu0
    %v1953 = vadd.f32 0.0, %v1952
    %v1954 = vpop.f32.mrf.mxu0
    %1955 = vdwg.mxu0
    %1956 = vmatpush.bf16.msra.mxu0 %v1072
    %1957 = vmatpush.bf16.msra.mxu0 %v1065
    %1958 = vmatpush.bf16.msra.mxu0 %v1058
    %1959 = vmatpush.bf16.msra.mxu0 %v1051
    %1960 = vmatpush.bf16.msra.mxu0 %v1044
    %1961 = vmatpush.bf16.msra.mxu0 %v1037
    %1962 = vmatpush.bf16.msra.mxu0 %v1030
    %1963 = vmatpush.bf16.msra.mxu0 %v1023
    %1964 = vmatmul.bf16.gmra.mxu0 %v1786
    %v1965 = vpop.f32.mrf.mxu0
    %v1966 = vadd.f32 %v1953, %v1965
    %v1967 = vpop.f32.mrf.mxu0
    %1968 = vdwg.mxu0
    %v1969 = vadd.f32 %v227, %v1810
    %v1970 = vadd.f32 %v256, %v1836
    %v1971 = vadd.f32 %v285, %v1862
    %v1972 = vadd.f32 %v314, %v1888
    %v1973 = vxor.u32 %v1969, 2147483648
    %v1974 = vmul.f32 %v1973, 1.442695
    %v1975 = vpow.pop %v1974
    %v1976 = vadd.f32 %v1975, 1.0
    %v1977 = vrcp.pop %v1976
    %v1978 = vmul.f32 %v1976, %v1977
    %v1979 = vsub.f32 1.0, %v1978
    %v1980 = vmul.f32 %v1977, %v1979
    %v1981 = vadd.f32 %v1977, %v1980
    %vm1982 = vweird.f32 %v1976
    %vm1983 = vweird.f32 %v1977
    %vm1984 = vmor %vm1982, %vm1983
    %v1985 = vsel %vm1984, %v1977, %v1981
    %v1986 = vand.u32 2147483647, %v1976
    %vm1987 = vcmp.eq.f32.partialorder %v1986, 8.507059e+37
    %v1988 = vand.u32 %v1976, 2147483648
    %v1989 = vor.u32 1.1754944e-38, %v1988
    %v1990 = vsel %vm1987, %v1989, %v1985
    %v1991 = vmul.f32 1.0, %v1990
    %v1992 = vxor.u32 %v1970, 2147483648
    %v1993 = vmul.f32 %v1992, 1.442695
    %v1994 = vpow.pop %v1993
    %v1995 = vadd.f32 %v1994, 1.0
    %v1996 = vrcp.pop %v1995
    %v1997 = vmul.f32 %v1995, %v1996
    %v1998 = vsub.f32 1.0, %v1997
    %v1999 = vmul.f32 %v1996, %v1998
    %v2000 = vadd.f32 %v1996, %v1999
    %vm2001 = vweird.f32 %v1995
    %vm2002 = vweird.f32 %v1996
    %vm2003 = vmor %vm2001, %vm2002
    %v2004 = vsel %vm2003, %v1996, %v2000
    %v2005 = vand.u32 2147483647, %v1995
    %vm2006 = vcmp.eq.f32.partialorder %v2005, 8.507059e+37
    %v2007 = vand.u32 %v1995, 2147483648
    %v2008 = vor.u32 1.1754944e-38, %v2007
    %v2009 = vsel %vm2006, %v2008, %v2004
    %v2010 = vmul.f32 1.0, %v2009
    %v2011 = vtanh.pop %v1971
    %v2012 = vxor.u32 %v1972, 2147483648
    %v2013 = vmul.f32 %v2012, 1.442695
    %v2014 = vpow.pop %v2013
    %v2015 = vadd.f32 %v2014, 1.0
    %v2016 = vrcp.pop %v2015
    %v2017 = vmul.f32 %v2015, %v2016
    %v2018 = vsub.f32 1.0, %v2017
    %v2019 = vmul.f32 %v2016, %v2018
    %v2020 = vadd.f32 %v2016, %v2019
    %vm2021 = vweird.f32 %v2015
    %vm2022 = vweird.f32 %v2016
    %vm2023 = vmor %vm2021, %vm2022
    %v2024 = vsel %vm2023, %v2016, %v2020
    %v2025 = vand.u32 2147483647, %v2015
    %vm2026 = vcmp.eq.f32.partialorder %v2025, 8.507059e+37
    %v2027 = vand.u32 %v2015, 2147483648
    %v2028 = vor.u32 1.1754944e-38, %v2027
    %v2029 = vsel %vm2026, %v2028, %v2024
    %v2030 = vmul.f32 1.0, %v2029
    %v2031 = vmul.f32 %v2010, %v1732
    %v2032 = vmul.f32 %v1991, %v2011
    %v2033 = vadd.f32 %v2031, %v2032
    %v2034 = vtanh.pop %v2033
    %v2035 = vmul.f32 %v2030, %v2034
    %v2036 = vadd.f32 %v1914, %v602
    %v2037 = vadd.f32 %v1940, %v603
    %v2038 = vadd.f32 %v1966, %v604
    %v2039 = vadd.f32 %v415, %v2036
    %v2040 = vxor.u32 %v2039, 2147483648
    %v2041 = vmul.f32 %v2040, 1.442695
    %v2042 = vpow.pop %v2041
    %v2043 = vadd.f32 %v2042, 1.0
    %v2044 = vrcp.pop %v2043
    %v2045 = vmul.f32 %v2043, %v2044
    %v2046 = vsub.f32 1.0, %v2045
    %v2047 = vmul.f32 %v2044, %v2046
    %v2048 = vadd.f32 %v2044, %v2047
    %vm2049 = vweird.f32 %v2043
    %vm2050 = vweird.f32 %v2044
    %vm2051 = vmor %vm2049, %vm2050
    %v2052 = vsel %vm2051, %v2044, %v2048
    %v2053 = vand.u32 2147483647, %v2043
    %vm2054 = vcmp.eq.f32.partialorder %v2053, 8.507059e+37
    %v2055 = vand.u32 %v2043, 2147483648
    %v2056 = vor.u32 1.1754944e-38, %v2055
    %v2057 = vsel %vm2054, %v2056, %v2052
    %v2058 = vmul.f32 1.0, %v2057
    %v2059 = vadd.f32 %v439, %v2037
    %v2060 = vxor.u32 %v2059, 2147483648
    %v2061 = vmul.f32 %v2060, 1.442695
    %v2062 = vpow.pop %v2061
    %v2063 = vadd.f32 %v2062, 1.0
    %v2064 = vrcp.pop %v2063
    %v2065 = vmul.f32 %v2063, %v2064
    %v2066 = vsub.f32 1.0, %v2065
    %v2067 = vmul.f32 %v2064, %v2066
    %v2068 = vadd.f32 %v2064, %v2067
    %vm2069 = vweird.f32 %v2063
    %vm2070 = vweird.f32 %v2064
    %vm2071 = vmor %vm2069, %vm2070
    %v2072 = vsel %vm2071, %v2064, %v2068
    %v2073 = vand.u32 2147483647, %v2063
    %vm2074 = vcmp.eq.f32.partialorder %v2073, 8.507059e+37
    %v2075 = vand.u32 %v2063, 2147483648
    %v2076 = vor.u32 1.1754944e-38, %v2075
    %v2077 = vsel %vm2074, %v2076, %v2072
    %v2078 = vmul.f32 1.0, %v2077
    %v2079 = vmul.f32 %v2058, %v2038
    %v2080 = vadd.f32 %v463, %v2079
    %v2081 = vtanh.pop %v2080
    %v2082 = vsub.f32 1.0, %v2078
    %v2083 = vmul.f32 %v2082, %v2081
    %v2084 = vmul.f32 %v2078, %v1784
    %v2085 = vadd.f32 %v2083, %v2084
    %v2086 = vpack.c.bf16 %v2035, %v2035
    %v2087 = vpack.c.bf16 %v2085, %v2085
    %2088 = vmatpush.bf16.msra.mxu0 %v1010
    %2089 = vmatpush.bf16.msra.mxu0 %v1003
    %2090 = vmatpush.bf16.msra.mxu0 %v996
    %2091 = vmatpush.bf16.msra.mxu0 %v989
    %2092 = vmatpush.bf16.msra.mxu0 %v982
    %2093 = vmatpush.bf16.msra.mxu0 %v975
    %2094 = vmatpush.bf16.msra.mxu0 %v968
    %2095 = vmatpush.bf16.msra.mxu0 %v961
    %2096 = vmatmul.bf16.gmra.mxu0 %v2086
    %v2097 = vpop.f32.mrf.mxu0
    %v2098 = vadd.f32 0.0, %v2097
    %v2099 = vpop.f32.mrf.mxu0
    %2100 = vdwg.mxu0
    %2101 = vmatpush.bf16.msra.mxu0 %v1066
    %2102 = vmatpush.bf16.msra.mxu0 %v1059
    %2103 = vmatpush.bf16.msra.mxu0 %v1052
    %2104 = vmatpush.bf16.msra.mxu0 %v1045
    %2105 = vmatpush.bf16.msra.mxu0 %v1038
    %2106 = vmatpush.bf16.msra.mxu0 %v1031
    %2107 = vmatpush.bf16.msra.mxu0 %v1024
    %2108 = vmatpush.bf16.msra.mxu0 %v1017
    %2109 = vmatmul.bf16.gmra.mxu0 %v2087
    %v2110 = vpop.f32.mrf.mxu0
    %v2111 = vadd.f32 %v2098, %v2110
    %v2112 = vpop.f32.mrf.mxu0
    %2113 = vdwg.mxu0
    %2114 = vmatpush.bf16.msra.mxu0 %v1011
    %2115 = vmatpush.bf16.msra.mxu0 %v1004
    %2116 = vmatpush.bf16.msra.mxu0 %v997
    %2117 = vmatpush.bf16.msra.mxu0 %v990
    %2118 = vmatpush.bf16.msra.mxu0 %v983
    %2119 = vmatpush.bf16.msra.mxu0 %v976
    %2120 = vmatpush.bf16.msra.mxu0 %v969
    %2121 = vmatpush.bf16.msra.mxu0 %v962
    %2122 = vmatmul.bf16.gmra.mxu0 %v2086
    %v2123 = vpop.f32.mrf.mxu0
    %v2124 = vadd.f32 0.0, %v2123
    %v2125 = vpop.f32.mrf.mxu0
    %2126 = vdwg.mxu0
    %2127 = vmatpush.bf16.msra.mxu0 %v1067
    %2128 = vmatpush.bf16.msra.mxu0 %v1060
    %2129 = vmatpush.bf16.msra.mxu0 %v1053
    %2130 = vmatpush.bf16.msra.mxu0 %v1046
    %2131 = vmatpush.bf16.msra.mxu0 %v1039
    %2132 = vmatpush.bf16.msra.mxu0 %v1032
    %2133 = vmatpush.bf16.msra.mxu0 %v1025
    %2134 = vmatpush.bf16.msra.mxu0 %v1018
    %2135 = vmatmul.bf16.gmra.mxu0 %v2087
    %v2136 = vpop.f32.mrf.mxu0
    %v2137 = vadd.f32 %v2124, %v2136
    %v2138 = vpop.f32.mrf.mxu0
    %2139 = vdwg.mxu0
    %2140 = vmatpush.bf16.msra.mxu0 %v1012
    %2141 = vmatpush.bf16.msra.mxu0 %v1005
    %2142 = vmatpush.bf16.msra.mxu0 %v998
    %2143 = vmatpush.bf16.msra.mxu0 %v991
    %2144 = vmatpush.bf16.msra.mxu0 %v984
    %2145 = vmatpush.bf16.msra.mxu0 %v977
    %2146 = vmatpush.bf16.msra.mxu0 %v970
    %2147 = vmatpush.bf16.msra.mxu0 %v963
    %2148 = vmatmul.bf16.gmra.mxu0 %v2086
    %v2149 = vpop.f32.mrf.mxu0
    %v2150 = vadd.f32 0.0, %v2149
    %v2151 = vpop.f32.mrf.mxu0
    %2152 = vdwg.mxu0
    %2153 = vmatpush.bf16.msra.mxu0 %v1068
    %2154 = vmatpush.bf16.msra.mxu0 %v1061
    %2155 = vmatpush.bf16.msra.mxu0 %v1054
    %2156 = vmatpush.bf16.msra.mxu0 %v1047
    %2157 = vmatpush.bf16.msra.mxu0 %v1040
    %2158 = vmatpush.bf16.msra.mxu0 %v1033
    %2159 = vmatpush.bf16.msra.mxu0 %v1026
    %2160 = vmatpush.bf16.msra.mxu0 %v1019
    %2161 = vmatmul.bf16.gmra.mxu0 %v2087
    %v2162 = vpop.f32.mrf.mxu0
    %v2163 = vadd.f32 %v2150, %v2162
    %v2164 = vpop.f32.mrf.mxu0
    %2165 = vdwg.mxu0
    %2166 = vmatpush.bf16.msra.mxu0 %v1013
    %2167 = vmatpush.bf16.msra.mxu0 %v1006
    %2168 = vmatpush.bf16.msra.mxu0 %v999
    %2169 = vmatpush.bf16.msra.mxu0 %v992
    %2170 = vmatpush.bf16.msra.mxu0 %v985
    %2171 = vmatpush.bf16.msra.mxu0 %v978
    %2172 = vmatpush.bf16.msra.mxu0 %v971
    %2173 = vmatpush.bf16.msra.mxu0 %v964
    %2174 = vmatmul.bf16.gmra.mxu0 %v2086
    %v2175 = vpop.f32.mrf.mxu0
    %v2176 = vadd.f32 0.0, %v2175
    %v2177 = vpop.f32.mrf.mxu0
    %2178 = vdwg.mxu0
    %2179 = vmatpush.bf16.msra.mxu0 %v1069
    %2180 = vmatpush.bf16.msra.mxu0 %v1062
    %2181 = vmatpush.bf16.msra.mxu0 %v1055
    %2182 = vmatpush.bf16.msra.mxu0 %v1048
    %2183 = vmatpush.bf16.msra.mxu0 %v1041
    %2184 = vmatpush.bf16.msra.mxu0 %v1034
    %2185 = vmatpush.bf16.msra.mxu0 %v1027
    %2186 = vmatpush.bf16.msra.mxu0 %v1020
    %2187 = vmatmul.bf16.gmra.mxu0 %v2087
    %v2188 = vpop.f32.mrf.mxu0
    %v2189 = vadd.f32 %v2176, %v2188
    %v2190 = vpop.f32.mrf.mxu0
    %2191 = vdwg.mxu0
    %2192 = vmatpush.bf16.msra.mxu0 %v1014
    %2193 = vmatpush.bf16.msra.mxu0 %v1007
    %2194 = vmatpush.bf16.msra.mxu0 %v1000
    %2195 = vmatpush.bf16.msra.mxu0 %v993
    %2196 = vmatpush.bf16.msra.mxu0 %v986
    %2197 = vmatpush.bf16.msra.mxu0 %v979
    %2198 = vmatpush.bf16.msra.mxu0 %v972
    %2199 = vmatpush.bf16.msra.mxu0 %v965
    %2200 = vmatmul.bf16.gmra.mxu0 %v2086
    %v2201 = vpop.f32.mrf.mxu0
    %v2202 = vadd.f32 0.0, %v2201
    %v2203 = vpop.f32.mrf.mxu0
    %2204 = vdwg.mxu0
    %2205 = vmatpush.bf16.msra.mxu0 %v1070
    %2206 = vmatpush.bf16.msra.mxu0 %v1063
    %2207 = vmatpush.bf16.msra.mxu0 %v1056
    %2208 = vmatpush.bf16.msra.mxu0 %v1049
    %2209 = vmatpush.bf16.msra.mxu0 %v1042
    %2210 = vmatpush.bf16.msra.mxu0 %v1035
    %2211 = vmatpush.bf16.msra.mxu0 %v1028
    %2212 = vmatpush.bf16.msra.mxu0 %v1021
    %2213 = vmatmul.bf16.gmra.mxu0 %v2087
    %v2214 = vpop.f32.mrf.mxu0
    %v2215 = vadd.f32 %v2202, %v2214
    %v2216 = vpop.f32.mrf.mxu0
    %2217 = vdwg.mxu0
    %2218 = vmatpush.bf16.msra.mxu0 %v1015
    %2219 = vmatpush.bf16.msra.mxu0 %v1008
    %2220 = vmatpush.bf16.msra.mxu0 %v1001
    %2221 = vmatpush.bf16.msra.mxu0 %v994
    %2222 = vmatpush.bf16.msra.mxu0 %v987
    %2223 = vmatpush.bf16.msra.mxu0 %v980
    %2224 = vmatpush.bf16.msra.mxu0 %v973
    %2225 = vmatpush.bf16.msra.mxu0 %v966
    %2226 = vmatmul.bf16.gmra.mxu0 %v2086
    %v2227 = vpop.f32.mrf.mxu0
    %v2228 = vadd.f32 0.0, %v2227
    %v2229 = vpop.f32.mrf.mxu0
    %2230 = vdwg.mxu0
    %2231 = vmatpush.bf16.msra.mxu0 %v1071
    %2232 = vmatpush.bf16.msra.mxu0 %v1064
    %2233 = vmatpush.bf16.msra.mxu0 %v1057
    %2234 = vmatpush.bf16.msra.mxu0 %v1050
    %2235 = vmatpush.bf16.msra.mxu0 %v1043
    %2236 = vmatpush.bf16.msra.mxu0 %v1036
    %2237 = vmatpush.bf16.msra.mxu0 %v1029
    %2238 = vmatpush.bf16.msra.mxu0 %v1022
    %2239 = vmatmul.bf16.gmra.mxu0 %v2087
    %v2240 = vpop.f32.mrf.mxu0
    %v2241 = vadd.f32 %v2228, %v2240
    %v2242 = vpop.f32.mrf.mxu0
    %2243 = vdwg.mxu0
    %2244 = vmatpush.bf16.msra.mxu0 %v1016
    %2245 = vmatpush.bf16.msra.mxu0 %v1009
    %2246 = vmatpush.bf16.msra.mxu0 %v1002
    %2247 = vmatpush.bf16.msra.mxu0 %v995
    %2248 = vmatpush.bf16.msra.mxu0 %v988
    %2249 = vmatpush.bf16.msra.mxu0 %v981
    %2250 = vmatpush.bf16.msra.mxu0 %v974
    %2251 = vmatpush.bf16.msra.mxu0 %v967
    %2252 = vmatmul.bf16.gmra.mxu0 %v2086
    %v2253 = vpop.f32.mrf.mxu0
    %v2254 = vadd.f32 0.0, %v2253
    %v2255 = vpop.f32.mrf.mxu0
    %2256 = vdwg.mxu0
    %2257 = vmatpush.bf16.msra.mxu0 %v1072
    %2258 = vmatpush.bf16.msra.mxu0 %v1065
    %2259 = vmatpush.bf16.msra.mxu0 %v1058
    %2260 = vmatpush.bf16.msra.mxu0 %v1051
    %2261 = vmatpush.bf16.msra.mxu0 %v1044
    %2262 = vmatpush.bf16.msra.mxu0 %v1037
    %2263 = vmatpush.bf16.msra.mxu0 %v1030
    %2264 = vmatpush.bf16.msra.mxu0 %v1023
    %2265 = vmatmul.bf16.gmra.mxu0 %v2087
    %v2266 = vpop.f32.mrf.mxu0
    %v2267 = vadd.f32 %v2254, %v2266
    %v2268 = vpop.f32.mrf.mxu0
    %2269 = vdwg.mxu0
    %v2270 = vadd.f32 %v229, %v2111
    %v2271 = vadd.f32 %v258, %v2137
    %v2272 = vadd.f32 %v287, %v2163
    %v2273 = vadd.f32 %v316, %v2189
    %v2274 = vxor.u32 %v2270, 2147483648
    %v2275 = vmul.f32 %v2274, 1.442695
    %v2276 = vpow.pop %v2275
    %v2277 = vadd.f32 %v2276, 1.0
    %v2278 = vrcp.pop %v2277
    %v2279 = vmul.f32 %v2277, %v2278
    %v2280 = vsub.f32 1.0, %v2279
    %v2281 = vmul.f32 %v2278, %v2280
    %v2282 = vadd.f32 %v2278, %v2281
    %vm2283 = vweird.f32 %v2277
    %vm2284 = vweird.f32 %v2278
    %vm2285 = vmor %vm2283, %vm2284
    %v2286 = vsel %vm2285, %v2278, %v2282
    %v2287 = vand.u32 2147483647, %v2277
    %vm2288 = vcmp.eq.f32.partialorder %v2287, 8.507059e+37
    %v2289 = vand.u32 %v2277, 2147483648
    %v2290 = vor.u32 1.1754944e-38, %v2289
    %v2291 = vsel %vm2288, %v2290, %v2286
    %v2292 = vmul.f32 1.0, %v2291
    %v2293 = vxor.u32 %v2271, 2147483648
    %v2294 = vmul.f32 %v2293, 1.442695
    %v2295 = vpow.pop %v2294
    %v2296 = vadd.f32 %v2295, 1.0
    %v2297 = vrcp.pop %v2296
    %v2298 = vmul.f32 %v2296, %v2297
    %v2299 = vsub.f32 1.0, %v2298
    %v2300 = vmul.f32 %v2297, %v2299
    %v2301 = vadd.f32 %v2297, %v2300
    %vm2302 = vweird.f32 %v2296
    %vm2303 = vweird.f32 %v2297
    %vm2304 = vmor %vm2302, %vm2303
    %v2305 = vsel %vm2304, %v2297, %v2301
    %v2306 = vand.u32 2147483647, %v2296
    %vm2307 = vcmp.eq.f32.partialorder %v2306, 8.507059e+37
    %v2308 = vand.u32 %v2296, 2147483648
    %v2309 = vor.u32 1.1754944e-38, %v2308
    %v2310 = vsel %vm2307, %v2309, %v2305
    %v2311 = vmul.f32 1.0, %v2310
    %v2312 = vtanh.pop %v2272
    %v2313 = vxor.u32 %v2273, 2147483648
    %v2314 = vmul.f32 %v2313, 1.442695
    %v2315 = vpow.pop %v2314
    %v2316 = vadd.f32 %v2315, 1.0
    %v2317 = vrcp.pop %v2316
    %v2318 = vmul.f32 %v2316, %v2317
    %v2319 = vsub.f32 1.0, %v2318
    %v2320 = vmul.f32 %v2317, %v2319
    %v2321 = vadd.f32 %v2317, %v2320
    %vm2322 = vweird.f32 %v2316
    %vm2323 = vweird.f32 %v2317
    %vm2324 = vmor %vm2322, %vm2323
    %v2325 = vsel %vm2324, %v2317, %v2321
    %v2326 = vand.u32 2147483647, %v2316
    %vm2327 = vcmp.eq.f32.partialorder %v2326, 8.507059e+37
    %v2328 = vand.u32 %v2316, 2147483648
    %v2329 = vor.u32 1.1754944e-38, %v2328
    %v2330 = vsel %vm2327, %v2329, %v2325
    %v2331 = vmul.f32 1.0, %v2330
    %v2332 = vmul.f32 %v2311, %v2033
    %v2333 = vmul.f32 %v2292, %v2312
    %v2334 = vadd.f32 %v2332, %v2333
    %v2335 = vtanh.pop %v2334
    %v2336 = vmul.f32 %v2331, %v2335
    %v2337 = vadd.f32 %v2215, %v602
    %v2338 = vadd.f32 %v2241, %v603
    %v2339 = vadd.f32 %v2267, %v604
    %v2340 = vadd.f32 %v417, %v2337
    %v2341 = vxor.u32 %v2340, 2147483648
    %v2342 = vmul.f32 %v2341, 1.442695
    %v2343 = vpow.pop %v2342
    %v2344 = vadd.f32 %v2343, 1.0
    %v2345 = vrcp.pop %v2344
    %v2346 = vmul.f32 %v2344, %v2345
    %v2347 = vsub.f32 1.0, %v2346
    %v2348 = vmul.f32 %v2345, %v2347
    %v2349 = vadd.f32 %v2345, %v2348
    %vm2350 = vweird.f32 %v2344
    %vm2351 = vweird.f32 %v2345
    %vm2352 = vmor %vm2350, %vm2351
    %v2353 = vsel %vm2352, %v2345, %v2349
    %v2354 = vand.u32 2147483647, %v2344
    %vm2355 = vcmp.eq.f32.partialorder %v2354, 8.507059e+37
    %v2356 = vand.u32 %v2344, 2147483648
    %v2357 = vor.u32 1.1754944e-38, %v2356
    %v2358 = vsel %vm2355, %v2357, %v2353
    %v2359 = vmul.f32 1.0, %v2358
    %v2360 = vadd.f32 %v441, %v2338
    %v2361 = vxor.u32 %v2360, 2147483648
    %v2362 = vmul.f32 %v2361, 1.442695
    %v2363 = vpow.pop %v2362
    %v2364 = vadd.f32 %v2363, 1.0
    %v2365 = vrcp.pop %v2364
    %v2366 = vmul.f32 %v2364, %v2365
    %v2367 = vsub.f32 1.0, %v2366
    %v2368 = vmul.f32 %v2365, %v2367
    %v2369 = vadd.f32 %v2365, %v2368
    %vm2370 = vweird.f32 %v2364
    %vm2371 = vweird.f32 %v2365
    %vm2372 = vmor %vm2370, %vm2371
    %v2373 = vsel %vm2372, %v2365, %v2369
    %v2374 = vand.u32 2147483647, %v2364
    %vm2375 = vcmp.eq.f32.partialorder %v2374, 8.507059e+37
    %v2376 = vand.u32 %v2364, 2147483648
    %v2377 = vor.u32 1.1754944e-38, %v2376
    %v2378 = vsel %vm2375, %v2377, %v2373
    %v2379 = vmul.f32 1.0, %v2378
    %v2380 = vmul.f32 %v2359, %v2339
    %v2381 = vadd.f32 %v465, %v2380
    %v2382 = vtanh.pop %v2381
    %v2383 = vsub.f32 1.0, %v2379
    %v2384 = vmul.f32 %v2383, %v2382
    %v2385 = vmul.f32 %v2379, %v2085
    %v2386 = vadd.f32 %v2384, %v2385
    %v2387 = vpack.c.bf16 %v2336, %v2336
    %v2388 = vpack.c.bf16 %v2386, %v2386
    %2389 = vmatpush.bf16.msra.mxu0 %v1010
    %2390 = vmatpush.bf16.msra.mxu0 %v1003
    %2391 = vmatpush.bf16.msra.mxu0 %v996
    %2392 = vmatpush.bf16.msra.mxu0 %v989
    %2393 = vmatpush.bf16.msra.mxu0 %v982
    %2394 = vmatpush.bf16.msra.mxu0 %v975
    %2395 = vmatpush.bf16.msra.mxu0 %v968
    %2396 = vmatpush.bf16.msra.mxu0 %v961
    %2397 = vmatmul.bf16.gmra.mxu0 %v2387
    %v2398 = vpop.f32.mrf.mxu0
    %v2399 = vadd.f32 0.0, %v2398
    %v2400 = vpop.f32.mrf.mxu0
    %2401 = vdwg.mxu0
    %2402 = vmatpush.bf16.msra.mxu0 %v1066
    %2403 = vmatpush.bf16.msra.mxu0 %v1059
    %2404 = vmatpush.bf16.msra.mxu0 %v1052
    %2405 = vmatpush.bf16.msra.mxu0 %v1045
    %2406 = vmatpush.bf16.msra.mxu0 %v1038
    %2407 = vmatpush.bf16.msra.mxu0 %v1031
    %2408 = vmatpush.bf16.msra.mxu0 %v1024
    %2409 = vmatpush.bf16.msra.mxu0 %v1017
    %2410 = vmatmul.bf16.gmra.mxu0 %v2388
    %v2411 = vpop.f32.mrf.mxu0
    %v2412 = vadd.f32 %v2399, %v2411
    %v2413 = vpop.f32.mrf.mxu0
    %2414 = vdwg.mxu0
    %2415 = vmatpush.bf16.msra.mxu0 %v1011
    %2416 = vmatpush.bf16.msra.mxu0 %v1004
    %2417 = vmatpush.bf16.msra.mxu0 %v997
    %2418 = vmatpush.bf16.msra.mxu0 %v990
    %2419 = vmatpush.bf16.msra.mxu0 %v983
    %2420 = vmatpush.bf16.msra.mxu0 %v976
    %2421 = vmatpush.bf16.msra.mxu0 %v969
    %2422 = vmatpush.bf16.msra.mxu0 %v962
    %2423 = vmatmul.bf16.gmra.mxu0 %v2387
    %v2424 = vpop.f32.mrf.mxu0
    %v2425 = vadd.f32 0.0, %v2424
    %v2426 = vpop.f32.mrf.mxu0
    %2427 = vdwg.mxu0
    %2428 = vmatpush.bf16.msra.mxu0 %v1067
    %2429 = vmatpush.bf16.msra.mxu0 %v1060
    %2430 = vmatpush.bf16.msra.mxu0 %v1053
    %2431 = vmatpush.bf16.msra.mxu0 %v1046
    %2432 = vmatpush.bf16.msra.mxu0 %v1039
    %2433 = vmatpush.bf16.msra.mxu0 %v1032
    %2434 = vmatpush.bf16.msra.mxu0 %v1025
    %2435 = vmatpush.bf16.msra.mxu0 %v1018
    %2436 = vmatmul.bf16.gmra.mxu0 %v2388
    %v2437 = vpop.f32.mrf.mxu0
    %v2438 = vadd.f32 %v2425, %v2437
    %v2439 = vpop.f32.mrf.mxu0
    %2440 = vdwg.mxu0
    %2441 = vmatpush.bf16.msra.mxu0 %v1012
    %2442 = vmatpush.bf16.msra.mxu0 %v1005
    %2443 = vmatpush.bf16.msra.mxu0 %v998
    %2444 = vmatpush.bf16.msra.mxu0 %v991
    %2445 = vmatpush.bf16.msra.mxu0 %v984
    %2446 = vmatpush.bf16.msra.mxu0 %v977
    %2447 = vmatpush.bf16.msra.mxu0 %v970
    %2448 = vmatpush.bf16.msra.mxu0 %v963
    %2449 = vmatmul.bf16.gmra.mxu0 %v2387
    %v2450 = vpop.f32.mrf.mxu0
    %v2451 = vadd.f32 0.0, %v2450
    %v2452 = vpop.f32.mrf.mxu0
    %2453 = vdwg.mxu0
    %2454 = vmatpush.bf16.msra.mxu0 %v1068
    %2455 = vmatpush.bf16.msra.mxu0 %v1061
    %2456 = vmatpush.bf16.msra.mxu0 %v1054
    %2457 = vmatpush.bf16.msra.mxu0 %v1047
    %2458 = vmatpush.bf16.msra.mxu0 %v1040
    %2459 = vmatpush.bf16.msra.mxu0 %v1033
    %2460 = vmatpush.bf16.msra.mxu0 %v1026
    %2461 = vmatpush.bf16.msra.mxu0 %v1019
    %2462 = vmatmul.bf16.gmra.mxu0 %v2388
    %v2463 = vpop.f32.mrf.mxu0
    %v2464 = vadd.f32 %v2451, %v2463
    %v2465 = vpop.f32.mrf.mxu0
    %2466 = vdwg.mxu0
    %2467 = vmatpush.bf16.msra.mxu0 %v1013
    %2468 = vmatpush.bf16.msra.mxu0 %v1006
    %2469 = vmatpush.bf16.msra.mxu0 %v999
    %2470 = vmatpush.bf16.msra.mxu0 %v992
    %2471 = vmatpush.bf16.msra.mxu0 %v985
    %2472 = vmatpush.bf16.msra.mxu0 %v978
    %2473 = vmatpush.bf16.msra.mxu0 %v971
    %2474 = vmatpush.bf16.msra.mxu0 %v964
    %2475 = vmatmul.bf16.gmra.mxu0 %v2387
    %v2476 = vpop.f32.mrf.mxu0
    %v2477 = vadd.f32 0.0, %v2476
    %v2478 = vpop.f32.mrf.mxu0
    %2479 = vdwg.mxu0
    %2480 = vmatpush.bf16.msra.mxu0 %v1069
    %2481 = vmatpush.bf16.msra.mxu0 %v1062
    %2482 = vmatpush.bf16.msra.mxu0 %v1055
    %2483 = vmatpush.bf16.msra.mxu0 %v1048
    %2484 = vmatpush.bf16.msra.mxu0 %v1041
    %2485 = vmatpush.bf16.msra.mxu0 %v1034
    %2486 = vmatpush.bf16.msra.mxu0 %v1027
    %2487 = vmatpush.bf16.msra.mxu0 %v1020
    %2488 = vmatmul.bf16.gmra.mxu0 %v2388
    %v2489 = vpop.f32.mrf.mxu0
    %v2490 = vadd.f32 %v2477, %v2489
    %v2491 = vpop.f32.mrf.mxu0
    %2492 = vdwg.mxu0
    %2493 = vmatpush.bf16.msra.mxu0 %v1014
    %2494 = vmatpush.bf16.msra.mxu0 %v1007
    %2495 = vmatpush.bf16.msra.mxu0 %v1000
    %2496 = vmatpush.bf16.msra.mxu0 %v993
    %2497 = vmatpush.bf16.msra.mxu0 %v986
    %2498 = vmatpush.bf16.msra.mxu0 %v979
    %2499 = vmatpush.bf16.msra.mxu0 %v972
    %2500 = vmatpush.bf16.msra.mxu0 %v965
    %2501 = vmatmul.bf16.gmra.mxu0 %v2387
    %v2502 = vpop.f32.mrf.mxu0
    %v2503 = vadd.f32 0.0, %v2502
    %v2504 = vpop.f32.mrf.mxu0
    %2505 = vdwg.mxu0
    %2506 = vmatpush.bf16.msra.mxu0 %v1070
    %2507 = vmatpush.bf16.msra.mxu0 %v1063
    %2508 = vmatpush.bf16.msra.mxu0 %v1056
    %2509 = vmatpush.bf16.msra.mxu0 %v1049
    %2510 = vmatpush.bf16.msra.mxu0 %v1042
    %2511 = vmatpush.bf16.msra.mxu0 %v1035
    %2512 = vmatpush.bf16.msra.mxu0 %v1028
    %2513 = vmatpush.bf16.msra.mxu0 %v1021
    %2514 = vmatmul.bf16.gmra.mxu0 %v2388
    %v2515 = vpop.f32.mrf.mxu0
    %v2516 = vadd.f32 %v2503, %v2515
    %v2517 = vpop.f32.mrf.mxu0
    %2518 = vdwg.mxu0
    %2519 = vmatpush.bf16.msra.mxu0 %v1015
    %2520 = vmatpush.bf16.msra.mxu0 %v1008
    %2521 = vmatpush.bf16.msra.mxu0 %v1001
    %2522 = vmatpush.bf16.msra.mxu0 %v994
    %2523 = vmatpush.bf16.msra.mxu0 %v987
    %2524 = vmatpush.bf16.msra.mxu0 %v980
    %2525 = vmatpush.bf16.msra.mxu0 %v973
    %2526 = vmatpush.bf16.msra.mxu0 %v966
    %2527 = vmatmul.bf16.gmra.mxu0 %v2387
    %v2528 = vpop.f32.mrf.mxu0
    %v2529 = vadd.f32 0.0, %v2528
    %v2530 = vpop.f32.mrf.mxu0
    %2531 = vdwg.mxu0
    %2532 = vmatpush.bf16.msra.mxu0 %v1071
    %2533 = vmatpush.bf16.msra.mxu0 %v1064
    %2534 = vmatpush.bf16.msra.mxu0 %v1057
    %2535 = vmatpush.bf16.msra.mxu0 %v1050
    %2536 = vmatpush.bf16.msra.mxu0 %v1043
    %2537 = vmatpush.bf16.msra.mxu0 %v1036
    %2538 = vmatpush.bf16.msra.mxu0 %v1029
    %2539 = vmatpush.bf16.msra.mxu0 %v1022
    %2540 = vmatmul.bf16.gmra.mxu0 %v2388
    %v2541 = vpop.f32.mrf.mxu0
    %v2542 = vadd.f32 %v2529, %v2541
    %v2543 = vpop.f32.mrf.mxu0
    %2544 = vdwg.mxu0
    %2545 = vmatpush.bf16.msra.mxu0 %v1016
    %2546 = vmatpush.bf16.msra.mxu0 %v1009
    %2547 = vmatpush.bf16.msra.mxu0 %v1002
    %2548 = vmatpush.bf16.msra.mxu0 %v995
    %2549 = vmatpush.bf16.msra.mxu0 %v988
    %2550 = vmatpush.bf16.msra.mxu0 %v981
    %2551 = vmatpush.bf16.msra.mxu0 %v974
    %2552 = vmatpush.bf16.msra.mxu0 %v967
    %2553 = vmatmul.bf16.gmra.mxu0 %v2387
    %v2554 = vpop.f32.mrf.mxu0
    %v2555 = vadd.f32 0.0, %v2554
    %v2556 = vpop.f32.mrf.mxu0
    %2557 = vdwg.mxu0
    %2558 = vmatpush.bf16.msra.mxu0 %v1072
    %2559 = vmatpush.bf16.msra.mxu0 %v1065
    %2560 = vmatpush.bf16.msra.mxu0 %v1058
    %2561 = vmatpush.bf16.msra.mxu0 %v1051
    %2562 = vmatpush.bf16.msra.mxu0 %v1044
    %2563 = vmatpush.bf16.msra.mxu0 %v1037
    %2564 = vmatpush.bf16.msra.mxu0 %v1030
    %2565 = vmatpush.bf16.msra.mxu0 %v1023
    %2566 = vmatmul.bf16.gmra.mxu0 %v2388
    %v2567 = vpop.f32.mrf.mxu0
    %v2568 = vadd.f32 %v2555, %v2567
    %v2569 = vpop.f32.mrf.mxu0
    %2570 = vdwg.mxu0
    %v2571 = vadd.f32 %v232, %v2412
    %v2572 = vadd.f32 %v261, %v2438
    %v2573 = vadd.f32 %v290, %v2464
    %v2574 = vadd.f32 %v319, %v2490
    %v2575 = vxor.u32 %v2571, 2147483648
    %v2576 = vmul.f32 %v2575, 1.442695
    %v2577 = vpow.pop %v2576
    %v2578 = vadd.f32 %v2577, 1.0
    %v2579 = vrcp.pop %v2578
    %v2580 = vmul.f32 %v2578, %v2579
    %v2581 = vsub.f32 1.0, %v2580
    %v2582 = vmul.f32 %v2579, %v2581
    %v2583 = vadd.f32 %v2579, %v2582
    %vm2584 = vweird.f32 %v2578
    %vm2585 = vweird.f32 %v2579
    %vm2586 = vmor %vm2584, %vm2585
    %v2587 = vsel %vm2586, %v2579, %v2583
    %v2588 = vand.u32 2147483647, %v2578
    %vm2589 = vcmp.eq.f32.partialorder %v2588, 8.507059e+37
    %v2590 = vand.u32 %v2578, 2147483648
    %v2591 = vor.u32 1.1754944e-38, %v2590
    %v2592 = vsel %vm2589, %v2591, %v2587
    %v2593 = vmul.f32 1.0, %v2592
    %v2594 = vxor.u32 %v2572, 2147483648
    %v2595 = vmul.f32 %v2594, 1.442695
    %v2596 = vpow.pop %v2595
    %v2597 = vadd.f32 %v2596, 1.0
    %v2598 = vrcp.pop %v2597
    %v2599 = vmul.f32 %v2597, %v2598
    %v2600 = vsub.f32 1.0, %v2599
    %v2601 = vmul.f32 %v2598, %v2600
    %v2602 = vadd.f32 %v2598, %v2601
    %vm2603 = vweird.f32 %v2597
    %vm2604 = vweird.f32 %v2598
    %vm2605 = vmor %vm2603, %vm2604
    %v2606 = vsel %vm2605, %v2598, %v2602
    %v2607 = vand.u32 2147483647, %v2597
    %vm2608 = vcmp.eq.f32.partialorder %v2607, 8.507059e+37
    %v2609 = vand.u32 %v2597, 2147483648
    %v2610 = vor.u32 1.1754944e-38, %v2609
    %v2611 = vsel %vm2608, %v2610, %v2606
    %v2612 = vmul.f32 1.0, %v2611
    %v2613 = vtanh.pop %v2573
    %v2614 = vxor.u32 %v2574, 2147483648
    %v2615 = vmul.f32 %v2614, 1.442695
    %v2616 = vpow.pop %v2615
    %v2617 = vadd.f32 %v2616, 1.0
    %v2618 = vrcp.pop %v2617
    %v2619 = vmul.f32 %v2617, %v2618
    %v2620 = vsub.f32 1.0, %v2619
    %v2621 = vmul.f32 %v2618, %v2620
    %v2622 = vadd.f32 %v2618, %v2621
    %vm2623 = vweird.f32 %v2617
    %vm2624 = vweird.f32 %v2618
    %vm2625 = vmor %vm2623, %vm2624
    %v2626 = vsel %vm2625, %v2618, %v2622
    %v2627 = vand.u32 2147483647, %v2617
    %vm2628 = vcmp.eq.f32.partialorder %v2627, 8.507059e+37
    %v2629 = vand.u32 %v2617, 2147483648
    %v2630 = vor.u32 1.1754944e-38, %v2629
    %v2631 = vsel %vm2628, %v2630, %v2626
    %v2632 = vmul.f32 1.0, %v2631
    %v2633 = vmul.f32 %v2612, %v2334
    %v2634 = vmul.f32 %v2593, %v2613
    %v2635 = vadd.f32 %v2633, %v2634
    %v2636 = vtanh.pop %v2635
    %v2637 = vmul.f32 %v2632, %v2636
    %v2638 = vadd.f32 %v2516, %v602
    %v2639 = vadd.f32 %v2542, %v603
    %v2640 = vadd.f32 %v2568, %v604
    %v2641 = vadd.f32 %v420, %v2638
    %v2642 = vxor.u32 %v2641, 2147483648
    %v2643 = vmul.f32 %v2642, 1.442695
    %v2644 = vpow.pop %v2643
    %v2645 = vadd.f32 %v2644, 1.0
    %v2646 = vrcp.pop %v2645
    %v2647 = vmul.f32 %v2645, %v2646
    %v2648 = vsub.f32 1.0, %v2647
    %v2649 = vmul.f32 %v2646, %v2648
    %v2650 = vadd.f32 %v2646, %v2649
    %vm2651 = vweird.f32 %v2645
    %vm2652 = vweird.f32 %v2646
    %vm2653 = vmor %vm2651, %vm2652
    %v2654 = vsel %vm2653, %v2646, %v2650
    %v2655 = vand.u32 2147483647, %v2645
    %vm2656 = vcmp.eq.f32.partialorder %v2655, 8.507059e+37
    %v2657 = vand.u32 %v2645, 2147483648
    %v2658 = vor.u32 1.1754944e-38, %v2657
    %v2659 = vsel %vm2656, %v2658, %v2654
    %v2660 = vmul.f32 1.0, %v2659
    %v2661 = vadd.f32 %v444, %v2639
    %v2662 = vxor.u32 %v2661, 2147483648
    %v2663 = vmul.f32 %v2662, 1.442695
    %v2664 = vpow.pop %v2663
    %v2665 = vadd.f32 %v2664, 1.0
    %v2666 = vrcp.pop %v2665
    %v2667 = vmul.f32 %v2665, %v2666
    %v2668 = vsub.f32 1.0, %v2667
    %v2669 = vmul.f32 %v2666, %v2668
    %v2670 = vadd.f32 %v2666, %v2669
    %vm2671 = vweird.f32 %v2665
    %vm2672 = vweird.f32 %v2666
    %vm2673 = vmor %vm2671, %vm2672
    %v2674 = vsel %vm2673, %v2666, %v2670
    %v2675 = vand.u32 2147483647, %v2665
    %vm2676 = vcmp.eq.f32.partialorder %v2675, 8.507059e+37
    %v2677 = vand.u32 %v2665, 2147483648
    %v2678 = vor.u32 1.1754944e-38, %v2677
    %v2679 = vsel %vm2676, %v2678, %v2674
    %v2680 = vmul.f32 1.0, %v2679
    %v2681 = vmul.f32 %v2660, %v2640
    %v2682 = vadd.f32 %v468, %v2681
    %v2683 = vtanh.pop %v2682
    %v2684 = vsub.f32 1.0, %v2680
    %v2685 = vmul.f32 %v2684, %v2683
    %v2686 = vmul.f32 %v2680, %v2386
    %v2687 = vadd.f32 %v2685, %v2686
    %v2688 = vpack.c.bf16 %v2637, %v2637
    %v2689 = vpack.c.bf16 %v2687, %v2687
    %2690 = vmatpush.bf16.msra.mxu0 %v1010
    %2691 = vmatpush.bf16.msra.mxu0 %v1003
    %2692 = vmatpush.bf16.msra.mxu0 %v996
    %2693 = vmatpush.bf16.msra.mxu0 %v989
    %2694 = vmatpush.bf16.msra.mxu0 %v982
    %2695 = vmatpush.bf16.msra.mxu0 %v975
    %2696 = vmatpush.bf16.msra.mxu0 %v968
    %2697 = vmatpush.bf16.msra.mxu0 %v961
    %2698 = vmatmul.bf16.gmra.mxu0 %v2688
    %v2699 = vpop.f32.mrf.mxu0
    %v2700 = vadd.f32 0.0, %v2699
    %v2701 = vpop.f32.mrf.mxu0
    %2702 = vdwg.mxu0
    %2703 = vmatpush.bf16.msra.mxu0 %v1066
    %2704 = vmatpush.bf16.msra.mxu0 %v1059
    %2705 = vmatpush.bf16.msra.mxu0 %v1052
    %2706 = vmatpush.bf16.msra.mxu0 %v1045
    %2707 = vmatpush.bf16.msra.mxu0 %v1038
    %2708 = vmatpush.bf16.msra.mxu0 %v1031
    %2709 = vmatpush.bf16.msra.mxu0 %v1024
    %2710 = vmatpush.bf16.msra.mxu0 %v1017
    %2711 = vmatmul.bf16.gmra.mxu0 %v2689
    %v2712 = vpop.f32.mrf.mxu0
    %v2713 = vadd.f32 %v2700, %v2712
    %v2714 = vpop.f32.mrf.mxu0
    %2715 = vdwg.mxu0
    %2716 = vmatpush.bf16.msra.mxu0 %v1011
    %2717 = vmatpush.bf16.msra.mxu0 %v1004
    %2718 = vmatpush.bf16.msra.mxu0 %v997
    %2719 = vmatpush.bf16.msra.mxu0 %v990
    %2720 = vmatpush.bf16.msra.mxu0 %v983
    %2721 = vmatpush.bf16.msra.mxu0 %v976
    %2722 = vmatpush.bf16.msra.mxu0 %v969
    %2723 = vmatpush.bf16.msra.mxu0 %v962
    %2724 = vmatmul.bf16.gmra.mxu0 %v2688
    %v2725 = vpop.f32.mrf.mxu0
    %v2726 = vadd.f32 0.0, %v2725
    %v2727 = vpop.f32.mrf.mxu0
    %2728 = vdwg.mxu0
    %2729 = vmatpush.bf16.msra.mxu0 %v1067
    %2730 = vmatpush.bf16.msra.mxu0 %v1060
    %2731 = vmatpush.bf16.msra.mxu0 %v1053
    %2732 = vmatpush.bf16.msra.mxu0 %v1046
    %2733 = vmatpush.bf16.msra.mxu0 %v1039
    %2734 = vmatpush.bf16.msra.mxu0 %v1032
    %2735 = vmatpush.bf16.msra.mxu0 %v1025
    %2736 = vmatpush.bf16.msra.mxu0 %v1018
    %2737 = vmatmul.bf16.gmra.mxu0 %v2689
    %v2738 = vpop.f32.mrf.mxu0
    %v2739 = vadd.f32 %v2726, %v2738
    %v2740 = vpop.f32.mrf.mxu0
    %2741 = vdwg.mxu0
    %2742 = vmatpush.bf16.msra.mxu0 %v1012
    %2743 = vmatpush.bf16.msra.mxu0 %v1005
    %2744 = vmatpush.bf16.msra.mxu0 %v998
    %2745 = vmatpush.bf16.msra.mxu0 %v991
    %2746 = vmatpush.bf16.msra.mxu0 %v984
    %2747 = vmatpush.bf16.msra.mxu0 %v977
    %2748 = vmatpush.bf16.msra.mxu0 %v970
    %2749 = vmatpush.bf16.msra.mxu0 %v963
    %2750 = vmatmul.bf16.gmra.mxu0 %v2688
    %v2751 = vpop.f32.mrf.mxu0
    %v2752 = vadd.f32 0.0, %v2751
    %v2753 = vpop.f32.mrf.mxu0
    %2754 = vdwg.mxu0
    %2755 = vmatpush.bf16.msra.mxu0 %v1068
    %2756 = vmatpush.bf16.msra.mxu0 %v1061
    %2757 = vmatpush.bf16.msra.mxu0 %v1054
    %2758 = vmatpush.bf16.msra.mxu0 %v1047
    %2759 = vmatpush.bf16.msra.mxu0 %v1040
    %2760 = vmatpush.bf16.msra.mxu0 %v1033
    %2761 = vmatpush.bf16.msra.mxu0 %v1026
    %2762 = vmatpush.bf16.msra.mxu0 %v1019
    %2763 = vmatmul.bf16.gmra.mxu0 %v2689
    %v2764 = vpop.f32.mrf.mxu0
    %v2765 = vadd.f32 %v2752, %v2764
    %v2766 = vpop.f32.mrf.mxu0
    %2767 = vdwg.mxu0
    %2768 = vmatpush.bf16.msra.mxu0 %v1013
    %2769 = vmatpush.bf16.msra.mxu0 %v1006
    %2770 = vmatpush.bf16.msra.mxu0 %v999
    %2771 = vmatpush.bf16.msra.mxu0 %v992
    %2772 = vmatpush.bf16.msra.mxu0 %v985
    %2773 = vmatpush.bf16.msra.mxu0 %v978
    %2774 = vmatpush.bf16.msra.mxu0 %v971
    %2775 = vmatpush.bf16.msra.mxu0 %v964
    %2776 = vmatmul.bf16.gmra.mxu0 %v2688
    %v2777 = vpop.f32.mrf.mxu0
    %v2778 = vadd.f32 0.0, %v2777
    %v2779 = vpop.f32.mrf.mxu0
    %2780 = vdwg.mxu0
    %2781 = vmatpush.bf16.msra.mxu0 %v1069
    %2782 = vmatpush.bf16.msra.mxu0 %v1062
    %2783 = vmatpush.bf16.msra.mxu0 %v1055
    %2784 = vmatpush.bf16.msra.mxu0 %v1048
    %2785 = vmatpush.bf16.msra.mxu0 %v1041
    %2786 = vmatpush.bf16.msra.mxu0 %v1034
    %2787 = vmatpush.bf16.msra.mxu0 %v1027
    %2788 = vmatpush.bf16.msra.mxu0 %v1020
    %2789 = vmatmul.bf16.gmra.mxu0 %v2689
    %v2790 = vpop.f32.mrf.mxu0
    %v2791 = vadd.f32 %v2778, %v2790
    %v2792 = vpop.f32.mrf.mxu0
    %2793 = vdwg.mxu0
    %2794 = vmatpush.bf16.msra.mxu0 %v1014
    %2795 = vmatpush.bf16.msra.mxu0 %v1007
    %2796 = vmatpush.bf16.msra.mxu0 %v1000
    %2797 = vmatpush.bf16.msra.mxu0 %v993
    %2798 = vmatpush.bf16.msra.mxu0 %v986
    %2799 = vmatpush.bf16.msra.mxu0 %v979
    %2800 = vmatpush.bf16.msra.mxu0 %v972
    %2801 = vmatpush.bf16.msra.mxu0 %v965
    %2802 = vmatmul.bf16.gmra.mxu0 %v2688
    %v2803 = vpop.f32.mrf.mxu0
    %v2804 = vadd.f32 0.0, %v2803
    %v2805 = vpop.f32.mrf.mxu0
    %2806 = vdwg.mxu0
    %2807 = vmatpush.bf16.msra.mxu0 %v1070
    %2808 = vmatpush.bf16.msra.mxu0 %v1063
    %2809 = vmatpush.bf16.msra.mxu0 %v1056
    %2810 = vmatpush.bf16.msra.mxu0 %v1049
    %2811 = vmatpush.bf16.msra.mxu0 %v1042
    %2812 = vmatpush.bf16.msra.mxu0 %v1035
    %2813 = vmatpush.bf16.msra.mxu0 %v1028
    %2814 = vmatpush.bf16.msra.mxu0 %v1021
    %2815 = vmatmul.bf16.gmra.mxu0 %v2689
    %v2816 = vpop.f32.mrf.mxu0
    %v2817 = vadd.f32 %v2804, %v2816
    %v2818 = vpop.f32.mrf.mxu0
    %2819 = vdwg.mxu0
    %2820 = vmatpush.bf16.msra.mxu0 %v1015
    %2821 = vmatpush.bf16.msra.mxu0 %v1008
    %2822 = vmatpush.bf16.msra.mxu0 %v1001
    %2823 = vmatpush.bf16.msra.mxu0 %v994
    %2824 = vmatpush.bf16.msra.mxu0 %v987
    %2825 = vmatpush.bf16.msra.mxu0 %v980
    %2826 = vmatpush.bf16.msra.mxu0 %v973
    %2827 = vmatpush.bf16.msra.mxu0 %v966
    %2828 = vmatmul.bf16.gmra.mxu0 %v2688
    %v2829 = vpop.f32.mrf.mxu0
    %v2830 = vadd.f32 0.0, %v2829
    %v2831 = vpop.f32.mrf.mxu0
    %2832 = vdwg.mxu0
    %2833 = vmatpush.bf16.msra.mxu0 %v1071
    %2834 = vmatpush.bf16.msra.mxu0 %v1064
    %2835 = vmatpush.bf16.msra.mxu0 %v1057
    %2836 = vmatpush.bf16.msra.mxu0 %v1050
    %2837 = vmatpush.bf16.msra.mxu0 %v1043
    %2838 = vmatpush.bf16.msra.mxu0 %v1036
    %2839 = vmatpush.bf16.msra.mxu0 %v1029
    %2840 = vmatpush.bf16.msra.mxu0 %v1022
    %2841 = vmatmul.bf16.gmra.mxu0 %v2689
    %v2842 = vpop.f32.mrf.mxu0
    %v2843 = vadd.f32 %v2830, %v2842
    %v2844 = vpop.f32.mrf.mxu0
    %2845 = vdwg.mxu0
    %2846 = vmatpush.bf16.msra.mxu0 %v1016
    %2847 = vmatpush.bf16.msra.mxu0 %v1009
    %2848 = vmatpush.bf16.msra.mxu0 %v1002
    %2849 = vmatpush.bf16.msra.mxu0 %v995
    %2850 = vmatpush.bf16.msra.mxu0 %v988
    %2851 = vmatpush.bf16.msra.mxu0 %v981
    %2852 = vmatpush.bf16.msra.mxu0 %v974
    %2853 = vmatpush.bf16.msra.mxu0 %v967
    %2854 = vmatmul.bf16.gmra.mxu0 %v2688
    %v2855 = vpop.f32.mrf.mxu0
    %v2856 = vadd.f32 0.0, %v2855
    %v2857 = vpop.f32.mrf.mxu0
    %2858 = vdwg.mxu0
    %2859 = vmatpush.bf16.msra.mxu0 %v1072
    %2860 = vmatpush.bf16.msra.mxu0 %v1065
    %2861 = vmatpush.bf16.msra.mxu0 %v1058
    %2862 = vmatpush.bf16.msra.mxu0 %v1051
    %2863 = vmatpush.bf16.msra.mxu0 %v1044
    %2864 = vmatpush.bf16.msra.mxu0 %v1037
    %2865 = vmatpush.bf16.msra.mxu0 %v1030
    %2866 = vmatpush.bf16.msra.mxu0 %v1023
    %2867 = vmatmul.bf16.gmra.mxu0 %v2689
    %v2868 = vpop.f32.mrf.mxu0
    %v2869 = vadd.f32 %v2856, %v2868
    %v2870 = vpop.f32.mrf.mxu0
    %2871 = vdwg.mxu0
    %v2872 = vadd.f32 %v234, %v2713
    %v2873 = vadd.f32 %v263, %v2739
    %v2874 = vadd.f32 %v292, %v2765
    %v2875 = vadd.f32 %v321, %v2791
    %v2876 = vxor.u32 %v2872, 2147483648
    %v2877 = vmul.f32 %v2876, 1.442695
    %v2878 = vpow.pop %v2877
    %v2879 = vadd.f32 %v2878, 1.0
    %v2880 = vrcp.pop %v2879
    %v2881 = vmul.f32 %v2879, %v2880
    %v2882 = vsub.f32 1.0, %v2881
    %v2883 = vmul.f32 %v2880, %v2882
    %v2884 = vadd.f32 %v2880, %v2883
    %vm2885 = vweird.f32 %v2879
    %vm2886 = vweird.f32 %v2880
    %vm2887 = vmor %vm2885, %vm2886
    %v2888 = vsel %vm2887, %v2880, %v2884
    %v2889 = vand.u32 2147483647, %v2879
    %vm2890 = vcmp.eq.f32.partialorder %v2889, 8.507059e+37
    %v2891 = vand.u32 %v2879, 2147483648
    %v2892 = vor.u32 1.1754944e-38, %v2891
    %v2893 = vsel %vm2890, %v2892, %v2888
    %v2894 = vmul.f32 1.0, %v2893
    %v2895 = vxor.u32 %v2873, 2147483648
    %v2896 = vmul.f32 %v2895, 1.442695
    %v2897 = vpow.pop %v2896
    %v2898 = vadd.f32 %v2897, 1.0
    %v2899 = vrcp.pop %v2898
    %v2900 = vmul.f32 %v2898, %v2899
    %v2901 = vsub.f32 1.0, %v2900
    %v2902 = vmul.f32 %v2899, %v2901
    %v2903 = vadd.f32 %v2899, %v2902
    %vm2904 = vweird.f32 %v2898
    %vm2905 = vweird.f32 %v2899
    %vm2906 = vmor %vm2904, %vm2905
    %v2907 = vsel %vm2906, %v2899, %v2903
    %v2908 = vand.u32 2147483647, %v2898
    %vm2909 = vcmp.eq.f32.partialorder %v2908, 8.507059e+37
    %v2910 = vand.u32 %v2898, 2147483648
    %v2911 = vor.u32 1.1754944e-38, %v2910
    %v2912 = vsel %vm2909, %v2911, %v2907
    %v2913 = vmul.f32 1.0, %v2912
    %v2914 = vtanh.pop %v2874
    %v2915 = vxor.u32 %v2875, 2147483648
    %v2916 = vmul.f32 %v2915, 1.442695
    %v2917 = vpow.pop %v2916
    %v2918 = vadd.f32 %v2917, 1.0
    %v2919 = vrcp.pop %v2918
    %v2920 = vmul.f32 %v2918, %v2919
    %v2921 = vsub.f32 1.0, %v2920
    %v2922 = vmul.f32 %v2919, %v2921
    %v2923 = vadd.f32 %v2919, %v2922
    %vm2924 = vweird.f32 %v2918
    %vm2925 = vweird.f32 %v2919
    %vm2926 = vmor %vm2924, %vm2925
    %v2927 = vsel %vm2926, %v2919, %v2923
    %v2928 = vand.u32 2147483647, %v2918
    %vm2929 = vcmp.eq.f32.partialorder %v2928, 8.507059e+37
    %v2930 = vand.u32 %v2918, 2147483648
    %v2931 = vor.u32 1.1754944e-38, %v2930
    %v2932 = vsel %vm2929, %v2931, %v2927
    %v2933 = vmul.f32 1.0, %v2932
    %v2934 = vmul.f32 %v2913, %v2635
    %v2935 = vmul.f32 %v2894, %v2914
    %v2936 = vadd.f32 %v2934, %v2935
    %v2937 = vtanh.pop %v2936
    %v2938 = vmul.f32 %v2933, %v2937
    %v2939 = vadd.f32 %v2817, %v602
    %v2940 = vadd.f32 %v2843, %v603
    %v2941 = vadd.f32 %v2869, %v604
    %v2942 = vadd.f32 %v422, %v2939
    %v2943 = vxor.u32 %v2942, 2147483648
    %v2944 = vmul.f32 %v2943, 1.442695
    %v2945 = vpow.pop %v2944
    %v2946 = vadd.f32 %v2945, 1.0
    %v2947 = vrcp.pop %v2946
    %v2948 = vmul.f32 %v2946, %v2947
    %v2949 = vsub.f32 1.0, %v2948
    %v2950 = vmul.f32 %v2947, %v2949
    %v2951 = vadd.f32 %v2947, %v2950
    %vm2952 = vweird.f32 %v2946
    %vm2953 = vweird.f32 %v2947
    %vm2954 = vmor %vm2952, %vm2953
    %v2955 = vsel %vm2954, %v2947, %v2951
    %v2956 = vand.u32 2147483647, %v2946
    %vm2957 = vcmp.eq.f32.partialorder %v2956, 8.507059e+37
    %v2958 = vand.u32 %v2946, 2147483648
    %v2959 = vor.u32 1.1754944e-38, %v2958
    %v2960 = vsel %vm2957, %v2959, %v2955
    %v2961 = vmul.f32 1.0, %v2960
    %v2962 = vadd.f32 %v446, %v2940
    %v2963 = vxor.u32 %v2962, 2147483648
    %v2964 = vmul.f32 %v2963, 1.442695
    %v2965 = vpow.pop %v2964
    %v2966 = vadd.f32 %v2965, 1.0
    %v2967 = vrcp.pop %v2966
    %v2968 = vmul.f32 %v2966, %v2967
    %v2969 = vsub.f32 1.0, %v2968
    %v2970 = vmul.f32 %v2967, %v2969
    %v2971 = vadd.f32 %v2967, %v2970
    %vm2972 = vweird.f32 %v2966
    %vm2973 = vweird.f32 %v2967
    %vm2974 = vmor %vm2972, %vm2973
    %v2975 = vsel %vm2974, %v2967, %v2971
    %v2976 = vand.u32 2147483647, %v2966
    %vm2977 = vcmp.eq.f32.partialorder %v2976, 8.507059e+37
    %v2978 = vand.u32 %v2966, 2147483648
    %v2979 = vor.u32 1.1754944e-38, %v2978
    %v2980 = vsel %vm2977, %v2979, %v2975
    %v2981 = vmul.f32 1.0, %v2980
    %v2982 = vmul.f32 %v2961, %v2941
    %v2983 = vadd.f32 %v470, %v2982
    %v2984 = vtanh.pop %v2983
    %v2985 = vsub.f32 1.0, %v2981
    %v2986 = vmul.f32 %v2985, %v2984
    %v2987 = vmul.f32 %v2981, %v2687
    %v2988 = vadd.f32 %v2986, %v2987
    %v2989 = vpack.c.bf16 %v2938, %v2938
    %v2990 = vld [vmem:[#allocation6] sm:$0xff]
    %v2991 = vld [vmem:[#allocation6 + $0x8] sm:$0xff]
    %v2992 = vld [vmem:[#allocation6 + $0x1c] sm:$0xff]
    %v2993 = vld [vmem:[#allocation6 + $0x24] sm:$0xff]
    %v2994 = vld [vmem:[#allocation6 + $0x38] sm:$0xff]
    %v2995 = vld [vmem:[#allocation6 + $0x40] sm:$0xff]
    %v2996 = vld [vmem:[#allocation6 + $0x54] sm:$0xff]
    %v2997 = vld [vmem:[#allocation6 + $0x5c] sm:$0xff]
    %v2998 = vld [vmem:[#allocation6 + $0x70] sm:$0xff]
    %v2999 = vld [vmem:[#allocation6 + $0x78] sm:$0xff]
    %v3000 = vld [vmem:[#allocation6 + $0x8c] sm:$0xff]
    %v3001 = vld [vmem:[#allocation6 + $0x94] sm:$0xff]
    %v3002 = vld [vmem:[#allocation6 + $0xa8] sm:$0xff]
    %v3003 = vld [vmem:[#allocation6 + $0xb0] sm:$0xff]
    %v3004 = vld [vmem:[#allocation6 + $0xc4] sm:$0xff]
    %v3005 = vld [vmem:[#allocation6 + $0xcc] sm:$0xff]
    %v3006 = vld [vmem:[#allocation6 + $0xe0] sm:$0xff]
    %v3007 = vld [vmem:[#allocation6 + $0xe8] sm:$0xff]
    %v3008 = vld [vmem:[#allocation6 + $0xfc] sm:$0xff]
    %v3009 = vld [vmem:[#allocation6 + $0x104] sm:$0xff]
    %v3010 = vld [vmem:[#allocation6 + $0x118] sm:$0xff]
    %v3011 = vld [vmem:[#allocation6 + $0x120] sm:$0xff]
    %v3012 = vld [vmem:[#allocation6 + $0x134] sm:$0xff]
    %v3013 = vld [vmem:[#allocation6 + $0x13c] sm:$0xff]
    %v3014 = vld [vmem:[#allocation6 + $0x150] sm:$0xff]
    %v3015 = vld [vmem:[#allocation6 + $0x158] sm:$0xff]
    %v3016 = vld [vmem:[#allocation6 + $0x16c] sm:$0xff]
    %v3017 = vld [vmem:[#allocation6 + $0x174] sm:$0xff]
    %v3018 = vld [vmem:[#allocation6 + $0x188] sm:$0xff]
    %v3019 = vld [vmem:[#allocation6 + $0x190] sm:$0xff]
    %v3020 = vld [vmem:[#allocation6 + $0x1a4] sm:$0xff]
    %v3021 = vld [vmem:[#allocation6 + $0x1ac] sm:$0xff]
    %v3054 = vunpack.c.l.b16 %v2990
    %v3055 = vunpack.c.h.b16 %v2990
    %v3056 = vunpack.c.l.b16 %v2991
    %v3057 = vunpack.c.h.b16 %v2991
    %v3058 = vunpack.c.l.b16 %v2992
    %v3059 = vunpack.c.h.b16 %v2992
    %v3060 = vunpack.c.l.b16 %v2993
    %v3061 = vunpack.c.h.b16 %v2993
    %v3062 = vunpack.c.l.b16 %v2994
    %v3063 = vunpack.c.h.b16 %v2994
    %v3064 = vunpack.c.l.b16 %v2995
    %v3065 = vunpack.c.h.b16 %v2995
    %v3066 = vunpack.c.l.b16 %v2996
    %v3067 = vunpack.c.h.b16 %v2996
    %v3068 = vunpack.c.l.b16 %v2997
    %v3069 = vunpack.c.h.b16 %v2997
    %v3070 = vunpack.c.l.b16 %v2998
    %v3071 = vunpack.c.h.b16 %v2998
    %v3072 = vunpack.c.l.b16 %v2999
    %v3073 = vunpack.c.h.b16 %v2999
    %v3074 = vunpack.c.l.b16 %v3000
    %v3075 = vunpack.c.h.b16 %v3000
    %v3076 = vunpack.c.l.b16 %v3001
    %v3077 = vunpack.c.h.b16 %v3001
    %v3078 = vunpack.c.l.b16 %v3002
    %v3079 = vunpack.c.h.b16 %v3002
    %v3080 = vunpack.c.l.b16 %v3003
    %v3081 = vunpack.c.h.b16 %v3003
    %v3082 = vunpack.c.l.b16 %v3004
    %v3083 = vunpack.c.h.b16 %v3004
    %v3084 = vunpack.c.l.b16 %v3005
    %v3085 = vunpack.c.h.b16 %v3005
    %v3086 = vunpack.c.l.b16 %v3006
    %v3087 = vunpack.c.h.b16 %v3006
    %v3088 = vunpack.c.l.b16 %v3007
    %v3089 = vunpack.c.h.b16 %v3007
    %v3090 = vunpack.c.l.b16 %v3008
    %v3091 = vunpack.c.h.b16 %v3008
    %v3092 = vunpack.c.l.b16 %v3009
    %v3093 = vunpack.c.h.b16 %v3009
    %v3094 = vunpack.c.l.b16 %v3010
    %v3095 = vunpack.c.h.b16 %v3010
    %v3096 = vunpack.c.l.b16 %v3011
    %v3097 = vunpack.c.h.b16 %v3011
    %v3098 = vunpack.c.l.b16 %v3012
    %v3099 = vunpack.c.h.b16 %v3012
    %v3100 = vunpack.c.l.b16 %v3013
    %v3101 = vunpack.c.h.b16 %v3013
    %v3102 = vunpack.c.l.b16 %v3014
    %v3103 = vunpack.c.h.b16 %v3014
    %v3104 = vunpack.c.l.b16 %v3015
    %v3105 = vunpack.c.h.b16 %v3015
    %v3106 = vunpack.c.l.b16 %v3016
    %v3107 = vunpack.c.h.b16 %v3016
    %v3108 = vunpack.c.l.b16 %v3017
    %v3109 = vunpack.c.h.b16 %v3017
    %v3110 = vunpack.c.l.b16 %v3018
    %v3111 = vunpack.c.h.b16 %v3018
    %v3112 = vunpack.c.l.b16 %v3019
    %v3113 = vunpack.c.h.b16 %v3019
    %v3114 = vunpack.c.l.b16 %v3020
    %v3115 = vunpack.c.h.b16 %v3020
    %v3116 = vunpack.c.l.b16 %v3021
    %v3117 = vunpack.c.h.b16 %v3021
    %v3118 = vpack.c.b16 %v3058, %v3054
    %v3119 = vpack.c.b16 %v3059, %v3055
    %v3120 = vpack.c.b16 %v3060, %v3056
    %v3121 = vpack.c.b16 %v3061, %v3057
    %v3122 = vpack.c.b16 %v3066, %v3062
    %v3123 = vpack.c.b16 %v3067, %v3063
    %v3124 = vpack.c.b16 %v3068, %v3064
    %v3125 = vpack.c.b16 %v3069, %v3065
    %v3126 = vpack.c.b16 %v3074, %v3070
    %v3127 = vpack.c.b16 %v3075, %v3071
    %v3128 = vpack.c.b16 %v3076, %v3072
    %v3129 = vpack.c.b16 %v3077, %v3073
    %v3130 = vpack.c.b16 %v3082, %v3078
    %v3131 = vpack.c.b16 %v3083, %v3079
    %v3132 = vpack.c.b16 %v3084, %v3080
    %v3133 = vpack.c.b16 %v3085, %v3081
    %v3134 = vpack.c.b16 %v3090, %v3086
    %v3135 = vpack.c.b16 %v3091, %v3087
    %v3136 = vpack.c.b16 %v3092, %v3088
    %v3137 = vpack.c.b16 %v3093, %v3089
    %v3138 = vpack.c.b16 %v3098, %v3094
    %v3139 = vpack.c.b16 %v3099, %v3095
    %v3140 = vpack.c.b16 %v3100, %v3096
    %v3141 = vpack.c.b16 %v3101, %v3097
    %v3142 = vpack.c.b16 %v3106, %v3102
    %v3143 = vpack.c.b16 %v3107, %v3103
    %v3144 = vpack.c.b16 %v3108, %v3104
    %v3145 = vpack.c.b16 %v3109, %v3105
    %v3146 = vpack.c.b16 %v3114, %v3110
    %v3147 = vpack.c.b16 %v3115, %v3111
    %v3148 = vpack.c.b16 %v3116, %v3112
    %v3149 = vpack.c.b16 %v3117, %v3113
    %3182 = vmatpush.bf16.msra.mxu0 %v3146
    %3183 = vmatpush.bf16.msra.mxu0 %v3142
    %3184 = vmatpush.bf16.msra.mxu0 %v3138
    %3185 = vmatpush.bf16.msra.mxu0 %v3134
    %3186 = vmatpush.bf16.msra.mxu0 %v3130
    %3187 = vmatpush.bf16.msra.mxu0 %v3126
    %3188 = vmatpush.bf16.msra.mxu0 %v3122
    %3189 = vmatpush.bf16.msra.mxu0 %v3118
    %3190 = vmatmul.bf16.gmra.mxu0 %v2989
    %v3191 = vpop.f32.mrf.mxu0
    %v3192 = vadd.f32 0.0, %v3191
    %v3193 = vpop.f32.mrf.mxu0
    %3194 = vdwg.mxu0
    %3195 = vmatpush.bf16.msra.mxu0 %v3147
    %3196 = vmatpush.bf16.msra.mxu0 %v3143
    %3197 = vmatpush.bf16.msra.mxu0 %v3139
    %3198 = vmatpush.bf16.msra.mxu0 %v3135
    %3199 = vmatpush.bf16.msra.mxu0 %v3131
    %3200 = vmatpush.bf16.msra.mxu0 %v3127
    %3201 = vmatpush.bf16.msra.mxu0 %v3123
    %3202 = vmatpush.bf16.msra.mxu0 %v3119
    %3203 = vmatmul.bf16.gmra.mxu0 %v2989
    %v3204 = vpop.f32.mrf.mxu0
    %v3205 = vadd.f32 0.0, %v3204
    %v3206 = vpop.f32.mrf.mxu0
    %3207 = vdwg.mxu0
    %3208 = vmatpush.bf16.msra.mxu0 %v3148
    %3209 = vmatpush.bf16.msra.mxu0 %v3144
    %3210 = vmatpush.bf16.msra.mxu0 %v3140
    %3211 = vmatpush.bf16.msra.mxu0 %v3136
    %3212 = vmatpush.bf16.msra.mxu0 %v3132
    %3213 = vmatpush.bf16.msra.mxu0 %v3128
    %3214 = vmatpush.bf16.msra.mxu0 %v3124
    %3215 = vmatpush.bf16.msra.mxu0 %v3120
    %3216 = vmatmul.bf16.gmra.mxu0 %v2989
    %v3217 = vpop.f32.mrf.mxu0
    %v3218 = vadd.f32 0.0, %v3217
    %v3219 = vpop.f32.mrf.mxu0
    %3220 = vdwg.mxu0
    %3221 = vmatpush.bf16.msra.mxu0 %v3149
    %3222 = vmatpush.bf16.msra.mxu0 %v3145
    %3223 = vmatpush.bf16.msra.mxu0 %v3141
    %3224 = vmatpush.bf16.msra.mxu0 %v3137
    %3225 = vmatpush.bf16.msra.mxu0 %v3133
    %3226 = vmatpush.bf16.msra.mxu0 %v3129
    %3227 = vmatpush.bf16.msra.mxu0 %v3125
    %3228 = vmatpush.bf16.msra.mxu0 %v3121
    %3229 = vmatmul.bf16.gmra.mxu0 %v2989
    %v3230 = vpop.f32.mrf.mxu0
    %v3231 = vadd.f32 0.0, %v3230
    %v3232 = vpop.f32.mrf.mxu0
    %3233 = vdwg.mxu0
    %v3234 = vadd.f32 %v237, %v3192
    %v3235 = vadd.f32 %v266, %v3205
    %v3236 = vadd.f32 %v295, %v3218
    %v3237 = vadd.f32 %v324, %v3231
    %v3238 = vxor.u32 %v3234, 2147483648
    %v3239 = vmul.f32 %v3238, 1.442695
    %v3240 = vpow.pop %v3239
    %v3241 = vadd.f32 %v3240, 1.0
    %v3242 = vrcp.pop %v3241
    %v3243 = vmul.f32 %v3241, %v3242
    %v3244 = vsub.f32 1.0, %v3243
    %v3245 = vmul.f32 %v3242, %v3244
    %v3246 = vadd.f32 %v3242, %v3245
    %vm3247 = vweird.f32 %v3241
    %vm3248 = vweird.f32 %v3242
    %vm3249 = vmor %vm3247, %vm3248
    %v3250 = vsel %vm3249, %v3242, %v3246
    %v3251 = vand.u32 2147483647, %v3241
    %vm3252 = vcmp.eq.f32.partialorder %v3251, 8.507059e+37
    %v3253 = vand.u32 %v3241, 2147483648
    %v3254 = vor.u32 1.1754944e-38, %v3253
    %v3255 = vsel %vm3252, %v3254, %v3250
    %v3256 = vmul.f32 1.0, %v3255
    %v3257 = vxor.u32 %v3235, 2147483648
    %v3258 = vmul.f32 %v3257, 1.442695
    %v3259 = vpow.pop %v3258
    %v3260 = vadd.f32 %v3259, 1.0
    %v3261 = vrcp.pop %v3260
    %v3262 = vmul.f32 %v3260, %v3261
    %v3263 = vsub.f32 1.0, %v3262
    %v3264 = vmul.f32 %v3261, %v3263
    %v3265 = vadd.f32 %v3261, %v3264
    %vm3266 = vweird.f32 %v3260
    %vm3267 = vweird.f32 %v3261
    %vm3268 = vmor %vm3266, %vm3267
    %v3269 = vsel %vm3268, %v3261, %v3265
    %v3270 = vand.u32 2147483647, %v3260
    %vm3271 = vcmp.eq.f32.partialorder %v3270, 8.507059e+37
    %v3272 = vand.u32 %v3260, 2147483648
    %v3273 = vor.u32 1.1754944e-38, %v3272
    %v3274 = vsel %vm3271, %v3273, %v3269
    %v3275 = vmul.f32 1.0, %v3274
    %v3276 = vtanh.pop %v3236
    %v3277 = vxor.u32 %v3237, 2147483648
    %v3278 = vmul.f32 %v3277, 1.442695
    %v3279 = vpow.pop %v3278
    %v3280 = vadd.f32 %v3279, 1.0
    %v3281 = vrcp.pop %v3280
    %v3282 = vmul.f32 %v3280, %v3281
    %v3283 = vsub.f32 1.0, %v3282
    %v3284 = vmul.f32 %v3281, %v3283
    %v3285 = vadd.f32 %v3281, %v3284
    %vm3286 = vweird.f32 %v3280
    %vm3287 = vweird.f32 %v3281
    %vm3288 = vmor %vm3286, %vm3287
    %v3289 = vsel %vm3288, %v3281, %v3285
    %v3290 = vand.u32 2147483647, %v3280
    %vm3291 = vcmp.eq.f32.partialorder %v3290, 8.507059e+37
    %v3292 = vand.u32 %v3280, 2147483648
    %v3293 = vor.u32 1.1754944e-38, %v3292
    %v3294 = vsel %vm3291, %v3293, %v3289
    %v3295 = vmul.f32 1.0, %v3294
    %v3296 = vmul.f32 %v3275, %v2936
    %v3297 = vmul.f32 %v3256, %v3276
    %v3298 = vadd.f32 %v3296, %v3297
    %v3299 = vtanh.pop %v3298
    %v3300 = vmul.f32 %v3295, %v3299
    %v3301 = vpack.c.bf16 %v3300, %v3300
    %3302 = vmatpush.bf16.msra.mxu0 %v3146
    %3303 = vmatpush.bf16.msra.mxu0 %v3142
    %3304 = vmatpush.bf16.msra.mxu0 %v3138
    %3305 = vmatpush.bf16.msra.mxu0 %v3134
    %3306 = vmatpush.bf16.msra.mxu0 %v3130
    %3307 = vmatpush.bf16.msra.mxu0 %v3126
    %3308 = vmatpush.bf16.msra.mxu0 %v3122
    %3309 = vmatpush.bf16.msra.mxu0 %v3118
    %3310 = vmatmul.bf16.gmra.mxu0 %v3301
    %v3311 = vpop.f32.mrf.mxu0
    %v3312 = vadd.f32 0.0, %v3311
    %v3313 = vpop.f32.mrf.mxu0
    %3314 = vdwg.mxu0
    %3315 = vmatpush.bf16.msra.mxu0 %v3147
    %3316 = vmatpush.bf16.msra.mxu0 %v3143
    %3317 = vmatpush.bf16.msra.mxu0 %v3139
    %3318 = vmatpush.bf16.msra.mxu0 %v3135
    %3319 = vmatpush.bf16.msra.mxu0 %v3131
    %3320 = vmatpush.bf16.msra.mxu0 %v3127
    %3321 = vmatpush.bf16.msra.mxu0 %v3123
    %3322 = vmatpush.bf16.msra.mxu0 %v3119
    %3323 = vmatmul.bf16.gmra.mxu0 %v3301
    %v3324 = vpop.f32.mrf.mxu0
    %v3325 = vadd.f32 0.0, %v3324
    %v3326 = vpop.f32.mrf.mxu0
    %3327 = vdwg.mxu0
    %3328 = vmatpush.bf16.msra.mxu0 %v3148
    %3329 = vmatpush.bf16.msra.mxu0 %v3144
    %3330 = vmatpush.bf16.msra.mxu0 %v3140
    %3331 = vmatpush.bf16.msra.mxu0 %v3136
    %3332 = vmatpush.bf16.msra.mxu0 %v3132
    %3333 = vmatpush.bf16.msra.mxu0 %v3128
    %3334 = vmatpush.bf16.msra.mxu0 %v3124
    %3335 = vmatpush.bf16.msra.mxu0 %v3120
    %3336 = vmatmul.bf16.gmra.mxu0 %v3301
    %v3337 = vpop.f32.mrf.mxu0
    %v3338 = vadd.f32 0.0, %v3337
    %v3339 = vpop.f32.mrf.mxu0
    %3340 = vdwg.mxu0
    %3341 = vmatpush.bf16.msra.mxu0 %v3149
    %3342 = vmatpush.bf16.msra.mxu0 %v3145
    %3343 = vmatpush.bf16.msra.mxu0 %v3141
    %3344 = vmatpush.bf16.msra.mxu0 %v3137
    %3345 = vmatpush.bf16.msra.mxu0 %v3133
    %3346 = vmatpush.bf16.msra.mxu0 %v3129
    %3347 = vmatpush.bf16.msra.mxu0 %v3125
    %3348 = vmatpush.bf16.msra.mxu0 %v3121
    %3349 = vmatmul.bf16.gmra.mxu0 %v3301
    %v3350 = vpop.f32.mrf.mxu0
    %v3351 = vadd.f32 0.0, %v3350
    %v3352 = vpop.f32.mrf.mxu0
    %3353 = vdwg.mxu0
    %v3354 = vadd.f32 %v239, %v3312
    %v3355 = vadd.f32 %v268, %v3325
    %v3356 = vadd.f32 %v297, %v3338
    %v3357 = vadd.f32 %v326, %v3351
    %v3358 = vxor.u32 %v3354, 2147483648
    %v3359 = vmul.f32 %v3358, 1.442695
    %v3360 = vpow.pop %v3359
    %v3361 = vadd.f32 %v3360, 1.0
    %v3362 = vrcp.pop %v3361
    %v3363 = vmul.f32 %v3361, %v3362
    %v3364 = vsub.f32 1.0, %v3363
    %v3365 = vmul.f32 %v3362, %v3364
    %v3366 = vadd.f32 %v3362, %v3365
    %vm3367 = vweird.f32 %v3361
    %vm3368 = vweird.f32 %v3362
    %vm3369 = vmor %vm3367, %vm3368
    %v3370 = vsel %vm3369, %v3362, %v3366
    %v3371 = vand.u32 2147483647, %v3361
    %vm3372 = vcmp.eq.f32.partialorder %v3371, 8.507059e+37
    %v3373 = vand.u32 %v3361, 2147483648
    %v3374 = vor.u32 1.1754944e-38, %v3373
    %v3375 = vsel %vm3372, %v3374, %v3370
    %v3376 = vmul.f32 1.0, %v3375
    %v3377 = vxor.u32 %v3355, 2147483648
    %v3378 = vmul.f32 %v3377, 1.442695
    %v3379 = vpow.pop %v3378
    %v3380 = vadd.f32 %v3379, 1.0
    %v3381 = vrcp.pop %v3380
    %v3382 = vmul.f32 %v3380, %v3381
    %v3383 = vsub.f32 1.0, %v3382
    %v3384 = vmul.f32 %v3381, %v3383
    %v3385 = vadd.f32 %v3381, %v3384
    %vm3386 = vweird.f32 %v3380
    %vm3387 = vweird.f32 %v3381
    %vm3388 = vmor %vm3386, %vm3387
    %v3389 = vsel %vm3388, %v3381, %v3385
    %v3390 = vand.u32 2147483647, %v3380
    %vm3391 = vcmp.eq.f32.partialorder %v3390, 8.507059e+37
    %v3392 = vand.u32 %v3380, 2147483648
    %v3393 = vor.u32 1.1754944e-38, %v3392
    %v3394 = vsel %vm3391, %v3393, %v3389
    %v3395 = vmul.f32 1.0, %v3394
    %v3396 = vtanh.pop %v3356
    %v3397 = vxor.u32 %v3357, 2147483648
    %v3398 = vmul.f32 %v3397, 1.442695
    %v3399 = vpow.pop %v3398
    %v3400 = vadd.f32 %v3399, 1.0
    %v3401 = vrcp.pop %v3400
    %v3402 = vmul.f32 %v3400, %v3401
    %v3403 = vsub.f32 1.0, %v3402
    %v3404 = vmul.f32 %v3401, %v3403
    %v3405 = vadd.f32 %v3401, %v3404
    %vm3406 = vweird.f32 %v3400
    %vm3407 = vweird.f32 %v3401
    %vm3408 = vmor %vm3406, %vm3407
    %v3409 = vsel %vm3408, %v3401, %v3405
    %v3410 = vand.u32 2147483647, %v3400
    %vm3411 = vcmp.eq.f32.partialorder %v3410, 8.507059e+37
    %v3412 = vand.u32 %v3400, 2147483648
    %v3413 = vor.u32 1.1754944e-38, %v3412
    %v3414 = vsel %vm3411, %v3413, %v3409
    %v3415 = vmul.f32 1.0, %v3414
    %v3416 = vmul.f32 %v3395, %v3298
    %v3417 = vmul.f32 %v3376, %v3396
    %v3418 = vadd.f32 %v3416, %v3417
    %v3419 = vtanh.pop %v3418
    %v3420 = vmul.f32 %v3415, %v3419
    %v3421 = vpack.c.bf16 %v3420, %v3420
    %v3422 = vpack.c.bf16 %v2988, %v2988
    %v3423 = vld [vmem:[#allocation8] sm:$0xf]
    %v3424 = vld [vmem:[#allocation8 + $0x4] sm:$0xf]
    %v3425 = vld [vmem:[#allocation8 + $0x8] sm:$0xf]
    %v3426 = vld [vmem:[#allocation8 + $0xc] sm:$0xf]
    %v3427 = vld [vmem:[#allocation8 + $0x10] sm:$0xf]
    %v3428 = vld [vmem:[#allocation8 + $0x14] sm:$0xf]
    %v3429 = vld [vmem:[#allocation8 + $0x18] sm:$0xf]
    %v3430 = vld [vmem:[#allocation8 + $0x1c] sm:$0xf]
    %v3431 = vld [vmem:[#allocation8 + $0x20] sm:$0xf]
    %v3432 = vld [vmem:[#allocation8 + $0x24] sm:$0xf]
    %v3433 = vld [vmem:[#allocation8 + $0x28] sm:$0xf]
    %v3434 = vld [vmem:[#allocation8 + $0x2c] sm:$0xf]
    %v3435 = vld [vmem:[#allocation8 + $0x30] sm:$0xf]
    %v3436 = vld [vmem:[#allocation8 + $0x34] sm:$0xf]
    %v3437 = vld [vmem:[#allocation8 + $0x38] sm:$0xf]
    %v3438 = vld [vmem:[#allocation8 + $0x3c] sm:$0xf]
    %v3439 = vld [vmem:[#allocation8 + $0x40] sm:$0xf]
    %v3440 = vld [vmem:[#allocation8 + $0x44] sm:$0xf]
    %v3441 = vld [vmem:[#allocation8 + $0x48] sm:$0xf]
    %v3442 = vld [vmem:[#allocation8 + $0x4c] sm:$0xf]
    %v3443 = vld [vmem:[#allocation8 + $0x50] sm:$0xf]
    %v3444 = vld [vmem:[#allocation8 + $0x54] sm:$0xf]
    %v3445 = vld [vmem:[#allocation8 + $0x58] sm:$0xf]
    %v3446 = vld [vmem:[#allocation8 + $0x5c] sm:$0xf]
    %v3447 = vld [vmem:[#allocation8 + $0x60] sm:$0xf]
    %v3448 = vld [vmem:[#allocation8 + $0x64] sm:$0xf]
    %v3449 = vld [vmem:[#allocation8 + $0x68] sm:$0xf]
    %v3450 = vld [vmem:[#allocation8 + $0x6c] sm:$0xf]
    %v3451 = vld [vmem:[#allocation8 + $0x70] sm:$0xf]
    %v3452 = vld [vmem:[#allocation8 + $0x74] sm:$0xf]
    %v3453 = vld [vmem:[#allocation8 + $0x78] sm:$0xf]
    %v3454 = vld [vmem:[#allocation8 + $0x7c] sm:$0xf]
    %v3455 = vld [vmem:[%s9] sm:$0x1]
    %v3457 = vperm.slane %v3455, 0
    %v3491 = vunpack.c.l.b16 %v3423
    %v3492 = vunpack.c.l.b16 %v3424
    %v3493 = vunpack.c.l.b16 %v3425
    %v3494 = vunpack.c.l.b16 %v3426
    %v3495 = vunpack.c.l.b16 %v3427
    %v3496 = vunpack.c.l.b16 %v3428
    %v3497 = vunpack.c.l.b16 %v3429
    %v3498 = vunpack.c.l.b16 %v3430
    %v3499 = vunpack.c.l.b16 %v3431
    %v3500 = vunpack.c.l.b16 %v3432
    %v3501 = vunpack.c.l.b16 %v3433
    %v3502 = vunpack.c.l.b16 %v3434
    %v3503 = vunpack.c.l.b16 %v3435
    %v3504 = vunpack.c.l.b16 %v3436
    %v3505 = vunpack.c.l.b16 %v3437
    %v3506 = vunpack.c.l.b16 %v3438
    %v3507 = vunpack.c.l.b16 %v3439
    %v3508 = vunpack.c.l.b16 %v3440
    %v3509 = vunpack.c.l.b16 %v3441
    %v3510 = vunpack.c.l.b16 %v3442
    %v3511 = vunpack.c.l.b16 %v3443
    %v3512 = vunpack.c.l.b16 %v3444
    %v3513 = vunpack.c.l.b16 %v3445
    %v3514 = vunpack.c.l.b16 %v3446
    %v3515 = vunpack.c.l.b16 %v3447
    %v3516 = vunpack.c.l.b16 %v3448
    %v3517 = vunpack.c.l.b16 %v3449
    %v3518 = vunpack.c.l.b16 %v3450
    %v3519 = vunpack.c.l.b16 %v3451
    %v3520 = vunpack.c.l.b16 %v3452
    %v3521 = vunpack.c.l.b16 %v3453
    %v3522 = vunpack.c.l.b16 %v3454
    %v3523 = vpack.c.b16 %v3492, %v3491
    %v3524 = vpack.c.b16 %v3494, %v3493
    %v3525 = vpack.c.b16 %v3496, %v3495
    %v3526 = vpack.c.b16 %v3498, %v3497
    %v3527 = vpack.c.b16 %v3500, %v3499
    %v3528 = vpack.c.b16 %v3502, %v3501
    %v3529 = vpack.c.b16 %v3504, %v3503
    %v3530 = vpack.c.b16 %v3506, %v3505
    %v3531 = vpack.c.b16 %v3508, %v3507
    %v3532 = vpack.c.b16 %v3510, %v3509
    %v3533 = vpack.c.b16 %v3512, %v3511
    %v3534 = vpack.c.b16 %v3514, %v3513
    %v3535 = vpack.c.b16 %v3516, %v3515
    %v3536 = vpack.c.b16 %v3518, %v3517
    %v3537 = vpack.c.b16 %v3520, %v3519
    %v3538 = vpack.c.b16 %v3522, %v3521
    %3555 = vmatpush.bf16.msra.mxu0 %v3530
    %3556 = vmatpush.bf16.msra.mxu0 %v3529
    %3557 = vmatpush.bf16.msra.mxu0 %v3528
    %3558 = vmatpush.bf16.msra.mxu0 %v3527
    %3559 = vmatpush.bf16.msra.mxu0 %v3526
    %3560 = vmatpush.bf16.msra.mxu0 %v3525
    %3561 = vmatpush.bf16.msra.mxu0 %v3524
    %3562 = vmatpush.bf16.msra.mxu0 %v3523
    %3563 = vmatmul.bf16.gmra.mxu0 %v3421
    %v3564 = vpop.f32.mrf.mxu0
    %v3565 = vadd.f32 %v3457, %v3564
    %v3566 = vpop.f32.mrf.mxu0
    %3567 = vdwg.mxu0
    %3568 = vmatpush.bf16.msra.mxu0 %v3538
    %3569 = vmatpush.bf16.msra.mxu0 %v3537
    %3570 = vmatpush.bf16.msra.mxu0 %v3536
    %3571 = vmatpush.bf16.msra.mxu0 %v3535
    %3572 = vmatpush.bf16.msra.mxu0 %v3534
    %3573 = vmatpush.bf16.msra.mxu0 %v3533
    %3574 = vmatpush.bf16.msra.mxu0 %v3532
    %3575 = vmatpush.bf16.msra.mxu0 %v3531
    %3576 = vmatmul.bf16.gmra.mxu0 %v3422
    %v3577 = vpop.f32.mrf.mxu0
    %v3578 = vadd.f32 %v3565, %v3577
    %v3579 = vpop.f32.mrf.mxu0
    %3580 = vdwg.mxu0
    %v3581 = vpack.c.bf16 %v3578, %v3578
    %v3582 = vld [vmem:[#allocation9] sm:$0xf]
    %v3583 = vld [vmem:[#allocation9 + $0x4] sm:$0xf]
    %v3584 = vld [vmem:[#allocation9 + $0x8] sm:$0xf]
    %v3585 = vld [vmem:[#allocation9 + $0xc] sm:$0xf]
    %v3586 = vld [vmem:[#allocation9 + $0x10] sm:$0xf]
    %v3587 = vld [vmem:[#allocation9 + $0x14] sm:$0xf]
    %v3588 = vld [vmem:[#allocation9 + $0x18] sm:$0xf]
    %v3589 = vld [vmem:[#allocation9 + $0x1c] sm:$0xf]
    %v3590 = vld [vmem:[#allocation9 + $0x20] sm:$0xf]
    %v3591 = vld [vmem:[#allocation9 + $0x24] sm:$0xf]
    %v3592 = vld [vmem:[#allocation9 + $0x28] sm:$0xf]
    %v3593 = vld [vmem:[#allocation9 + $0x2c] sm:$0xf]
    %v3594 = vld [vmem:[#allocation9 + $0x30] sm:$0xf]
    %v3595 = vld [vmem:[#allocation9 + $0x34] sm:$0xf]
    %v3596 = vld [vmem:[#allocation9 + $0x38] sm:$0xf]
    %v3597 = vld [vmem:[#allocation9 + $0x3c] sm:$0xf]
    %v3614 = vunpack.c.l.b16 %v3582
    %v3615 = vunpack.c.l.b16 %v3583
    %v3616 = vunpack.c.l.b16 %v3584
    %v3617 = vunpack.c.l.b16 %v3585
    %v3618 = vunpack.c.l.b16 %v3586
    %v3619 = vunpack.c.l.b16 %v3587
    %v3620 = vunpack.c.l.b16 %v3588
    %v3621 = vunpack.c.l.b16 %v3589
    %v3622 = vunpack.c.l.b16 %v3590
    %v3623 = vunpack.c.l.b16 %v3591
    %v3624 = vunpack.c.l.b16 %v3592
    %v3625 = vunpack.c.l.b16 %v3593
    %v3626 = vunpack.c.l.b16 %v3594
    %v3627 = vunpack.c.l.b16 %v3595
    %v3628 = vunpack.c.l.b16 %v3596
    %v3629 = vunpack.c.l.b16 %v3597
    %v3630 = vpack.c.b16 %v3615, %v3614
    %v3631 = vpack.c.b16 %v3617, %v3616
    %v3632 = vpack.c.b16 %v3619, %v3618
    %v3633 = vpack.c.b16 %v3621, %v3620
    %v3634 = vpack.c.b16 %v3623, %v3622
    %v3635 = vpack.c.b16 %v3625, %v3624
    %v3636 = vpack.c.b16 %v3627, %v3626
    %v3637 = vpack.c.b16 %v3629, %v3628
    %3646 = vmatpush.bf16.msra.mxu0 %v3637
    %3647 = vmatpush.bf16.msra.mxu0 %v3636
    %3648 = vmatpush.bf16.msra.mxu0 %v3635
    %3649 = vmatpush.bf16.msra.mxu0 %v3634
    %3650 = vmatpush.bf16.msra.mxu0 %v3633
    %3651 = vmatpush.bf16.msra.mxu0 %v3632
    %3652 = vmatpush.bf16.msra.mxu0 %v3631
    %3653 = vmatpush.bf16.msra.mxu0 %v3630
    %3654 = vmatmul.bf16.gmra.mxu0 %v3581
    %v3655 = vpop.f32.mrf.mxu0
    %v3656 = vadd.f32 0.0, %v3655
    %v3657 = vpop.f32.mrf.mxu0
    %3658 = vdwg.mxu0
    %v3660 = vrot.slane %v3578, 4
    %v3662 = vmul.f32 %v3656, %v3660
    %vm3663 = vcmask 1043456
    %v3664 = vsel %vm3663, %v3662, 0.0
    %3665 = vadd.xlane.f32.xlu0 %v3664
    %v3666 = vpop.xlane.xlu0 %3665
    %s3667 = sld [smem:[#allocation2]]
    %v3668 = vstv %s3667
    %v3669 = vadd.f32 %v3666, %v3668
    %3670 = vst [vmem:[#allocation11] sm:$0xf] %v3669
    // Predicated region
    $region66: #{tpu_custom_call.1} parent=1 // pred_check
      _
    $region67: #{tpu_custom_call.1} parent=1 // pred_check_branch
      %3672 = sbr.rel (0) target = $region69
    $region68: #{tpu_custom_call.1} parent=1 // pred_region
      %3674 = vsyncadd [#allocation5], 0
      %s3676 = sshll.u32 [#allocation11], 4
      %s3677 = int_to_ptr.vmem [resolvable:$true] %s3676
      %s3678 = sshll.u32 %s12, 4
      %s3679 = int_to_ptr.hbm [resolvable:$true] %s3678
      %3681 = dma.vmem_to_hbm [thread:$0]  %s3677, 64, %s3679, [#allocation5]
    $region69: #{tpu_custom_call.1} parent=1 // pred_fallthru
      _
    // Predicated region
    $region70: #{tpu_custom_call.1} parent=1 // pred_check
      _
    $region71: #{tpu_custom_call.1} parent=1 // pred_check_branch
      %3683 = sbr.rel (0) target = $region73
    $region72: #{tpu_custom_call.1} parent=1 // pred_region
      %3685 = dma.done [#allocation5], 64
    $region73: #{tpu_custom_call.1} parent=1 // pred_fallthru
      _
    %3686 = vsyncpa [#allocation4], 1
    %3687 = vsyncpa [#allocation7], 1
    %3688 = vsyncpa [#allocation10], 1
    %3689 = vsyncpa [#allocation5], 1

</llo_original>
